<compile_context>
chip_gen: v6e
topology: v6e:2x2x1
jax: 0.10.0
libtpu: 0.0.40
codegen_flags: <defaults>
</compile_context>

<pallas_src>
import functools
import math

import numpy as np

import jax
import jax.numpy as jnp
from jax.experimental import pallas as pl
from jax.experimental.pallas import tpu as pltpu

_LOG_2PI = math.log(2.0 * math.pi)
_WEIGHT_CLAMP_MIN = 1e-6


def _round_up(v, m):
    return ((v + m - 1) // m) * m


def _pick_time_tile(T, H):
    """Time-tile TM: modest (bounded band-zero waste on the MXU), divides T,
    and TM >= H so the halo always fits inside the previous tile."""
    for tm in (128, 256, 64, 512, 32):
        if tm >= H and T % tm == 0:
            return tm
    # TODO(synk): pad + mask ragged T instead of one big tile.
    return T


def _build_bands(w2, TM, H, K):
    """Band matrices so the causal conv becomes two MXU matmuls.

    Tile output row i (global t = t0 + i) is
        out[i] = bias + sum_k w[k] * rates[t0 + i + k - (K-1)]
    Sources inside the tile   -> main band  (TM, TM):  B[i, j]  = w[K-1 + j - i]
    Sources before the tile   -> halo band  (TM, H):   Bh[i, h] = w[h - i - (H-(K-1))]
    (halo buffer holds rates rows [t0 - H, t0); zeros at the sequence start).
    Rows for the two output channels (mean, logvar) are stacked -> (2*TM, .).
    """
    i_idx = jnp.arange(TM)[:, None]

    j_idx = jnp.arange(TM)[None, :]
    k_main = (K - 1) + j_idx - i_idx
    vm = (k_main >= 0) & (k_main < K)
    k_main = jnp.clip(k_main, 0, K - 1)

    h_idx = jnp.arange(H)[None, :]
    k_halo = h_idx - i_idx - (H - (K - 1))
    vh = (k_halo >= 0) & (k_halo <= K - 2)
    k_halo = jnp.clip(k_halo, 0, K - 1)

    def bands_for(w_row):
        bm = jnp.where(vm, w_row[k_main], 0.0)
        bh = jnp.where(vh, w_row[k_halo], 0.0)
        return bm, bh

    bm0, bh0 = bands_for(w2[0])        # mean taps
    bm1, bh1 = bands_for(w2[1])        # logvar taps
    return (jnp.concatenate([bm0, bm1], axis=0),
            jnp.concatenate([bh0, bh1], axis=0))


def _ll_kernel(x_ref, r_ref, bm_ref, bh_ref, bias_ref, out_ref,
               halo_ref, acc_ref, *, TM, H, T, N, num_tiles):
    """One time tile: banded-matmul causal conv + Gaussian term + reduction.

    x_ref    : VMEM (TM, N)      target data tile, N = batch*channels (lanes)
    r_ref    : VMEM (TM, N)      rates tile
    bm_ref   : VMEM (2*TM, TM)   stacked main band (rows 0..TM-1 mean, rest logvar)
    bh_ref   : VMEM (2*TM, H)    stacked halo band
    bias_ref : SMEM (2,)         conv bias
    out_ref  : VMEM (1, 1)       final scalar (written at last grid step)
    halo_ref : VMEM (H, N)       carried last H rows of the previous rates tile
    acc_ref  : VMEM (1, 1)       running sum of (logvar + diff^2 * exp(-logvar))
    """
    i = pl.program_id(0)

    @pl.when(i == 0)
    def _():
        acc_ref[...] = jnp.zeros_like(acc_ref)
        halo_ref[...] = jnp.zeros_like(halo_ref)   # causal zero padding

    r_blk = r_ref[...]

    # Causal conv on the MXU (full-f32 precision; bf16 default would cost ~1e-2).
    conv = jnp.dot(bm_ref[...], r_blk,
                   preferred_element_type=jnp.float32,
                   precision=jax.lax.Precision.HIGHEST)
    conv = conv + jnp.dot(bh_ref[...], halo_ref[...],
                          preferred_element_type=jnp.float32,
                          precision=jax.lax.Precision.HIGHEST)

    mean = bias_ref[0] + conv[:TM, :]
    logvar = bias_ref[1] + conv[TM:, :]

    diff = x_ref[...] - mean
    term = logvar + diff * diff * jnp.exp(-logvar)      # log(2*pi) hoisted out

    # sublane reduce then lane reduce -> (1,1), accumulate across tiles
    acc_ref[...] += jnp.sum(jnp.sum(term, axis=0, keepdims=True),
                            axis=1, keepdims=True)

    if num_tiles > 1:                                   # static Python guard
        halo_ref[...] = r_blk[TM - H:, :]               # carry halo to next tile

    @pl.when(i == num_tiles - 1)
    def _():
        # mean over time then sum over (batch, channels) == sum(all)/T
        out_ref[...] = -0.5 * (acc_ref[...] * (1.0 / T) + (N * _LOG_2PI))


@jax.jit
def loglikelihood_exp_shot_noise(x, rates, weight, bias):
    """JAX/Pallas equivalent of LogLikelihoodExpShotNoise.forward.

    x, rates : (T, B, C)
    weight   : (2, 1, K, 1)  (PyTorch Conv2d layout; any reshape to (2, K) ok)
    bias     : (2,)
    returns  : scalar (0-d device array)
    """
    T, B, C = x.shape
    N = B * C

    w2 = jnp.maximum(weight.reshape(2, -1).astype(jnp.float32),
                     _WEIGHT_CLAMP_MIN)                 # forward-time clamp
    K = w2.shape[1]
    b1 = bias.reshape(2).astype(jnp.float32)

    H = max(8, _round_up(K - 1, 8))                     # 8-aligned halo depth
    TM = _pick_time_tile(T, H)
    num_tiles = T // TM

    x2 = x.reshape(T, N).astype(jnp.float32)            # lane-dense (T, B*C)
    r2 = rates.reshape(T, N).astype(jnp.float32)

    band_main, band_halo = _build_bands(w2, TM, H, K)

    kernel = functools.partial(_ll_kernel, TM=TM, H=H, T=T, N=N,
                               num_tiles=num_tiles)

    out = pl.pallas_call(
        kernel,
        out_shape=jax.ShapeDtypeStruct((1, 1), jnp.float32),
        grid_spec=pltpu.PrefetchScalarGridSpec(
            num_scalar_prefetch=0,
            grid=(num_tiles,),
            in_specs=[
                pl.BlockSpec((TM, N), lambda i: (i, 0)),            # x tile
                pl.BlockSpec((TM, N), lambda i: (i, 0)),            # rates tile
                pl.BlockSpec((2 * TM, TM), lambda i: (0, 0)),       # main band
                pl.BlockSpec((2 * TM, H), lambda i: (0, 0)),        # halo band
                pl.BlockSpec(memory_space=pltpu.MemorySpace.SMEM),  # bias
            ],
            out_specs=pl.BlockSpec((1, 1), lambda i: (0, 0)),
            scratch_shapes=[
                pltpu.VMEM((H, N), jnp.float32),     # carried rates halo
                pltpu.VMEM((1, 1), jnp.float32),     # scalar accumulator
            ],
        ),
        compiler_params=pltpu.CompilerParams(
            dimension_semantics=("arbitrary",)),     # sequential: halo + acc carry
    )(x2, r2, band_main, band_halo, b1)
    return out[0, 0]


class LogLikelihoodExpShotNoisePallas:
    """Functional port of the nn.Module (holds conv weight/bias as arrays)."""

    def __init__(self, kernel_size=20, *, key=None):
        if key is None:
            key = jax.random.PRNGKey(0)
        k_w, k_b = jax.random.split(key)
        # PyTorch init: weight.data.uniform_(1e-6, kernel_size**-0.5)
        self.weight = jax.random.uniform(
            k_w, (2, 1, kernel_size, 1), jnp.float32,
            minval=1e-6, maxval=kernel_size ** -0.5)
        # Conv2d default bias init: U(-1/sqrt(fan_in), 1/sqrt(fan_in)), fan_in=K
        bound = 1.0 / math.sqrt(kernel_size)
        self.bias = jax.random.uniform(
            k_b, (2,), jnp.float32, minval=-bound, maxval=bound)
        self.kernel_size = kernel_size

    def __call__(self, x, rates):
        # TODO(synk): PyTorch clamps conv weight.data in place every forward
        # (persistent parameter mutation); here the clamp is applied
        # functionally on every call instead.
        return loglikelihood_exp_shot_noise(x, rates, self.weight, self.bias)


def _reference(x, rates, weight, bias):
    """Direct float64 translation of the PyTorch forward."""
    x = np.asarray(x, np.float64)
    r = np.asarray(rates, np.float64)
    T = x.shape[0]
    w = np.maximum(np.asarray(weight, np.float64).reshape(2, -1),
                   _WEIGHT_CLAMP_MIN)
    K = w.shape[1]
    b = np.asarray(bias, np.float64).reshape(2)
    mean = np.full_like(x, b[0])
    logv = np.full_like(x, b[1])
    for k in range(K):
        shift = (K - 1) - k                 # output[t] uses rates[t - shift]
        if shift == 0:
            mean += w[0, k] * r
            logv += w[1, k] * r
        elif shift < T:
            mean[shift:] += w[0, k] * r[:T - shift]
            logv[shift:] += w[1, k] * r[:T - shift]
    term = np.log(2.0 * np.pi) + logv + (x - mean) ** 2 / np.exp(logv)
    return float(-0.5 * term.mean(axis=0).sum())


if __name__ == "__main__":
    key = jax.random.PRNGKey(0)
    k_x, k_r, k_mod = jax.random.split(key, 3)

    # (time, batch, channels): B*C = 128 lanes, T = 256 -> two 128-row time
    # tiles, exercising the halo carry and the cross-tile accumulator.
    T, B, C = 256, 2, 64
    K = 20                                  # module default kernel_size

    rates = jax.random.uniform(k_r, (T, B, C), jnp.float32,
                               minval=0.0, maxval=1.0)
    x = jax.random.normal(k_x, (T, B, C), jnp.float32)

    model = LogLikelihoodExpShotNoisePallas(kernel_size=K, key=k_mod)
    # Make a couple of weights negative so the min=1e-6 clamp is exercised.
    model.weight = model.weight.at[0, 0, 0, 0].set(-0.3)
    model.weight = model.weight.at[1, 0, 5, 0].set(-0.1)

    ll = jax.block_until_ready(model(x, rates))

    got = float(ll)
    want = _reference(x, rates, model.weight, model.bias)

    if abs(got - want) <= 2e-4 * max(1.0, abs(want)):
        print("KERNEL_OK")
    else:
        print(f"MISMATCH: got={got} want={want}")
</pallas_src>

<mosaic_0001>
module attributes {stable_mosaic.version = 11 : i64} {
  func.func @_ll_kernel(%arg0: i32, %arg1: memref<128x128xf32, #tpu.memory_space<vmem>>, %arg2: memref<128x128xf32, #tpu.memory_space<vmem>>, %arg3: memref<256x128xf32, #tpu.memory_space<vmem>>, %arg4: memref<256x24xf32, #tpu.memory_space<vmem>>, %arg5: memref<2xf32, #tpu.memory_space<smem>>, %arg6: memref<1x1xf32, #tpu.memory_space<vmem>>, %arg7: memref<24x128xf32, #tpu.memory_space<vmem>>, %arg8: memref<1x1xf32, #tpu.memory_space<vmem>>) attributes {dimension_semantics = [#tpu.dimension_semantics<arbitrary>], iteration_bounds = array<i64: 2>, scalar_prefetch = 0 : i64, scratch_operands = 2 : i64, tpu.core_type = #tpu.core_type<tc>, window_params = [{transform_indices = @transform_0, window_bounds = array<i64: 128, 128>}, {transform_indices = @transform_1, window_bounds = array<i64: 128, 128>}, {pipeline_mode = #tpu.pipeline_mode<synchronous>, transform_indices = @transform_2, window_bounds = array<i64: 256, 128>}, {pipeline_mode = #tpu.pipeline_mode<synchronous>, transform_indices = @transform_3, window_bounds = array<i64: 256, 24>}, {transform_indices = @transform_4, window_bounds = array<i64: 2>}, {pipeline_mode = #tpu.pipeline_mode<synchronous>, transform_indices = @transform_5, window_bounds = array<i64: 1, 1>}]} {
    %c0_i32 = arith.constant 0 : i32
    %0 = arith.cmpi eq, %arg0, %c0_i32 : i32
    %1 = arith.extui %0 : i1 to i32
    %c0_i32_0 = arith.constant 0 : i32
    %2 = arith.cmpi ne, %1, %c0_i32_0 : i32
    scf.if %2 {
      %cst_22 = arith.constant 0.000000e+00 : f32
      %38 = vector.broadcast %cst_22 : f32 to vector<1x1xf32>
      %c0_23 = arith.constant 0 : index
      %c0_24 = arith.constant 0 : index
      %39 = vector.load %arg8[%c0_23, %c0_24] : memref<1x1xf32, #tpu.memory_space<vmem>>, vector<1x1xf32>
      tpu.vector_store %arg8[%c0_23, %c0_24], %38 {strides = array<i32>} : memref<1x1xf32, #tpu.memory_space<vmem>>, vector<1x1xf32>,
      %cst_25 = arith.constant 0.000000e+00 : f32
      %40 = vector.broadcast %cst_25 : f32 to vector<24x128xf32>
      %c0_26 = arith.constant 0 : index
      %c0_27 = arith.constant 0 : index
      %41 = vector.load %arg7[%c0_26, %c0_27] : memref<24x128xf32, #tpu.memory_space<vmem>>, vector<24x128xf32>
      tpu.vector_store %arg7[%c0_26, %c0_27], %40 {strides = array<i32>} : memref<24x128xf32, #tpu.memory_space<vmem>>, vector<24x128xf32>,
    } else {
    }
    %c0 = arith.constant 0 : index
    %c0_1 = arith.constant 0 : index
    %3 = vector.load %arg2[%c0, %c0_1] : memref<128x128xf32, #tpu.memory_space<vmem>>, vector<128x128xf32>
    %c0_2 = arith.constant 0 : index
    %c0_3 = arith.constant 0 : index
    %4 = vector.load %arg3[%c0_2, %c0_3] : memref<256x128xf32, #tpu.memory_space<vmem>>, vector<256x128xf32>
    %cst = arith.constant dense<0.000000e+00> : vector<256x128xf32>
    %5 = tpu.matmul %4, %3, %cst {dimension_numbers = #tpu.dot_dimension_numbers<[1], [0], [0], [1], [0, 0, 1, 1], [], []>, precision = #tpu.contract_precision<fp32>} : vector<256x128xf32>, vector<128x128xf32>, vector<256x128xf32> -> vector<256x128xf32>
    %c0_4 = arith.constant 0 : index
    %c0_5 = arith.constant 0 : index
    %6 = vector.load %arg4[%c0_4, %c0_5] : memref<256x24xf32, #tpu.memory_space<vmem>>, vector<256x24xf32>
    %c0_6 = arith.constant 0 : index
    %c0_7 = arith.constant 0 : index
    %7 = vector.load %arg7[%c0_6, %c0_7] : memref<24x128xf32, #tpu.memory_space<vmem>>, vector<24x128xf32>
    %cst_8 = arith.constant dense<0.000000e+00> : vector<256x128xf32>
    %8 = tpu.matmul %6, %7, %cst_8 {dimension_numbers = #tpu.dot_dimension_numbers<[1], [0], [0], [1], [0, 0, 1, 1], [], []>, precision = #tpu.contract_precision<fp32>} : vector<256x24xf32>, vector<24x128xf32>, vector<256x128xf32> -> vector<256x128xf32>
    %9 = arith.addf %5, %8 : vector<256x128xf32>
    %c0_9 = arith.constant 0 : index
    %10 = memref.load %arg5[%c0_9] : memref<2xf32, #tpu.memory_space<smem>>
    %11 = vector.extract_strided_slice %9 {offsets = [0, 0], sizes = [128, 128], strides = [1, 1]} : vector<256x128xf32> to vector<128x128xf32>
    %12 = vector.broadcast %10 : f32 to vector<128x128xf32>
    %13 = arith.addf %12, %11 : vector<128x128xf32>
    %c1 = arith.constant 1 : index
    %14 = memref.load %arg5[%c1] : memref<2xf32, #tpu.memory_space<smem>>
    %15 = vector.extract_strided_slice %9 {offsets = [128, 0], sizes = [128, 128], strides = [1, 1]} : vector<256x128xf32> to vector<128x128xf32>
    %16 = vector.broadcast %14 : f32 to vector<128x128xf32>
    %17 = arith.addf %16, %15 : vector<128x128xf32>
    %c0_10 = arith.constant 0 : index
    %c0_11 = arith.constant 0 : index
    %18 = vector.load %arg1[%c0_10, %c0_11] : memref<128x128xf32, #tpu.memory_space<vmem>>, vector<128x128xf32>
    %19 = arith.subf %18, %13 : vector<128x128xf32>
    %20 = arith.mulf %19, %19 : vector<128x128xf32>
    %cst_12 = arith.constant 0.000000e+00 : f32
    %21 = vector.broadcast %cst_12 : f32 to vector<128x128xf32>
    %22 = arith.subf %21, %17 : vector<128x128xf32>
    %23 = math.exp %22 : vector<128x128xf32>
    %24 = arith.mulf %20, %23 : vector<128x128xf32>
    %25 = arith.addf %17, %24 : vector<128x128xf32>
    %c0_13 = arith.constant 0 : index
    %c0_14 = arith.constant 0 : index
    %26 = vector.load %arg8[%c0_13, %c0_14] : memref<1x1xf32, #tpu.memory_space<vmem>>, vector<1x1xf32>
    %cst_15 = arith.constant dense<0.000000e+00> : vector<128xf32>
    %27 = vector.multi_reduction <add>, %25, %cst_15 [0] : vector<128x128xf32> to vector<128xf32>
    %28 = vector.shape_cast %27 : vector<128xf32> to vector<1x128xf32>
    %cst_16 = arith.constant dense<0.000000e+00> : vector<1xf32>
    %29 = vector.multi_reduction <add>, %28, %cst_16 [1] : vector<1x128xf32> to vector<1xf32>
    %30 = vector.shape_cast %29 : vector<1xf32> to vector<1x1xf32>
    %31 = arith.addf %26, %30 : vector<1x1xf32>
    %c0_17 = arith.constant 0 : index
    %c0_18 = arith.constant 0 : index
    %32 = vector.load %arg8[%c0_17, %c0_18] : memref<1x1xf32, #tpu.memory_space<vmem>>, vector<1x1xf32>
    tpu.vector_store %arg8[%c0_17, %c0_18], %31 {strides = array<i32>} : memref<1x1xf32, #tpu.memory_space<vmem>>, vector<1x1xf32>,
    %33 = vector.extract_strided_slice %3 {offsets = [104, 0], sizes = [24, 128], strides = [1, 1]} : vector<128x128xf32> to vector<24x128xf32>
    %c0_19 = arith.constant 0 : index
    %c0_20 = arith.constant 0 : index
    %34 = vector.load %arg7[%c0_19, %c0_20] : memref<24x128xf32, #tpu.memory_space<vmem>>, vector<24x128xf32>
    tpu.vector_store %arg7[%c0_19, %c0_20], %33 {strides = array<i32>} : memref<24x128xf32, #tpu.memory_space<vmem>>, vector<24x128xf32>,
    %c1_i32 = arith.constant 1 : i32
    %35 = arith.cmpi eq, %arg0, %c1_i32 : i32
    %36 = arith.extui %35 : i1 to i32
    %c0_i32_21 = arith.constant 0 : i32
    %37 = arith.cmpi ne, %36, %c0_i32_21 : i32
    scf.if %37 {
      %c0_22 = arith.constant 0 : index
      %c0_23 = arith.constant 0 : index
      %38 = vector.load %arg8[%c0_22, %c0_23] : memref<1x1xf32, #tpu.memory_space<vmem>>, vector<1x1xf32>
      %cst_24 = arith.constant 3.906250e-03 : f32
      %39 = vector.broadcast %cst_24 : f32 to vector<1x1xf32>
      %40 = arith.mulf %38, %39 : vector<1x1xf32>
      %cst_25 = arith.constant 235.24826 : f32
      %41 = vector.broadcast %cst_25 : f32 to vector<1x1xf32>
      %42 = arith.addf %40, %41 : vector<1x1xf32>
      %cst_26 = arith.constant -5.000000e-01 : f32
      %43 = vector.broadcast %cst_26 : f32 to vector<1x1xf32>
      %44 = arith.mulf %43, %42 : vector<1x1xf32>
      %c0_27 = arith.constant 0 : index
      %c0_28 = arith.constant 0 : index
      %45 = vector.load %arg6[%c0_27, %c0_28] : memref<1x1xf32, #tpu.memory_space<vmem>>, vector<1x1xf32>
      tpu.vector_store %arg6[%c0_27, %c0_28], %44 {strides = array<i32>} : memref<1x1xf32, #tpu.memory_space<vmem>>, vector<1x1xf32>,
    } else {
    }
    return
  }
  func.func @transform_0(%arg0: i32) -> (i32, i32) {
    %c0_i32 = arith.constant 0 : i32
    %c0_i32_0 = arith.constant 0 : i32
    return %arg0, %c0_i32 : i32, i32
  }
  func.func @transform_1(%arg0: i32) -> (i32, i32) {
    %c0_i32 = arith.constant 0 : i32
    %c0_i32_0 = arith.constant 0 : i32
    return %arg0, %c0_i32 : i32, i32
  }
  func.func @transform_2(%arg0: i32) -> (i32, i32) {
    %c0_i32 = arith.constant 0 : i32
    %c0_i32_0 = arith.constant 0 : i32
    %c0_i32_1 = arith.constant 0 : i32
    return %c0_i32, %c0_i32_0 : i32, i32
  }
  func.func @transform_3(%arg0: i32) -> (i32, i32) {
    %c0_i32 = arith.constant 0 : i32
    %c0_i32_0 = arith.constant 0 : i32
    %c0_i32_1 = arith.constant 0 : i32
    return %c0_i32, %c0_i32_0 : i32, i32
  }
  func.func @transform_4(%arg0: i32) -> i32 {
    %c0_i32 = arith.constant 0 : i32
    %c0_i32_0 = arith.constant 0 : i32
    return %c0_i32 : i32
  }
  func.func @transform_5(%arg0: i32) -> (i32, i32) {
    %c0_i32 = arith.constant 0 : i32
    %c0_i32_0 = arith.constant 0 : i32
    %c0_i32_1 = arith.constant 0 : i32
    return %c0_i32, %c0_i32_0 : i32, i32
  }
}

</mosaic_0001>

<llo_original>
// kernel: loglikelihood_exp_shot_noise.1
$region0: #{loglikelihood_exp_shot_noise.1}
  #allocation0 [shape = 'u32[]', space=smem, size = 0x4, offset = 0x4, fixed_abs, tag = 'smem constant byte address 0x4 - core index']
  #allocation1 [shape = 'u32[144,128]{1,0:T(1,128)}', space=vmem, size = 0x12000, scoped, tag = 'internal scratch']
  #allocation2 [shape = 'f32[24,128]{1,0:T(8,128)}', space=vmem, size = 0x3000, scoped, tag = 'scratch operand']
  #allocation3 [shape = 'f32[1,1]{1,0:T(1,128)}', space=vmem, size = 0x200, scoped, tag = 'scratch operand']
  %s0 = inlined_call_operand.vmem [shape: f32[256,128], index: 0, kind: input, shape index: {}]
  %s1 = inlined_call_operand.vmem [shape: f32[256,128], index: 1, kind: input, shape index: {}]
  %s2 = inlined_call_operand.vmem [shape: f32[256,128], index: 2, kind: input, shape index: {}]
  %s3 = inlined_call_operand.vmem [shape: f32[256,24], index: 3, kind: input, shape index: {}]
  %s4 = inlined_call_operand.vmem [shape: f32[2], index: 4, kind: input, shape index: {}]
  %s5 = inlined_call_operand.hbm [shape: f32[1,1], index: 5, kind: output, shape index: {}]
  %s6 = sld [smem:[#allocation0]]
  $region65: #{loglikelihood_exp_shot_noise.1} parent=0
    _
  %s8 = ssub.s32 1, %s6
  %s9 = scalar_select 0, %s8, %s6
  $region1: #{loglikelihood_exp_shot_noise.1} parent=0
    #allocation4 [shape = 'u8[512]{0}', space=smem, size = 0x200, scoped, tag = 'input window, operand 4, single buffered']
    #allocation5 [shape = 's32[2]{0}', space=sflag, size = 0x8, scoped, tag = 'scoped memory for loglikelihood_exp_shot_noise.1']
    #allocation6 [shape = 's32[2]{0}', space=sflag, size = 0x8, scoped, tag = 'scoped memory for loglikelihood_exp_shot_noise.1']
    #allocation7 [shape = 'u8[512]{0}', space=vmem, size = 0x400, scoped, tag = 'output window, operand 0, single buffered']
    %10 = vsyncpa [#allocation6], 0
    %11 = vsyncpa [#allocation5], 0
    loop: start=0, step=1, limit=4
    $region2: #{loglikelihood_exp_shot_noise.1} parent=1 // loop_pre_header
      _
    $region3: #{loglikelihood_exp_shot_noise.1} parent=1 // loop_header
      %s13 = sphi 0, %s17
      %p14 = scmp.ge.s32.totalorder %s13, 4
      %s23 = sphi 0, %s25
      %s26 = sphi 0, %s23
      %s27 = sphi 0, %s26
      %s43 = sphi 0, %s27
      %s49 = sphi 0, %s51
      %s52 = sphi 0, %s49
      %s53 = sphi 0, %s52
      %s69 = sphi 0, %s53
      %s73 = sphi 0, %s73
      %s75 = sphi 0, %s73
      %s76 = sphi 0, %s75
      %s90 = sphi 0, %s76
      %s94 = sphi 0, %s94
      %s96 = sphi 0, %s94
      %s97 = sphi 0, %s96
      %s111 = sphi 0, %s97
      %s115 = sphi 0, %s115
      %s117 = sphi 0, %s115
      %s118 = sphi 0, %s117
      %s132 = sphi 0, %s118
      %s136 = sphi 0, %s136
      %s138 = sphi 0, %s136
      %s139 = sphi 0, %s138
      %s153 = sphi 0, %s139
    $region4: #{loglikelihood_exp_shot_noise.1} parent=1 // loop_header_branch
      %16 = sbr.rel (%p14) target = $region8
    $region5: #{loglikelihood_exp_shot_noise.1} parent=1 // loop_body
      %s18 = ssub.s32 %s13, 1
      %s19 = ssub.s32 %s13, 2
      %s20 = sadd.s32 %s13, 1
      %s21 = ssub.s32 %s13, %s20
      %p22 = scmp.eq.s32.totalorder %s21, 0
      %s24 = sadd.s32 %s23, 1
      %s25 = scalar_select %p22, %s23, %s24
      %p28 = pneg %p22
      %p29 = scmp.eq.s32.totalorder %s13, 1
      %p30 = por %p28, %p29
      %p31 = scmp.ne.s32.totalorder %s23, %s26
      %p32 = scmp.eq.s32.totalorder %s13, 0
      %p33 = por %p31, %p32
      %p34 = scmp.ne.s32.totalorder %s23, %s26
      %p35 = scmp.eq.s32.totalorder %s18, 1
      %p36 = por %p34, %p35
      %p37 = scmp.ne.s32.totalorder %s26, %s27
      %p38 = scmp.eq.s32.totalorder %s18, 0
      %p39 = por %p37, %p38
      %p40 = scmp.ne.s32.totalorder %s26, %s27
      %p41 = scmp.eq.s32.totalorder %s19, 1
      %p42 = por %p40, %p41
      %p44 = scmp.ne.s32.totalorder %s27, %s43
      %p45 = scmp.eq.s32.totalorder %s19, 0
      %p46 = por %p44, %p45
      %s47 = ssub.s32 %s13, %s20
      %p48 = scmp.eq.s32.totalorder %s47, 0
      %s50 = sadd.s32 %s49, 1
      %s51 = scalar_select %p48, %s49, %s50
      %p54 = pneg %p48
      %p55 = scmp.eq.s32.totalorder %s13, 1
      %p56 = por %p54, %p55
      %p57 = scmp.ne.s32.totalorder %s49, %s52
      %p58 = scmp.eq.s32.totalorder %s13, 0
      %p59 = por %p57, %p58
      %p60 = scmp.ne.s32.totalorder %s49, %s52
      %p61 = scmp.eq.s32.totalorder %s18, 1
      %p62 = por %p60, %p61
      %p63 = scmp.ne.s32.totalorder %s52, %s53
      %p64 = scmp.eq.s32.totalorder %s18, 0
      %p65 = por %p63, %p64
      %p66 = scmp.ne.s32.totalorder %s52, %s53
      %p67 = scmp.eq.s32.totalorder %s19, 1
      %p68 = por %p66, %p67
      %p70 = scmp.ne.s32.totalorder %s53, %s69
      %p71 = scmp.eq.s32.totalorder %s19, 0
      %p72 = por %p70, %p71
      %s74 = sadd.s32 %s73, 1
      %p77 = scmp.eq.s32.totalorder %s13, 1
      %p78 = scmp.ne.s32.totalorder %s73, %s75
      %p79 = scmp.eq.s32.totalorder %s13, 0
      %p80 = por %p78, %p79
      %p81 = scmp.ne.s32.totalorder %s73, %s75
      %p82 = scmp.eq.s32.totalorder %s18, 1
      %p83 = por %p81, %p82
      %p84 = scmp.ne.s32.totalorder %s75, %s76
      %p85 = scmp.eq.s32.totalorder %s18, 0
      %p86 = por %p84, %p85
      %p87 = scmp.ne.s32.totalorder %s75, %s76
      %p88 = scmp.eq.s32.totalorder %s19, 1
      %p89 = por %p87, %p88
      %p91 = scmp.ne.s32.totalorder %s76, %s90
      %p92 = scmp.eq.s32.totalorder %s19, 0
      %p93 = por %p91, %p92
      %s95 = sadd.s32 %s94, 1
      %p98 = scmp.eq.s32.totalorder %s13, 1
      %p99 = scmp.ne.s32.totalorder %s94, %s96
      %p100 = scmp.eq.s32.totalorder %s13, 0
      %p101 = por %p99, %p100
      %p102 = scmp.ne.s32.totalorder %s94, %s96
      %p103 = scmp.eq.s32.totalorder %s18, 1
      %p104 = por %p102, %p103
      %p105 = scmp.ne.s32.totalorder %s96, %s97
      %p106 = scmp.eq.s32.totalorder %s18, 0
      %p107 = por %p105, %p106
      %p108 = scmp.ne.s32.totalorder %s96, %s97
      %p109 = scmp.eq.s32.totalorder %s19, 1
      %p110 = por %p108, %p109
      %p112 = scmp.ne.s32.totalorder %s97, %s111
      %p113 = scmp.eq.s32.totalorder %s19, 0
      %p114 = por %p112, %p113
      %s116 = sadd.s32 %s115, 1
      %p119 = scmp.eq.s32.totalorder %s13, 1
      %p120 = scmp.ne.s32.totalorder %s115, %s117
      %p121 = scmp.eq.s32.totalorder %s13, 0
      %p122 = por %p120, %p121
      %p123 = scmp.ne.s32.totalorder %s115, %s117
      %p124 = scmp.eq.s32.totalorder %s18, 1
      %p125 = por %p123, %p124
      %p126 = scmp.ne.s32.totalorder %s117, %s118
      %p127 = scmp.eq.s32.totalorder %s18, 0
      %p128 = por %p126, %p127
      %p129 = scmp.ne.s32.totalorder %s117, %s118
      %p130 = scmp.eq.s32.totalorder %s19, 1
      %p131 = por %p129, %p130
      %p133 = scmp.ne.s32.totalorder %s118, %s132
      %p134 = scmp.eq.s32.totalorder %s19, 0
      %p135 = por %p133, %p134
      %s137 = sadd.s32 %s136, 1
      %p140 = scmp.eq.s32.totalorder %s13, 1
      %p141 = scmp.ne.s32.totalorder %s136, %s138
      %p142 = scmp.eq.s32.totalorder %s13, 0
      %p143 = por %p141, %p142
      %p144 = scmp.ne.s32.totalorder %s136, %s138
      %p145 = scmp.eq.s32.totalorder %s18, 1
      %p146 = por %p144, %p145
      %p147 = scmp.ne.s32.totalorder %s138, %s139
      %p148 = scmp.eq.s32.totalorder %s18, 0
      %p149 = por %p147, %p148
      %p150 = scmp.ne.s32.totalorder %s138, %s139
      %p151 = scmp.eq.s32.totalorder %s19, 1
      %p152 = por %p150, %p151
      %p154 = scmp.ne.s32.totalorder %s139, %s153
      %p155 = scmp.eq.s32.totalorder %s19, 0
      %p156 = por %p154, %p155
      %p157 = scmp.le.s32.totalorder 1, %s13
      %p158 = scmp.lt.s32.totalorder %s13, 3
      %p159 = pnand %p157, %p158
      %p160 = pneg %p159
      // Predicated region
      $region9: #{loglikelihood_exp_shot_noise.1} parent=5 // pred_check
        _
      $region10: #{loglikelihood_exp_shot_noise.1} parent=5 // pred_check_branch
        %162 = sbr.rel (%p159) target = $region12
      $region11: #{loglikelihood_exp_shot_noise.1} parent=5 // pred_region
        %s163 = ssub.s32 %s13, 1
        // Predicated region
        $region13: #{loglikelihood_exp_shot_noise.1} parent=11 // pred_check
          %p164 = pneg %p86
        $region14: #{loglikelihood_exp_shot_noise.1} parent=11 // pred_check_branch
          %166 = sbr.rel (%p164) target = $region16
        $region15: #{loglikelihood_exp_shot_noise.1} parent=11 // pred_region
          _
        $region16: #{loglikelihood_exp_shot_noise.1} parent=11 // pred_fallthru
          _
        // Predicated region
        $region17: #{loglikelihood_exp_shot_noise.1} parent=11 // pred_check
          %p167 = pneg %p107
        $region18: #{loglikelihood_exp_shot_noise.1} parent=11 // pred_check_branch
          %169 = sbr.rel (%p167) target = $region20
        $region19: #{loglikelihood_exp_shot_noise.1} parent=11 // pred_region
          _
        $region20: #{loglikelihood_exp_shot_noise.1} parent=11 // pred_fallthru
          _
        // Predicated region
        $region21: #{loglikelihood_exp_shot_noise.1} parent=11 // pred_check
          %p170 = pneg %p128
        $region22: #{loglikelihood_exp_shot_noise.1} parent=11 // pred_check_branch
          %172 = sbr.rel (%p170) target = $region24
        $region23: #{loglikelihood_exp_shot_noise.1} parent=11 // pred_region
          %s174 = ssub.s32 16, 16
          %175 = vsyncadd [#allocation6], %s174
          %s177 = sshll.u32 %s4, 4
          %s178 = int_to_ptr.vmem [resolvable:$true] %s177
          %180 = dma.vmem_to_smem %s178, 16, [#allocation4], [#allocation6]
        $region24: #{loglikelihood_exp_shot_noise.1} parent=11 // pred_fallthru
          _
      $region12: #{loglikelihood_exp_shot_noise.1} parent=5 // pred_fallthru
        _
      %p181 = scmp.lt.s32.totalorder %s13, 2
      // Predicated region
      $region25: #{loglikelihood_exp_shot_noise.1} parent=5 // pred_check
        %p182 = pneg %p181
      $region26: #{loglikelihood_exp_shot_noise.1} parent=5 // pred_check_branch
        %184 = sbr.rel (%p182) target = $region28
      $region27: #{loglikelihood_exp_shot_noise.1} parent=5 // pred_region
        // Predicated region
        $region29: #{loglikelihood_exp_shot_noise.1} parent=27 // pred_check
          %p185 = pneg %p33
        $region30: #{loglikelihood_exp_shot_noise.1} parent=27 // pred_check_branch
          %187 = sbr.rel (%p185) target = $region32
        $region31: #{loglikelihood_exp_shot_noise.1} parent=27 // pred_region
          %s188 = smul.u32 16, %s13
          %p189 = scmp.lt.s32.totalorder %s188, 31
          %s190 = scalar_select %p189, %s188, 31
          %s191 = smul.addr %s190, 8
          %s192 = scalar_lea.vmem %s0, %s191
          %s193 = smul.u32 16, %s13
        $region32: #{loglikelihood_exp_shot_noise.1} parent=27 // pred_fallthru
          _
        // Predicated region
        $region33: #{loglikelihood_exp_shot_noise.1} parent=27 // pred_check
          %p194 = pneg %p59
        $region34: #{loglikelihood_exp_shot_noise.1} parent=27 // pred_check_branch
          %196 = sbr.rel (%p194) target = $region36
        $region35: #{loglikelihood_exp_shot_noise.1} parent=27 // pred_region
          %s197 = smul.u32 16, %s13
          %p198 = scmp.lt.s32.totalorder %s197, 31
          %s199 = scalar_select %p198, %s197, 31
          %s200 = smul.addr %s199, 8
          %s201 = scalar_lea.vmem %s1, %s200
          %s202 = smul.u32 16, %s13
        $region36: #{loglikelihood_exp_shot_noise.1} parent=27 // pred_fallthru
          _
      $region28: #{loglikelihood_exp_shot_noise.1} parent=5 // pred_fallthru
        _
      %p203 = scmp.le.s32.totalorder 1, %s13
      %p204 = scmp.lt.s32.totalorder %s13, 3
      %p205 = pnand %p203, %p204
      %p206 = pneg %p205
      // Predicated region
      $region37: #{loglikelihood_exp_shot_noise.1} parent=5 // pred_check
        _
      $region38: #{loglikelihood_exp_shot_noise.1} parent=5 // pred_check_branch
        %208 = sbr.rel (%p205) target = $region40
      $region39: #{loglikelihood_exp_shot_noise.1} parent=5 // pred_region
        %s209 = ssub.s32 %s13, 1
        // Predicated region
        $region41: #{loglikelihood_exp_shot_noise.1} parent=39 // pred_check
          %p210 = pneg %p128
        $region42: #{loglikelihood_exp_shot_noise.1} parent=39 // pred_check_branch
          %212 = sbr.rel (%p210) target = $region44
        $region43: #{loglikelihood_exp_shot_noise.1} parent=39 // pred_region
          %213 = dma.done [#allocation6], 16
        $region44: #{loglikelihood_exp_shot_noise.1} parent=39 // pred_fallthru
          _
        %214 = sfence
        %s215 = smul.u32 16, %s18
        %p216 = scmp.lt.s32.totalorder %s215, 31
        %s217 = scalar_select %p216, %s215, 31
        %s218 = smul.addr %s217, 8
        %s219 = scalar_lea.vmem %s0, %s218
        %p220 = pneg %p39
        %p221 = pneg %p36
        %s222 = smul.u32 16, %s18
        %p223 = scmp.lt.s32.totalorder %s222, 31
        %s224 = scalar_select %p223, %s222, 31
        %s225 = smul.addr %s224, 8
        %s226 = scalar_lea.vmem %s1, %s225
        %p227 = pneg %p65
        %p228 = pneg %p62
        %p229 = pneg %p86
        %p230 = pneg %p83
        %p231 = pneg %p107
        %p232 = pneg %p104
        %p233 = pneg %p128
        %p234 = pneg %p125
        %p235 = pneg %p149
        %p236 = pneg %p146
        %s237 = smul.u32 16, %s18
        %p238 = scmp.lt.s32.totalorder %s237, 31
        %s239 = scalar_select %p238, %s237, 31
        %s240 = smul.addr %s239, 8
        %s241 = scalar_lea.vmem %s0, %s240
        %s242 = smul.u32 16, %s18
        %s243 = smul.u32 16, %s18
        %p244 = scmp.lt.s32.totalorder %s243, 31
        %s245 = scalar_select %p244, %s243, 31
        %s246 = smul.addr %s245, 8
        %s247 = scalar_lea.vmem %s1, %s246
        %s248 = smul.u32 16, %s18
        %p249 = scmp.eq.s32.totalorder %s18, 0
        // Predicated region
        $region45: #{loglikelihood_exp_shot_noise.1} parent=39 // pred_check
          %p250 = pneg %p249
        $region46: #{loglikelihood_exp_shot_noise.1} parent=39 // pred_check_branch
          %252 = sbr.rel (%p250) target = $region48
        $region47: #{loglikelihood_exp_shot_noise.1} parent=39 // pred_region
          %vm253 = vcmask 0
          %254 = vst.msk [vmem:[#allocation3] sm:$0x1] %vm253, 0.0
          %255 = vst [vmem:[#allocation2] sm:$0xff] 0.0
          %256 = vst [vmem:[#allocation2 + $0x8] sm:$0xff] 0.0
          %257 = vst [vmem:[#allocation2 + $0x10] sm:$0xff] 0.0
        $region48: #{loglikelihood_exp_shot_noise.1} parent=39 // pred_fallthru
          _
        %v258 = vld [vmem:[%s247] sm:$0xff]
        %v259 = vld [vmem:[%s247 + $0x8] sm:$0xff]
        %v260 = vld [vmem:[%s247 + $0x10] sm:$0xff]
        %v261 = vld [vmem:[%s247 + $0x18] sm:$0xff]
        %v262 = vld [vmem:[%s247 + $0x20] sm:$0xff]
        %v263 = vld [vmem:[%s247 + $0x28] sm:$0xff]
        %v264 = vld [vmem:[%s247 + $0x30] sm:$0xff]
        %v265 = vld [vmem:[%s247 + $0x38] sm:$0xff]
        %v266 = vld [vmem:[%s247 + $0x40] sm:$0xff]
        %v267 = vld [vmem:[%s247 + $0x48] sm:$0xff]
        %v268 = vld [vmem:[%s247 + $0x50] sm:$0xff]
        %v269 = vld [vmem:[%s247 + $0x58] sm:$0xff]
        %v270 = vld [vmem:[%s247 + $0x60] sm:$0xff]
        %v271 = vld [vmem:[%s247 + $0x68] sm:$0xff]
        %v272 = vld [vmem:[%s247 + $0x70] sm:$0xff]
        %v273 = vld [vmem:[%s247 + $0x78] sm:$0xff]
        %v274 = vld [vmem:[%s2] sm:$0xff]
        %v275 = vld [vmem:[%s2 + $0x8] sm:$0xff]
        %v276 = vld [vmem:[%s2 + $0x10] sm:$0xff]
        %v277 = vld [vmem:[%s2 + $0x18] sm:$0xff]
        %v278 = vld [vmem:[%s2 + $0x20] sm:$0xff]
        %v279 = vld [vmem:[%s2 + $0x28] sm:$0xff]
        %v280 = vld [vmem:[%s2 + $0x30] sm:$0xff]
        %v281 = vld [vmem:[%s2 + $0x38] sm:$0xff]
        %v282 = vld [vmem:[%s2 + $0x40] sm:$0xff]
        %v283 = vld [vmem:[%s2 + $0x48] sm:$0xff]
        %v284 = vld [vmem:[%s2 + $0x50] sm:$0xff]
        %v285 = vld [vmem:[%s2 + $0x58] sm:$0xff]
        %v286 = vld [vmem:[%s2 + $0x60] sm:$0xff]
        %v287 = vld [vmem:[%s2 + $0x68] sm:$0xff]
        %v288 = vld [vmem:[%s2 + $0x70] sm:$0xff]
        %v289 = vld [vmem:[%s2 + $0x78] sm:$0xff]
        %v290 = vld [vmem:[%s2 + $0x80] sm:$0xff]
        %v291 = vld [vmem:[%s2 + $0x88] sm:$0xff]
        %v292 = vld [vmem:[%s2 + $0x90] sm:$0xff]
        %v293 = vld [vmem:[%s2 + $0x98] sm:$0xff]
        %v294 = vld [vmem:[%s2 + $0xa0] sm:$0xff]
        %v295 = vld [vmem:[%s2 + $0xa8] sm:$0xff]
        %v296 = vld [vmem:[%s2 + $0xb0] sm:$0xff]
        %v297 = vld [vmem:[%s2 + $0xb8] sm:$0xff]
        %v298 = vld [vmem:[%s2 + $0xc0] sm:$0xff]
        %v299 = vld [vmem:[%s2 + $0xc8] sm:$0xff]
        %v300 = vld [vmem:[%s2 + $0xd0] sm:$0xff]
        %v301 = vld [vmem:[%s2 + $0xd8] sm:$0xff]
        %v302 = vld [vmem:[%s2 + $0xe0] sm:$0xff]
        %v303 = vld [vmem:[%s2 + $0xe8] sm:$0xff]
        %v304 = vld [vmem:[%s2 + $0xf0] sm:$0xff]
        %v305 = vld [vmem:[%s2 + $0xf8] sm:$0xff]
        %v306 = vld [vmem:[%s3] sm:$0xff]
        %v307 = vld [vmem:[%s3 + $0x8] sm:$0xff]
        %v308 = vld [vmem:[%s3 + $0x10] sm:$0xff]
        %v309 = vld [vmem:[%s3 + $0x18] sm:$0xff]
        %v310 = vld [vmem:[%s3 + $0x20] sm:$0xff]
        %v311 = vld [vmem:[%s3 + $0x28] sm:$0xff]
        %v312 = vld [vmem:[%s3 + $0x30] sm:$0xff]
        %v313 = vld [vmem:[%s3 + $0x38] sm:$0xff]
        %v314 = vld [vmem:[%s3 + $0x40] sm:$0xff]
        %v315 = vld [vmem:[%s3 + $0x48] sm:$0xff]
        %v316 = vld [vmem:[%s3 + $0x50] sm:$0xff]
        %v317 = vld [vmem:[%s3 + $0x58] sm:$0xff]
        %v318 = vld [vmem:[%s3 + $0x60] sm:$0xff]
        %v319 = vld [vmem:[%s3 + $0x68] sm:$0xff]
        %v320 = vld [vmem:[%s3 + $0x70] sm:$0xff]
        %v321 = vld [vmem:[%s3 + $0x78] sm:$0xff]
        %v322 = vld [vmem:[%s3 + $0x80] sm:$0xff]
        %v323 = vld [vmem:[%s3 + $0x88] sm:$0xff]
        %v324 = vld [vmem:[%s3 + $0x90] sm:$0xff]
        %v325 = vld [vmem:[%s3 + $0x98] sm:$0xff]
        %v326 = vld [vmem:[%s3 + $0xa0] sm:$0xff]
        %v327 = vld [vmem:[%s3 + $0xa8] sm:$0xff]
        %v328 = vld [vmem:[%s3 + $0xb0] sm:$0xff]
        %v329 = vld [vmem:[%s3 + $0xb8] sm:$0xff]
        %v330 = vld [vmem:[%s3 + $0xc0] sm:$0xff]
        %v331 = vld [vmem:[%s3 + $0xc8] sm:$0xff]
        %v332 = vld [vmem:[%s3 + $0xd0] sm:$0xff]
        %v333 = vld [vmem:[%s3 + $0xd8] sm:$0xff]
        %v334 = vld [vmem:[%s3 + $0xe0] sm:$0xff]
        %v335 = vld [vmem:[%s3 + $0xe8] sm:$0xff]
        %v336 = vld [vmem:[%s3 + $0xf0] sm:$0xff]
        %v337 = vld [vmem:[%s3 + $0xf8] sm:$0xff]
        %v338 = vld [vmem:[#allocation2] sm:$0xff]
        %v339 = vld [vmem:[#allocation2 + $0x8] sm:$0xff]
        %v340 = vld [vmem:[#allocation2 + $0x10] sm:$0xff]
        %vm341 = vcmask 195584
        %v343 = vsel %vm341, %v306, 0
        %v346 = vsel %vm341, %v307, 0
        %v349 = vsel %vm341, %v308, 0
        %v352 = vsel %vm341, %v309, 0
        %v355 = vsel %vm341, %v310, 0
        %v358 = vsel %vm341, %v311, 0
        %v361 = vsel %vm341, %v312, 0
        %v364 = vsel %vm341, %v313, 0
        %v367 = vsel %vm341, %v314, 0
        %v370 = vsel %vm341, %v315, 0
        %v373 = vsel %vm341, %v316, 0
        %v376 = vsel %vm341, %v317, 0
        %v379 = vsel %vm341, %v318, 0
        %v382 = vsel %vm341, %v319, 0
        %v385 = vsel %vm341, %v320, 0
        %v388 = vsel %vm341, %v321, 0
        %v391 = vsel %vm341, %v322, 0
        %v394 = vsel %vm341, %v323, 0
        %v397 = vsel %vm341, %v324, 0
        %v400 = vsel %vm341, %v325, 0
        %v403 = vsel %vm341, %v326, 0
        %v406 = vsel %vm341, %v327, 0
        %v409 = vsel %vm341, %v328, 0
        %v412 = vsel %vm341, %v329, 0
        %v415 = vsel %vm341, %v330, 0
        %v418 = vsel %vm341, %v331, 0
        %v421 = vsel %vm341, %v332, 0
        %v424 = vsel %vm341, %v333, 0
        %v427 = vsel %vm341, %v334, 0
        %v430 = vsel %vm341, %v335, 0
        %v433 = vsel %vm341, %v336, 0
        %v436 = vsel %vm341, %v337, 0
        %438 = vmatprep.subr.mxu0 0.0
        %439 = vmatpush1.msra.mxu0 0.0
        %440 = vmatprep.subr.mxu0 0.0
        %441 = vmatpush1.msra.mxu0 0.0
        %442 = vmatprep.subr.mxu0 0.0
        %443 = vmatpush1.msra.mxu0 0.0
        %444 = vmatprep.subr.mxu0 0.0
        %445 = vmatpush1.msra.mxu0 0.0
        %446 = vmatprep.subr.mxu0 0.0
        %447 = vmatpush1.msra.mxu0 0.0
        %448 = vmatprep.subr.mxu0 0.0
        %449 = vmatpush1.msra.mxu0 0.0
        %450 = vmatprep.subr.mxu0 0.0
        %451 = vmatpush1.msra.mxu0 0.0
        %452 = vmatprep.subr.mxu0 0.0
        %453 = vmatpush1.msra.mxu0 0.0
        %454 = vmatprep.subr.mxu0 0.0
        %455 = vmatpush1.msra.mxu0 0.0
        %456 = vmatprep.subr.mxu0 0.0
        %457 = vmatpush1.msra.mxu0 0.0
        %458 = vmatprep.subr.mxu0 0.0
        %459 = vmatpush1.msra.mxu0 0.0
        %460 = vmatprep.subr.mxu0 0.0
        %461 = vmatpush1.msra.mxu0 0.0
        %462 = vmatprep.subr.mxu0 0.0
        %463 = vmatpush1.msra.mxu0 0.0
        %464 = vmatprep.subr.mxu0 0.0
        %v465 = vand.u32 %v340, 4294901760
        %466 = vmatpush1.msra.mxu0 %v465
        %467 = vmatprep.subr.mxu0 0.0
        %v468 = vand.u32 %v339, 4294901760
        %469 = vmatpush1.msra.mxu0 %v468
        %470 = vmatprep.subr.mxu0 0.0
        %v471 = vand.u32 %v338, 4294901760
        %472 = vmatpush1.msra.mxu0 %v471
        %473 = vmatprep.subr.mxu0 0.0
        %474 = vmatpush2.msra.mxu0 0.0
        %475 = vmatprep.subr.mxu0 0.0
        %476 = vmatpush2.msra.mxu0 0.0
        %477 = vmatprep.subr.mxu0 0.0
        %478 = vmatpush2.msra.mxu0 0.0
        %479 = vmatprep.subr.mxu0 0.0
        %480 = vmatpush2.msra.mxu0 0.0
        %481 = vmatprep.subr.mxu0 0.0
        %482 = vmatpush2.msra.mxu0 0.0
        %483 = vmatprep.subr.mxu0 0.0
        %484 = vmatpush2.msra.mxu0 0.0
        %485 = vmatprep.subr.mxu0 0.0
        %486 = vmatpush2.msra.mxu0 0.0
        %487 = vmatprep.subr.mxu0 0.0
        %488 = vmatpush2.msra.mxu0 0.0
        %489 = vmatprep.subr.mxu0 0.0
        %490 = vmatpush2.msra.mxu0 0.0
        %491 = vmatprep.subr.mxu0 0.0
        %492 = vmatpush2.msra.mxu0 0.0
        %493 = vmatprep.subr.mxu0 0.0
        %494 = vmatpush2.msra.mxu0 0.0
        %495 = vmatprep.subr.mxu0 0.0
        %496 = vmatpush2.msra.mxu0 0.0
        %497 = vmatprep.subr.mxu0 0.0
        %498 = vmatpush2.msra.mxu0 0.0
        %499 = vmatprep.subr.mxu0 0.0
        %500 = vmatpush2.msra.mxu0 0.0
        %501 = vmatprep.subr.mxu0 0.0
        %502 = vmatpush2.msra.mxu0 0.0
        %503 = vmatprep.subr.mxu0 0.0
        %504 = vmatpush2.msra.mxu0 0.0
        %505 = vmatprep.mubr.f32.mxu0 0.0
        %v506 = vand.u32 %v343, 4294901760
        %v507 = vsub.f32 %v343, %v506
        %v508 = vand.u32 %v507, 4294901760
        %v509 = vsub.f32 %v507, %v508
        %v510 = vand.u32 %v509, 4294901760
        %511 = vmatmul.mubr.f32.gmra.mxu0 %v510
        %v512 = vpop.f32.mrf.mxu0
        %v513 = vadd.f32 0.0, %v512
        %v514 = vpop.f32.mrf.mxu0
        %515 = vmatprep.mubr.f32.mxu0 0.0
        %v516 = vand.u32 %v346, 4294901760
        %v517 = vsub.f32 %v346, %v516
        %v518 = vand.u32 %v517, 4294901760
        %v519 = vsub.f32 %v517, %v518
        %v520 = vand.u32 %v519, 4294901760
        %521 = vmatmul.mubr.f32.gmra.mxu0 %v520
        %v522 = vpop.f32.mrf.mxu0
        %v523 = vadd.f32 0.0, %v522
        %v524 = vpop.f32.mrf.mxu0
        %525 = vmatprep.mubr.f32.mxu0 0.0
        %v526 = vand.u32 %v349, 4294901760
        %v527 = vsub.f32 %v349, %v526
        %v528 = vand.u32 %v527, 4294901760
        %v529 = vsub.f32 %v527, %v528
        %v530 = vand.u32 %v529, 4294901760
        %531 = vmatmul.mubr.f32.gmra.mxu0 %v530
        %v532 = vpop.f32.mrf.mxu0
        %v533 = vadd.f32 0.0, %v532
        %v534 = vpop.f32.mrf.mxu0
        %535 = vmatprep.mubr.f32.mxu0 0.0
        %v536 = vand.u32 %v352, 4294901760
        %v537 = vsub.f32 %v352, %v536
        %v538 = vand.u32 %v537, 4294901760
        %v539 = vsub.f32 %v537, %v538
        %v540 = vand.u32 %v539, 4294901760
        %541 = vmatmul.mubr.f32.gmra.mxu0 %v540
        %v542 = vpop.f32.mrf.mxu0
        %v543 = vadd.f32 0.0, %v542
        %v544 = vpop.f32.mrf.mxu0
        %545 = vmatprep.mubr.f32.mxu0 0.0
        %v546 = vand.u32 %v355, 4294901760
        %v547 = vsub.f32 %v355, %v546
        %v548 = vand.u32 %v547, 4294901760
        %v549 = vsub.f32 %v547, %v548
        %v550 = vand.u32 %v549, 4294901760
        %551 = vmatmul.mubr.f32.gmra.mxu0 %v550
        %v552 = vpop.f32.mrf.mxu0
        %v553 = vadd.f32 0.0, %v552
        %v554 = vpop.f32.mrf.mxu0
        %555 = vmatprep.mubr.f32.mxu0 0.0
        %v556 = vand.u32 %v358, 4294901760
        %v557 = vsub.f32 %v358, %v556
        %v558 = vand.u32 %v557, 4294901760
        %v559 = vsub.f32 %v557, %v558
        %v560 = vand.u32 %v559, 4294901760
        %561 = vmatmul.mubr.f32.gmra.mxu0 %v560
        %v562 = vpop.f32.mrf.mxu0
        %v563 = vadd.f32 0.0, %v562
        %v564 = vpop.f32.mrf.mxu0
        %565 = vmatprep.mubr.f32.mxu0 0.0
        %v566 = vand.u32 %v361, 4294901760
        %v567 = vsub.f32 %v361, %v566
        %v568 = vand.u32 %v567, 4294901760
        %v569 = vsub.f32 %v567, %v568
        %v570 = vand.u32 %v569, 4294901760
        %571 = vmatmul.mubr.f32.gmra.mxu0 %v570
        %v572 = vpop.f32.mrf.mxu0
        %v573 = vadd.f32 0.0, %v572
        %v574 = vpop.f32.mrf.mxu0
        %575 = vmatprep.mubr.f32.mxu0 0.0
        %v576 = vand.u32 %v364, 4294901760
        %v577 = vsub.f32 %v364, %v576
        %v578 = vand.u32 %v577, 4294901760
        %v579 = vsub.f32 %v577, %v578
        %v580 = vand.u32 %v579, 4294901760
        %581 = vmatmul.mubr.f32.gmra.mxu0 %v580
        %v582 = vpop.f32.mrf.mxu0
        %v583 = vadd.f32 0.0, %v582
        %v584 = vpop.f32.mrf.mxu0
        %585 = vmatprep.mubr.f32.mxu0 0.0
        %v586 = vand.u32 %v367, 4294901760
        %v587 = vsub.f32 %v367, %v586
        %v588 = vand.u32 %v587, 4294901760
        %v589 = vsub.f32 %v587, %v588
        %v590 = vand.u32 %v589, 4294901760
        %591 = vmatmul.mubr.f32.gmra.mxu0 %v590
        %v592 = vpop.f32.mrf.mxu0
        %v593 = vadd.f32 0.0, %v592
        %v594 = vpop.f32.mrf.mxu0
        %595 = vmatprep.mubr.f32.mxu0 0.0
        %v596 = vand.u32 %v370, 4294901760
        %v597 = vsub.f32 %v370, %v596
        %v598 = vand.u32 %v597, 4294901760
        %v599 = vsub.f32 %v597, %v598
        %v600 = vand.u32 %v599, 4294901760
        %601 = vmatmul.mubr.f32.gmra.mxu0 %v600
        %v602 = vpop.f32.mrf.mxu0
        %v603 = vadd.f32 0.0, %v602
        %v604 = vpop.f32.mrf.mxu0
        %605 = vmatprep.mubr.f32.mxu0 0.0
        %v606 = vand.u32 %v373, 4294901760
        %v607 = vsub.f32 %v373, %v606
        %v608 = vand.u32 %v607, 4294901760
        %v609 = vsub.f32 %v607, %v608
        %v610 = vand.u32 %v609, 4294901760
        %611 = vmatmul.mubr.f32.gmra.mxu0 %v610
        %v612 = vpop.f32.mrf.mxu0
        %v613 = vadd.f32 0.0, %v612
        %v614 = vpop.f32.mrf.mxu0
        %615 = vmatprep.mubr.f32.mxu0 0.0
        %v616 = vand.u32 %v376, 4294901760
        %v617 = vsub.f32 %v376, %v616
        %v618 = vand.u32 %v617, 4294901760
        %v619 = vsub.f32 %v617, %v618
        %v620 = vand.u32 %v619, 4294901760
        %621 = vmatmul.mubr.f32.gmra.mxu0 %v620
        %v622 = vpop.f32.mrf.mxu0
        %v623 = vadd.f32 0.0, %v622
        %v624 = vpop.f32.mrf.mxu0
        %625 = vmatprep.mubr.f32.mxu0 0.0
        %v626 = vand.u32 %v379, 4294901760
        %v627 = vsub.f32 %v379, %v626
        %v628 = vand.u32 %v627, 4294901760
        %v629 = vsub.f32 %v627, %v628
        %v630 = vand.u32 %v629, 4294901760
        %631 = vmatmul.mubr.f32.gmra.mxu0 %v630
        %v632 = vpop.f32.mrf.mxu0
        %v633 = vadd.f32 0.0, %v632
        %v634 = vpop.f32.mrf.mxu0
        %635 = vmatprep.mubr.f32.mxu0 0.0
        %v636 = vand.u32 %v382, 4294901760
        %v637 = vsub.f32 %v382, %v636
        %v638 = vand.u32 %v637, 4294901760
        %v639 = vsub.f32 %v637, %v638
        %v640 = vand.u32 %v639, 4294901760
        %641 = vmatmul.mubr.f32.gmra.mxu0 %v640
        %v642 = vpop.f32.mrf.mxu0
        %v643 = vadd.f32 0.0, %v642
        %v644 = vpop.f32.mrf.mxu0
        %645 = vmatprep.mubr.f32.mxu0 0.0
        %v646 = vand.u32 %v385, 4294901760
        %v647 = vsub.f32 %v385, %v646
        %v648 = vand.u32 %v647, 4294901760
        %v649 = vsub.f32 %v647, %v648
        %v650 = vand.u32 %v649, 4294901760
        %651 = vmatmul.mubr.f32.gmra.mxu0 %v650
        %v652 = vpop.f32.mrf.mxu0
        %v653 = vadd.f32 0.0, %v652
        %v654 = vpop.f32.mrf.mxu0
        %655 = vmatprep.mubr.f32.mxu0 0.0
        %v656 = vand.u32 %v388, 4294901760
        %v657 = vsub.f32 %v388, %v656
        %v658 = vand.u32 %v657, 4294901760
        %v659 = vsub.f32 %v657, %v658
        %v660 = vand.u32 %v659, 4294901760
        %661 = vmatmul.mubr.f32.gmra.mxu0 %v660
        %v662 = vpop.f32.mrf.mxu0
        %v663 = vadd.f32 0.0, %v662
        %v664 = vpop.f32.mrf.mxu0
        %665 = vmatprep.mubr.f32.mxu0 0.0
        %v666 = vand.u32 %v391, 4294901760
        %v667 = vsub.f32 %v391, %v666
        %v668 = vand.u32 %v667, 4294901760
        %v669 = vsub.f32 %v667, %v668
        %v670 = vand.u32 %v669, 4294901760
        %671 = vmatmul.mubr.f32.gmra.mxu0 %v670
        %v672 = vpop.f32.mrf.mxu0
        %v673 = vadd.f32 0.0, %v672
        %v674 = vpop.f32.mrf.mxu0
        %675 = vmatprep.mubr.f32.mxu0 0.0
        %v676 = vand.u32 %v394, 4294901760
        %v677 = vsub.f32 %v394, %v676
        %v678 = vand.u32 %v677, 4294901760
        %v679 = vsub.f32 %v677, %v678
        %v680 = vand.u32 %v679, 4294901760
        %681 = vmatmul.mubr.f32.gmra.mxu0 %v680
        %v682 = vpop.f32.mrf.mxu0
        %v683 = vadd.f32 0.0, %v682
        %v684 = vpop.f32.mrf.mxu0
        %685 = vmatprep.mubr.f32.mxu0 0.0
        %v686 = vand.u32 %v397, 4294901760
        %v687 = vsub.f32 %v397, %v686
        %v688 = vand.u32 %v687, 4294901760
        %v689 = vsub.f32 %v687, %v688
        %v690 = vand.u32 %v689, 4294901760
        %691 = vmatmul.mubr.f32.gmra.mxu0 %v690
        %v692 = vpop.f32.mrf.mxu0
        %v693 = vadd.f32 0.0, %v692
        %v694 = vpop.f32.mrf.mxu0
        %695 = vmatprep.mubr.f32.mxu0 0.0
        %v696 = vand.u32 %v400, 4294901760
        %v697 = vsub.f32 %v400, %v696
        %v698 = vand.u32 %v697, 4294901760
        %v699 = vsub.f32 %v697, %v698
        %v700 = vand.u32 %v699, 4294901760
        %701 = vmatmul.mubr.f32.gmra.mxu0 %v700
        %v702 = vpop.f32.mrf.mxu0
        %v703 = vadd.f32 0.0, %v702
        %v704 = vpop.f32.mrf.mxu0
        %705 = vmatprep.mubr.f32.mxu0 0.0
        %v706 = vand.u32 %v403, 4294901760
        %v707 = vsub.f32 %v403, %v706
        %v708 = vand.u32 %v707, 4294901760
        %v709 = vsub.f32 %v707, %v708
        %v710 = vand.u32 %v709, 4294901760
        %711 = vmatmul.mubr.f32.gmra.mxu0 %v710
        %v712 = vpop.f32.mrf.mxu0
        %v713 = vadd.f32 0.0, %v712
        %v714 = vpop.f32.mrf.mxu0
        %715 = vmatprep.mubr.f32.mxu0 0.0
        %v716 = vand.u32 %v406, 4294901760
        %v717 = vsub.f32 %v406, %v716
        %v718 = vand.u32 %v717, 4294901760
        %v719 = vsub.f32 %v717, %v718
        %v720 = vand.u32 %v719, 4294901760
        %721 = vmatmul.mubr.f32.gmra.mxu0 %v720
        %v722 = vpop.f32.mrf.mxu0
        %v723 = vadd.f32 0.0, %v722
        %v724 = vpop.f32.mrf.mxu0
        %725 = vmatprep.mubr.f32.mxu0 0.0
        %v726 = vand.u32 %v409, 4294901760
        %v727 = vsub.f32 %v409, %v726
        %v728 = vand.u32 %v727, 4294901760
        %v729 = vsub.f32 %v727, %v728
        %v730 = vand.u32 %v729, 4294901760
        %731 = vmatmul.mubr.f32.gmra.mxu0 %v730
        %v732 = vpop.f32.mrf.mxu0
        %v733 = vadd.f32 0.0, %v732
        %v734 = vpop.f32.mrf.mxu0
        %735 = vmatprep.mubr.f32.mxu0 0.0
        %v736 = vand.u32 %v412, 4294901760
        %v737 = vsub.f32 %v412, %v736
        %v738 = vand.u32 %v737, 4294901760
        %v739 = vsub.f32 %v737, %v738
        %v740 = vand.u32 %v739, 4294901760
        %741 = vmatmul.mubr.f32.gmra.mxu0 %v740
        %v742 = vpop.f32.mrf.mxu0
        %v743 = vadd.f32 0.0, %v742
        %v744 = vpop.f32.mrf.mxu0
        %745 = vmatprep.mubr.f32.mxu0 0.0
        %v746 = vand.u32 %v415, 4294901760
        %v747 = vsub.f32 %v415, %v746
        %v748 = vand.u32 %v747, 4294901760
        %v749 = vsub.f32 %v747, %v748
        %v750 = vand.u32 %v749, 4294901760
        %751 = vmatmul.mubr.f32.gmra.mxu0 %v750
        %v752 = vpop.f32.mrf.mxu0
        %v753 = vadd.f32 0.0, %v752
        %v754 = vpop.f32.mrf.mxu0
        %755 = vmatprep.mubr.f32.mxu0 0.0
        %v756 = vand.u32 %v418, 4294901760
        %v757 = vsub.f32 %v418, %v756
        %v758 = vand.u32 %v757, 4294901760
        %v759 = vsub.f32 %v757, %v758
        %v760 = vand.u32 %v759, 4294901760
        %761 = vmatmul.mubr.f32.gmra.mxu0 %v760
        %v762 = vpop.f32.mrf.mxu0
        %v763 = vadd.f32 0.0, %v762
        %v764 = vpop.f32.mrf.mxu0
        %765 = vmatprep.mubr.f32.mxu0 0.0
        %v766 = vand.u32 %v421, 4294901760
        %v767 = vsub.f32 %v421, %v766
        %v768 = vand.u32 %v767, 4294901760
        %v769 = vsub.f32 %v767, %v768
        %v770 = vand.u32 %v769, 4294901760
        %771 = vmatmul.mubr.f32.gmra.mxu0 %v770
        %v772 = vpop.f32.mrf.mxu0
        %v773 = vadd.f32 0.0, %v772
        %v774 = vpop.f32.mrf.mxu0
        %775 = vmatprep.mubr.f32.mxu0 0.0
        %v776 = vand.u32 %v424, 4294901760
        %v777 = vsub.f32 %v424, %v776
        %v778 = vand.u32 %v777, 4294901760
        %v779 = vsub.f32 %v777, %v778
        %v780 = vand.u32 %v779, 4294901760
        %781 = vmatmul.mubr.f32.gmra.mxu0 %v780
        %v782 = vpop.f32.mrf.mxu0
        %v783 = vadd.f32 0.0, %v782
        %v784 = vpop.f32.mrf.mxu0
        %785 = vmatprep.mubr.f32.mxu0 0.0
        %v786 = vand.u32 %v427, 4294901760
        %v787 = vsub.f32 %v427, %v786
        %v788 = vand.u32 %v787, 4294901760
        %v789 = vsub.f32 %v787, %v788
        %v790 = vand.u32 %v789, 4294901760
        %791 = vmatmul.mubr.f32.gmra.mxu0 %v790
        %v792 = vpop.f32.mrf.mxu0
        %v793 = vadd.f32 0.0, %v792
        %v794 = vpop.f32.mrf.mxu0
        %795 = vmatprep.mubr.f32.mxu0 0.0
        %v796 = vand.u32 %v430, 4294901760
        %v797 = vsub.f32 %v430, %v796
        %v798 = vand.u32 %v797, 4294901760
        %v799 = vsub.f32 %v797, %v798
        %v800 = vand.u32 %v799, 4294901760
        %801 = vmatmul.mubr.f32.gmra.mxu0 %v800
        %v802 = vpop.f32.mrf.mxu0
        %v803 = vadd.f32 0.0, %v802
        %v804 = vpop.f32.mrf.mxu0
        %805 = vmatprep.mubr.f32.mxu0 0.0
        %v806 = vand.u32 %v433, 4294901760
        %v807 = vsub.f32 %v433, %v806
        %v808 = vand.u32 %v807, 4294901760
        %v809 = vsub.f32 %v807, %v808
        %v810 = vand.u32 %v809, 4294901760
        %811 = vmatmul.mubr.f32.gmra.mxu0 %v810
        %v812 = vpop.f32.mrf.mxu0
        %v813 = vadd.f32 0.0, %v812
        %v814 = vpop.f32.mrf.mxu0
        %815 = vmatprep.mubr.f32.mxu0 0.0
        %v816 = vand.u32 %v436, 4294901760
        %v817 = vsub.f32 %v436, %v816
        %v818 = vand.u32 %v817, 4294901760
        %v819 = vsub.f32 %v817, %v818
        %v820 = vand.u32 %v819, 4294901760
        %821 = vmatmul.mubr.f32.gmra.mxu0 %v820
        %v822 = vpop.f32.mrf.mxu0
        %v823 = vadd.f32 0.0, %v822
        %v824 = vpop.f32.mrf.mxu0
        %825 = vdwg.mxu0
        %826 = vmatprep.subr.mxu0 0.0
        %827 = vmatpush1.msra.mxu0 0.0
        %828 = vmatprep.subr.mxu0 0.0
        %829 = vmatpush1.msra.mxu0 0.0
        %830 = vmatprep.subr.mxu0 0.0
        %831 = vmatpush1.msra.mxu0 0.0
        %832 = vmatprep.subr.mxu0 0.0
        %833 = vmatpush1.msra.mxu0 0.0
        %834 = vmatprep.subr.mxu0 0.0
        %835 = vmatpush1.msra.mxu0 0.0
        %836 = vmatprep.subr.mxu0 0.0
        %837 = vmatpush1.msra.mxu0 0.0
        %838 = vmatprep.subr.mxu0 0.0
        %839 = vmatpush1.msra.mxu0 0.0
        %840 = vmatprep.subr.mxu0 0.0
        %841 = vmatpush1.msra.mxu0 0.0
        %842 = vmatprep.subr.mxu0 0.0
        %843 = vmatpush1.msra.mxu0 0.0
        %844 = vmatprep.subr.mxu0 0.0
        %845 = vmatpush1.msra.mxu0 0.0
        %846 = vmatprep.subr.mxu0 0.0
        %847 = vmatpush1.msra.mxu0 0.0
        %848 = vmatprep.subr.mxu0 0.0
        %849 = vmatpush1.msra.mxu0 0.0
        %850 = vmatprep.subr.mxu0 0.0
        %851 = vmatpush1.msra.mxu0 0.0
        %852 = vmatprep.subr.mxu0 0.0
        %v853 = vand.u32 %v340, 4294901760
        %v854 = vsub.f32 %v340, %v853
        %v855 = vand.u32 %v854, 4294901760
        %v856 = vsub.f32 %v854, %v855
        %v857 = vand.u32 %v856, 4294901760
        %858 = vmatpush1.msra.mxu0 %v857
        %859 = vmatprep.subr.mxu0 0.0
        %v860 = vand.u32 %v339, 4294901760
        %v861 = vsub.f32 %v339, %v860
        %v862 = vand.u32 %v861, 4294901760
        %v863 = vsub.f32 %v861, %v862
        %v864 = vand.u32 %v863, 4294901760
        %865 = vmatpush1.msra.mxu0 %v864
        %866 = vmatprep.subr.mxu0 0.0
        %v867 = vand.u32 %v338, 4294901760
        %v868 = vsub.f32 %v338, %v867
        %v869 = vand.u32 %v868, 4294901760
        %v870 = vsub.f32 %v868, %v869
        %v871 = vand.u32 %v870, 4294901760
        %872 = vmatpush1.msra.mxu0 %v871
        %873 = vmatprep.subr.mxu0 0.0
        %874 = vmatpush2.msra.mxu0 0.0
        %875 = vmatprep.subr.mxu0 0.0
        %876 = vmatpush2.msra.mxu0 0.0
        %877 = vmatprep.subr.mxu0 0.0
        %878 = vmatpush2.msra.mxu0 0.0
        %879 = vmatprep.subr.mxu0 0.0
        %880 = vmatpush2.msra.mxu0 0.0
        %881 = vmatprep.subr.mxu0 0.0
        %882 = vmatpush2.msra.mxu0 0.0
        %883 = vmatprep.subr.mxu0 0.0
        %884 = vmatpush2.msra.mxu0 0.0
        %885 = vmatprep.subr.mxu0 0.0
        %886 = vmatpush2.msra.mxu0 0.0
        %887 = vmatprep.subr.mxu0 0.0
        %888 = vmatpush2.msra.mxu0 0.0
        %889 = vmatprep.subr.mxu0 0.0
        %890 = vmatpush2.msra.mxu0 0.0
        %891 = vmatprep.subr.mxu0 0.0
        %892 = vmatpush2.msra.mxu0 0.0
        %893 = vmatprep.subr.mxu0 0.0
        %894 = vmatpush2.msra.mxu0 0.0
        %895 = vmatprep.subr.mxu0 0.0
        %896 = vmatpush2.msra.mxu0 0.0
        %897 = vmatprep.subr.mxu0 0.0
        %898 = vmatpush2.msra.mxu0 0.0
        %899 = vmatprep.subr.mxu0 0.0
        %900 = vmatpush2.msra.mxu0 0.0
        %901 = vmatprep.subr.mxu0 0.0
        %902 = vmatpush2.msra.mxu0 0.0
        %903 = vmatprep.subr.mxu0 0.0
        %904 = vmatpush2.msra.mxu0 0.0
        %905 = vmatprep.mubr.f32.mxu0 0.0
        %v906 = vand.u32 %v343, 4294901760
        %907 = vmatmul.mubr.f32.gmra.mxu0 %v906
        %v908 = vpop.f32.mrf.mxu0
        %v909 = vadd.f32 %v513, %v908
        %v910 = vpop.f32.mrf.mxu0
        %911 = vmatprep.mubr.f32.mxu0 0.0
        %v912 = vand.u32 %v346, 4294901760
        %913 = vmatmul.mubr.f32.gmra.mxu0 %v912
        %v914 = vpop.f32.mrf.mxu0
        %v915 = vadd.f32 %v523, %v914
        %v916 = vpop.f32.mrf.mxu0
        %917 = vmatprep.mubr.f32.mxu0 0.0
        %v918 = vand.u32 %v349, 4294901760
        %919 = vmatmul.mubr.f32.gmra.mxu0 %v918
        %v920 = vpop.f32.mrf.mxu0
        %v921 = vadd.f32 %v533, %v920
        %v922 = vpop.f32.mrf.mxu0
        %923 = vmatprep.mubr.f32.mxu0 0.0
        %v924 = vand.u32 %v352, 4294901760
        %925 = vmatmul.mubr.f32.gmra.mxu0 %v924
        %v926 = vpop.f32.mrf.mxu0
        %v927 = vadd.f32 %v543, %v926
        %v928 = vpop.f32.mrf.mxu0
        %929 = vmatprep.mubr.f32.mxu0 0.0
        %v930 = vand.u32 %v355, 4294901760
        %931 = vmatmul.mubr.f32.gmra.mxu0 %v930
        %v932 = vpop.f32.mrf.mxu0
        %v933 = vadd.f32 %v553, %v932
        %v934 = vpop.f32.mrf.mxu0
        %935 = vmatprep.mubr.f32.mxu0 0.0
        %v936 = vand.u32 %v358, 4294901760
        %937 = vmatmul.mubr.f32.gmra.mxu0 %v936
        %v938 = vpop.f32.mrf.mxu0
        %v939 = vadd.f32 %v563, %v938
        %v940 = vpop.f32.mrf.mxu0
        %941 = vmatprep.mubr.f32.mxu0 0.0
        %v942 = vand.u32 %v361, 4294901760
        %943 = vmatmul.mubr.f32.gmra.mxu0 %v942
        %v944 = vpop.f32.mrf.mxu0
        %v945 = vadd.f32 %v573, %v944
        %v946 = vpop.f32.mrf.mxu0
        %947 = vmatprep.mubr.f32.mxu0 0.0
        %v948 = vand.u32 %v364, 4294901760
        %949 = vmatmul.mubr.f32.gmra.mxu0 %v948
        %v950 = vpop.f32.mrf.mxu0
        %v951 = vadd.f32 %v583, %v950
        %v952 = vpop.f32.mrf.mxu0
        %953 = vmatprep.mubr.f32.mxu0 0.0
        %v954 = vand.u32 %v367, 4294901760
        %955 = vmatmul.mubr.f32.gmra.mxu0 %v954
        %v956 = vpop.f32.mrf.mxu0
        %v957 = vadd.f32 %v593, %v956
        %v958 = vpop.f32.mrf.mxu0
        %959 = vmatprep.mubr.f32.mxu0 0.0
        %v960 = vand.u32 %v370, 4294901760
        %961 = vmatmul.mubr.f32.gmra.mxu0 %v960
        %v962 = vpop.f32.mrf.mxu0
        %v963 = vadd.f32 %v603, %v962
        %v964 = vpop.f32.mrf.mxu0
        %965 = vmatprep.mubr.f32.mxu0 0.0
        %v966 = vand.u32 %v373, 4294901760
        %967 = vmatmul.mubr.f32.gmra.mxu0 %v966
        %v968 = vpop.f32.mrf.mxu0
        %v969 = vadd.f32 %v613, %v968
        %v970 = vpop.f32.mrf.mxu0
        %971 = vmatprep.mubr.f32.mxu0 0.0
        %v972 = vand.u32 %v376, 4294901760
        %973 = vmatmul.mubr.f32.gmra.mxu0 %v972
        %v974 = vpop.f32.mrf.mxu0
        %v975 = vadd.f32 %v623, %v974
        %v976 = vpop.f32.mrf.mxu0
        %977 = vmatprep.mubr.f32.mxu0 0.0
        %v978 = vand.u32 %v379, 4294901760
        %979 = vmatmul.mubr.f32.gmra.mxu0 %v978
        %v980 = vpop.f32.mrf.mxu0
        %v981 = vadd.f32 %v633, %v980
        %v982 = vpop.f32.mrf.mxu0
        %983 = vmatprep.mubr.f32.mxu0 0.0
        %v984 = vand.u32 %v382, 4294901760
        %985 = vmatmul.mubr.f32.gmra.mxu0 %v984
        %v986 = vpop.f32.mrf.mxu0
        %v987 = vadd.f32 %v643, %v986
        %v988 = vpop.f32.mrf.mxu0
        %989 = vmatprep.mubr.f32.mxu0 0.0
        %v990 = vand.u32 %v385, 4294901760
        %991 = vmatmul.mubr.f32.gmra.mxu0 %v990
        %v992 = vpop.f32.mrf.mxu0
        %v993 = vadd.f32 %v653, %v992
        %v994 = vpop.f32.mrf.mxu0
        %995 = vmatprep.mubr.f32.mxu0 0.0
        %v996 = vand.u32 %v388, 4294901760
        %997 = vmatmul.mubr.f32.gmra.mxu0 %v996
        %v998 = vpop.f32.mrf.mxu0
        %v999 = vadd.f32 %v663, %v998
        %v1000 = vpop.f32.mrf.mxu0
        %1001 = vmatprep.mubr.f32.mxu0 0.0
        %v1002 = vand.u32 %v391, 4294901760
        %1003 = vmatmul.mubr.f32.gmra.mxu0 %v1002
        %v1004 = vpop.f32.mrf.mxu0
        %v1005 = vadd.f32 %v673, %v1004
        %v1006 = vpop.f32.mrf.mxu0
        %1007 = vmatprep.mubr.f32.mxu0 0.0
        %v1008 = vand.u32 %v394, 4294901760
        %1009 = vmatmul.mubr.f32.gmra.mxu0 %v1008
        %v1010 = vpop.f32.mrf.mxu0
        %v1011 = vadd.f32 %v683, %v1010
        %v1012 = vpop.f32.mrf.mxu0
        %1013 = vmatprep.mubr.f32.mxu0 0.0
        %v1014 = vand.u32 %v397, 4294901760
        %1015 = vmatmul.mubr.f32.gmra.mxu0 %v1014
        %v1016 = vpop.f32.mrf.mxu0
        %v1017 = vadd.f32 %v693, %v1016
        %v1018 = vpop.f32.mrf.mxu0
        %1019 = vmatprep.mubr.f32.mxu0 0.0
        %v1020 = vand.u32 %v400, 4294901760
        %1021 = vmatmul.mubr.f32.gmra.mxu0 %v1020
        %v1022 = vpop.f32.mrf.mxu0
        %v1023 = vadd.f32 %v703, %v1022
        %v1024 = vpop.f32.mrf.mxu0
        %1025 = vmatprep.mubr.f32.mxu0 0.0
        %v1026 = vand.u32 %v403, 4294901760
        %1027 = vmatmul.mubr.f32.gmra.mxu0 %v1026
        %v1028 = vpop.f32.mrf.mxu0
        %v1029 = vadd.f32 %v713, %v1028
        %v1030 = vpop.f32.mrf.mxu0
        %1031 = vmatprep.mubr.f32.mxu0 0.0
        %v1032 = vand.u32 %v406, 4294901760
        %1033 = vmatmul.mubr.f32.gmra.mxu0 %v1032
        %v1034 = vpop.f32.mrf.mxu0
        %v1035 = vadd.f32 %v723, %v1034
        %v1036 = vpop.f32.mrf.mxu0
        %1037 = vmatprep.mubr.f32.mxu0 0.0
        %v1038 = vand.u32 %v409, 4294901760
        %1039 = vmatmul.mubr.f32.gmra.mxu0 %v1038
        %v1040 = vpop.f32.mrf.mxu0
        %v1041 = vadd.f32 %v733, %v1040
        %v1042 = vpop.f32.mrf.mxu0
        %1043 = vmatprep.mubr.f32.mxu0 0.0
        %v1044 = vand.u32 %v412, 4294901760
        %1045 = vmatmul.mubr.f32.gmra.mxu0 %v1044
        %v1046 = vpop.f32.mrf.mxu0
        %v1047 = vadd.f32 %v743, %v1046
        %v1048 = vpop.f32.mrf.mxu0
        %1049 = vmatprep.mubr.f32.mxu0 0.0
        %v1050 = vand.u32 %v415, 4294901760
        %1051 = vmatmul.mubr.f32.gmra.mxu0 %v1050
        %v1052 = vpop.f32.mrf.mxu0
        %v1053 = vadd.f32 %v753, %v1052
        %v1054 = vpop.f32.mrf.mxu0
        %1055 = vmatprep.mubr.f32.mxu0 0.0
        %v1056 = vand.u32 %v418, 4294901760
        %1057 = vmatmul.mubr.f32.gmra.mxu0 %v1056
        %v1058 = vpop.f32.mrf.mxu0
        %v1059 = vadd.f32 %v763, %v1058
        %v1060 = vpop.f32.mrf.mxu0
        %1061 = vmatprep.mubr.f32.mxu0 0.0
        %v1062 = vand.u32 %v421, 4294901760
        %1063 = vmatmul.mubr.f32.gmra.mxu0 %v1062
        %v1064 = vpop.f32.mrf.mxu0
        %v1065 = vadd.f32 %v773, %v1064
        %v1066 = vpop.f32.mrf.mxu0
        %1067 = vmatprep.mubr.f32.mxu0 0.0
        %v1068 = vand.u32 %v424, 4294901760
        %1069 = vmatmul.mubr.f32.gmra.mxu0 %v1068
        %v1070 = vpop.f32.mrf.mxu0
        %v1071 = vadd.f32 %v783, %v1070
        %v1072 = vpop.f32.mrf.mxu0
        %1073 = vmatprep.mubr.f32.mxu0 0.0
        %v1074 = vand.u32 %v427, 4294901760
        %1075 = vmatmul.mubr.f32.gmra.mxu0 %v1074
        %v1076 = vpop.f32.mrf.mxu0
        %v1077 = vadd.f32 %v793, %v1076
        %v1078 = vpop.f32.mrf.mxu0
        %1079 = vmatprep.mubr.f32.mxu0 0.0
        %v1080 = vand.u32 %v430, 4294901760
        %1081 = vmatmul.mubr.f32.gmra.mxu0 %v1080
        %v1082 = vpop.f32.mrf.mxu0
        %v1083 = vadd.f32 %v803, %v1082
        %v1084 = vpop.f32.mrf.mxu0
        %1085 = vmatprep.mubr.f32.mxu0 0.0
        %v1086 = vand.u32 %v433, 4294901760
        %1087 = vmatmul.mubr.f32.gmra.mxu0 %v1086
        %v1088 = vpop.f32.mrf.mxu0
        %v1089 = vadd.f32 %v813, %v1088
        %v1090 = vpop.f32.mrf.mxu0
        %1091 = vmatprep.mubr.f32.mxu0 0.0
        %v1092 = vand.u32 %v436, 4294901760
        %1093 = vmatmul.mubr.f32.gmra.mxu0 %v1092
        %v1094 = vpop.f32.mrf.mxu0
        %v1095 = vadd.f32 %v823, %v1094
        %v1096 = vpop.f32.mrf.mxu0
        %1097 = vdwg.mxu0
        %1098 = vmatprep.subr.mxu0 0.0
        %1099 = vmatpush1.msra.mxu0 0.0
        %1100 = vmatprep.subr.mxu0 0.0
        %1101 = vmatpush1.msra.mxu0 0.0
        %1102 = vmatprep.subr.mxu0 0.0
        %1103 = vmatpush1.msra.mxu0 0.0
        %1104 = vmatprep.subr.mxu0 0.0
        %1105 = vmatpush1.msra.mxu0 0.0
        %1106 = vmatprep.subr.mxu0 0.0
        %1107 = vmatpush1.msra.mxu0 0.0
        %1108 = vmatprep.subr.mxu0 0.0
        %1109 = vmatpush1.msra.mxu0 0.0
        %1110 = vmatprep.subr.mxu0 0.0
        %1111 = vmatpush1.msra.mxu0 0.0
        %1112 = vmatprep.subr.mxu0 0.0
        %1113 = vmatpush1.msra.mxu0 0.0
        %1114 = vmatprep.subr.mxu0 0.0
        %1115 = vmatpush1.msra.mxu0 0.0
        %1116 = vmatprep.subr.mxu0 0.0
        %1117 = vmatpush1.msra.mxu0 0.0
        %1118 = vmatprep.subr.mxu0 0.0
        %1119 = vmatpush1.msra.mxu0 0.0
        %1120 = vmatprep.subr.mxu0 0.0
        %1121 = vmatpush1.msra.mxu0 0.0
        %1122 = vmatprep.subr.mxu0 0.0
        %1123 = vmatpush1.msra.mxu0 0.0
        %1124 = vmatprep.subr.mxu0 0.0
        %v1125 = vand.u32 %v340, 4294901760
        %v1126 = vsub.f32 %v340, %v1125
        %1127 = vmatpush1.msra.mxu0 %v1126
        %1128 = vmatprep.subr.mxu0 0.0
        %v1129 = vand.u32 %v339, 4294901760
        %v1130 = vsub.f32 %v339, %v1129
        %1131 = vmatpush1.msra.mxu0 %v1130
        %1132 = vmatprep.subr.mxu0 0.0
        %v1133 = vand.u32 %v338, 4294901760
        %v1134 = vsub.f32 %v338, %v1133
        %1135 = vmatpush1.msra.mxu0 %v1134
        %1136 = vmatprep.subr.mxu0 0.0
        %1137 = vmatpush2.msra.mxu0 0.0
        %1138 = vmatprep.subr.mxu0 0.0
        %1139 = vmatpush2.msra.mxu0 0.0
        %1140 = vmatprep.subr.mxu0 0.0
        %1141 = vmatpush2.msra.mxu0 0.0
        %1142 = vmatprep.subr.mxu0 0.0
        %1143 = vmatpush2.msra.mxu0 0.0
        %1144 = vmatprep.subr.mxu0 0.0
        %1145 = vmatpush2.msra.mxu0 0.0
        %1146 = vmatprep.subr.mxu0 0.0
        %1147 = vmatpush2.msra.mxu0 0.0
        %1148 = vmatprep.subr.mxu0 0.0
        %1149 = vmatpush2.msra.mxu0 0.0
        %1150 = vmatprep.subr.mxu0 0.0
        %1151 = vmatpush2.msra.mxu0 0.0
        %1152 = vmatprep.subr.mxu0 0.0
        %1153 = vmatpush2.msra.mxu0 0.0
        %1154 = vmatprep.subr.mxu0 0.0
        %1155 = vmatpush2.msra.mxu0 0.0
        %1156 = vmatprep.subr.mxu0 0.0
        %1157 = vmatpush2.msra.mxu0 0.0
        %1158 = vmatprep.subr.mxu0 0.0
        %1159 = vmatpush2.msra.mxu0 0.0
        %1160 = vmatprep.subr.mxu0 0.0
        %1161 = vmatpush2.msra.mxu0 0.0
        %1162 = vmatprep.subr.mxu0 0.0
        %1163 = vmatpush2.msra.mxu0 0.0
        %1164 = vmatprep.subr.mxu0 0.0
        %1165 = vmatpush2.msra.mxu0 0.0
        %1166 = vmatprep.subr.mxu0 0.0
        %1167 = vmatpush2.msra.mxu0 0.0
        %1168 = vmatprep.mubr.f32.mxu0 0.0
        %v1169 = vand.u32 %v343, 4294901760
        %v1170 = vsub.f32 %v343, %v1169
        %1171 = vmatmul.mubr.f32.gmra.mxu0 %v1170
        %v1172 = vpop.f32.mrf.mxu0
        %v1173 = vadd.f32 %v909, %v1172
        %v1174 = vpop.f32.mrf.mxu0
        %1175 = vmatprep.mubr.f32.mxu0 0.0
        %v1176 = vand.u32 %v346, 4294901760
        %v1177 = vsub.f32 %v346, %v1176
        %1178 = vmatmul.mubr.f32.gmra.mxu0 %v1177
        %v1179 = vpop.f32.mrf.mxu0
        %v1180 = vadd.f32 %v915, %v1179
        %v1181 = vpop.f32.mrf.mxu0
        %1182 = vmatprep.mubr.f32.mxu0 0.0
        %v1183 = vand.u32 %v349, 4294901760
        %v1184 = vsub.f32 %v349, %v1183
        %1185 = vmatmul.mubr.f32.gmra.mxu0 %v1184
        %v1186 = vpop.f32.mrf.mxu0
        %v1187 = vadd.f32 %v921, %v1186
        %v1188 = vpop.f32.mrf.mxu0
        %1189 = vmatprep.mubr.f32.mxu0 0.0
        %v1190 = vand.u32 %v352, 4294901760
        %v1191 = vsub.f32 %v352, %v1190
        %1192 = vmatmul.mubr.f32.gmra.mxu0 %v1191
        %v1193 = vpop.f32.mrf.mxu0
        %v1194 = vadd.f32 %v927, %v1193
        %v1195 = vpop.f32.mrf.mxu0
        %1196 = vmatprep.mubr.f32.mxu0 0.0
        %v1197 = vand.u32 %v355, 4294901760
        %v1198 = vsub.f32 %v355, %v1197
        %1199 = vmatmul.mubr.f32.gmra.mxu0 %v1198
        %v1200 = vpop.f32.mrf.mxu0
        %v1201 = vadd.f32 %v933, %v1200
        %v1202 = vpop.f32.mrf.mxu0
        %1203 = vmatprep.mubr.f32.mxu0 0.0
        %v1204 = vand.u32 %v358, 4294901760
        %v1205 = vsub.f32 %v358, %v1204
        %1206 = vmatmul.mubr.f32.gmra.mxu0 %v1205
        %v1207 = vpop.f32.mrf.mxu0
        %v1208 = vadd.f32 %v939, %v1207
        %v1209 = vpop.f32.mrf.mxu0
        %1210 = vmatprep.mubr.f32.mxu0 0.0
        %v1211 = vand.u32 %v361, 4294901760
        %v1212 = vsub.f32 %v361, %v1211
        %1213 = vmatmul.mubr.f32.gmra.mxu0 %v1212
        %v1214 = vpop.f32.mrf.mxu0
        %v1215 = vadd.f32 %v945, %v1214
        %v1216 = vpop.f32.mrf.mxu0
        %1217 = vmatprep.mubr.f32.mxu0 0.0
        %v1218 = vand.u32 %v364, 4294901760
        %v1219 = vsub.f32 %v364, %v1218
        %1220 = vmatmul.mubr.f32.gmra.mxu0 %v1219
        %v1221 = vpop.f32.mrf.mxu0
        %v1222 = vadd.f32 %v951, %v1221
        %v1223 = vpop.f32.mrf.mxu0
        %1224 = vmatprep.mubr.f32.mxu0 0.0
        %v1225 = vand.u32 %v367, 4294901760
        %v1226 = vsub.f32 %v367, %v1225
        %1227 = vmatmul.mubr.f32.gmra.mxu0 %v1226
        %v1228 = vpop.f32.mrf.mxu0
        %v1229 = vadd.f32 %v957, %v1228
        %v1230 = vpop.f32.mrf.mxu0
        %1231 = vmatprep.mubr.f32.mxu0 0.0
        %v1232 = vand.u32 %v370, 4294901760
        %v1233 = vsub.f32 %v370, %v1232
        %1234 = vmatmul.mubr.f32.gmra.mxu0 %v1233
        %v1235 = vpop.f32.mrf.mxu0
        %v1236 = vadd.f32 %v963, %v1235
        %v1237 = vpop.f32.mrf.mxu0
        %1238 = vmatprep.mubr.f32.mxu0 0.0
        %v1239 = vand.u32 %v373, 4294901760
        %v1240 = vsub.f32 %v373, %v1239
        %1241 = vmatmul.mubr.f32.gmra.mxu0 %v1240
        %v1242 = vpop.f32.mrf.mxu0
        %v1243 = vadd.f32 %v969, %v1242
        %v1244 = vpop.f32.mrf.mxu0
        %1245 = vmatprep.mubr.f32.mxu0 0.0
        %v1246 = vand.u32 %v376, 4294901760
        %v1247 = vsub.f32 %v376, %v1246
        %1248 = vmatmul.mubr.f32.gmra.mxu0 %v1247
        %v1249 = vpop.f32.mrf.mxu0
        %v1250 = vadd.f32 %v975, %v1249
        %v1251 = vpop.f32.mrf.mxu0
        %1252 = vmatprep.mubr.f32.mxu0 0.0
        %v1253 = vand.u32 %v379, 4294901760
        %v1254 = vsub.f32 %v379, %v1253
        %1255 = vmatmul.mubr.f32.gmra.mxu0 %v1254
        %v1256 = vpop.f32.mrf.mxu0
        %v1257 = vadd.f32 %v981, %v1256
        %v1258 = vpop.f32.mrf.mxu0
        %1259 = vmatprep.mubr.f32.mxu0 0.0
        %v1260 = vand.u32 %v382, 4294901760
        %v1261 = vsub.f32 %v382, %v1260
        %1262 = vmatmul.mubr.f32.gmra.mxu0 %v1261
        %v1263 = vpop.f32.mrf.mxu0
        %v1264 = vadd.f32 %v987, %v1263
        %v1265 = vpop.f32.mrf.mxu0
        %1266 = vmatprep.mubr.f32.mxu0 0.0
        %v1267 = vand.u32 %v385, 4294901760
        %v1268 = vsub.f32 %v385, %v1267
        %1269 = vmatmul.mubr.f32.gmra.mxu0 %v1268
        %v1270 = vpop.f32.mrf.mxu0
        %v1271 = vadd.f32 %v993, %v1270
        %v1272 = vpop.f32.mrf.mxu0
        %1273 = vmatprep.mubr.f32.mxu0 0.0
        %v1274 = vand.u32 %v388, 4294901760
        %v1275 = vsub.f32 %v388, %v1274
        %1276 = vmatmul.mubr.f32.gmra.mxu0 %v1275
        %v1277 = vpop.f32.mrf.mxu0
        %v1278 = vadd.f32 %v999, %v1277
        %v1279 = vpop.f32.mrf.mxu0
        %1280 = vmatprep.mubr.f32.mxu0 0.0
        %v1281 = vand.u32 %v391, 4294901760
        %v1282 = vsub.f32 %v391, %v1281
        %1283 = vmatmul.mubr.f32.gmra.mxu0 %v1282
        %v1284 = vpop.f32.mrf.mxu0
        %v1285 = vadd.f32 %v1005, %v1284
        %v1286 = vpop.f32.mrf.mxu0
        %1287 = vmatprep.mubr.f32.mxu0 0.0
        %v1288 = vand.u32 %v394, 4294901760
        %v1289 = vsub.f32 %v394, %v1288
        %1290 = vmatmul.mubr.f32.gmra.mxu0 %v1289
        %v1291 = vpop.f32.mrf.mxu0
        %v1292 = vadd.f32 %v1011, %v1291
        %v1293 = vpop.f32.mrf.mxu0
        %1294 = vmatprep.mubr.f32.mxu0 0.0
        %v1295 = vand.u32 %v397, 4294901760
        %v1296 = vsub.f32 %v397, %v1295
        %1297 = vmatmul.mubr.f32.gmra.mxu0 %v1296
        %v1298 = vpop.f32.mrf.mxu0
        %v1299 = vadd.f32 %v1017, %v1298
        %v1300 = vpop.f32.mrf.mxu0
        %1301 = vmatprep.mubr.f32.mxu0 0.0
        %v1302 = vand.u32 %v400, 4294901760
        %v1303 = vsub.f32 %v400, %v1302
        %1304 = vmatmul.mubr.f32.gmra.mxu0 %v1303
        %v1305 = vpop.f32.mrf.mxu0
        %v1306 = vadd.f32 %v1023, %v1305
        %v1307 = vpop.f32.mrf.mxu0
        %1308 = vmatprep.mubr.f32.mxu0 0.0
        %v1309 = vand.u32 %v403, 4294901760
        %v1310 = vsub.f32 %v403, %v1309
        %1311 = vmatmul.mubr.f32.gmra.mxu0 %v1310
        %v1312 = vpop.f32.mrf.mxu0
        %v1313 = vadd.f32 %v1029, %v1312
        %v1314 = vpop.f32.mrf.mxu0
        %1315 = vmatprep.mubr.f32.mxu0 0.0
        %v1316 = vand.u32 %v406, 4294901760
        %v1317 = vsub.f32 %v406, %v1316
        %1318 = vmatmul.mubr.f32.gmra.mxu0 %v1317
        %v1319 = vpop.f32.mrf.mxu0
        %v1320 = vadd.f32 %v1035, %v1319
        %v1321 = vpop.f32.mrf.mxu0
        %1322 = vmatprep.mubr.f32.mxu0 0.0
        %v1323 = vand.u32 %v409, 4294901760
        %v1324 = vsub.f32 %v409, %v1323
        %1325 = vmatmul.mubr.f32.gmra.mxu0 %v1324
        %v1326 = vpop.f32.mrf.mxu0
        %v1327 = vadd.f32 %v1041, %v1326
        %v1328 = vpop.f32.mrf.mxu0
        %1329 = vmatprep.mubr.f32.mxu0 0.0
        %v1330 = vand.u32 %v412, 4294901760
        %v1331 = vsub.f32 %v412, %v1330
        %1332 = vmatmul.mubr.f32.gmra.mxu0 %v1331
        %v1333 = vpop.f32.mrf.mxu0
        %v1334 = vadd.f32 %v1047, %v1333
        %v1335 = vpop.f32.mrf.mxu0
        %1336 = vmatprep.mubr.f32.mxu0 0.0
        %v1337 = vand.u32 %v415, 4294901760
        %v1338 = vsub.f32 %v415, %v1337
        %1339 = vmatmul.mubr.f32.gmra.mxu0 %v1338
        %v1340 = vpop.f32.mrf.mxu0
        %v1341 = vadd.f32 %v1053, %v1340
        %v1342 = vpop.f32.mrf.mxu0
        %1343 = vmatprep.mubr.f32.mxu0 0.0
        %v1344 = vand.u32 %v418, 4294901760
        %v1345 = vsub.f32 %v418, %v1344
        %1346 = vmatmul.mubr.f32.gmra.mxu0 %v1345
        %v1347 = vpop.f32.mrf.mxu0
        %v1348 = vadd.f32 %v1059, %v1347
        %v1349 = vpop.f32.mrf.mxu0
        %1350 = vmatprep.mubr.f32.mxu0 0.0
        %v1351 = vand.u32 %v421, 4294901760
        %v1352 = vsub.f32 %v421, %v1351
        %1353 = vmatmul.mubr.f32.gmra.mxu0 %v1352
        %v1354 = vpop.f32.mrf.mxu0
        %v1355 = vadd.f32 %v1065, %v1354
        %v1356 = vpop.f32.mrf.mxu0
        %1357 = vmatprep.mubr.f32.mxu0 0.0
        %v1358 = vand.u32 %v424, 4294901760
        %v1359 = vsub.f32 %v424, %v1358
        %1360 = vmatmul.mubr.f32.gmra.mxu0 %v1359
        %v1361 = vpop.f32.mrf.mxu0
        %v1362 = vadd.f32 %v1071, %v1361
        %v1363 = vpop.f32.mrf.mxu0
        %1364 = vmatprep.mubr.f32.mxu0 0.0
        %v1365 = vand.u32 %v427, 4294901760
        %v1366 = vsub.f32 %v427, %v1365
        %1367 = vmatmul.mubr.f32.gmra.mxu0 %v1366
        %v1368 = vpop.f32.mrf.mxu0
        %v1369 = vadd.f32 %v1077, %v1368
        %v1370 = vpop.f32.mrf.mxu0
        %1371 = vmatprep.mubr.f32.mxu0 0.0
        %v1372 = vand.u32 %v430, 4294901760
        %v1373 = vsub.f32 %v430, %v1372
        %1374 = vmatmul.mubr.f32.gmra.mxu0 %v1373
        %v1375 = vpop.f32.mrf.mxu0
        %v1376 = vadd.f32 %v1083, %v1375
        %v1377 = vpop.f32.mrf.mxu0
        %1378 = vmatprep.mubr.f32.mxu0 0.0
        %v1379 = vand.u32 %v433, 4294901760
        %v1380 = vsub.f32 %v433, %v1379
        %1381 = vmatmul.mubr.f32.gmra.mxu0 %v1380
        %v1382 = vpop.f32.mrf.mxu0
        %v1383 = vadd.f32 %v1089, %v1382
        %v1384 = vpop.f32.mrf.mxu0
        %1385 = vmatprep.mubr.f32.mxu0 0.0
        %v1386 = vand.u32 %v436, 4294901760
        %v1387 = vsub.f32 %v436, %v1386
        %1388 = vmatmul.mubr.f32.gmra.mxu0 %v1387
        %v1389 = vpop.f32.mrf.mxu0
        %v1390 = vadd.f32 %v1095, %v1389
        %v1391 = vpop.f32.mrf.mxu0
        %1392 = vdwg.mxu0
        %1393 = vmatprep.subr.mxu0 0.0
        %1394 = vmatpush1.msra.mxu0 0.0
        %1395 = vmatprep.subr.mxu0 0.0
        %1396 = vmatpush1.msra.mxu0 0.0
        %1397 = vmatprep.subr.mxu0 0.0
        %1398 = vmatpush1.msra.mxu0 0.0
        %1399 = vmatprep.subr.mxu0 0.0
        %1400 = vmatpush1.msra.mxu0 0.0
        %1401 = vmatprep.subr.mxu0 0.0
        %1402 = vmatpush1.msra.mxu0 0.0
        %1403 = vmatprep.subr.mxu0 0.0
        %1404 = vmatpush1.msra.mxu0 0.0
        %1405 = vmatprep.subr.mxu0 0.0
        %1406 = vmatpush1.msra.mxu0 0.0
        %1407 = vmatprep.subr.mxu0 0.0
        %1408 = vmatpush1.msra.mxu0 0.0
        %1409 = vmatprep.subr.mxu0 0.0
        %1410 = vmatpush1.msra.mxu0 0.0
        %1411 = vmatprep.subr.mxu0 0.0
        %1412 = vmatpush1.msra.mxu0 0.0
        %1413 = vmatprep.subr.mxu0 0.0
        %1414 = vmatpush1.msra.mxu0 0.0
        %1415 = vmatprep.subr.mxu0 0.0
        %1416 = vmatpush1.msra.mxu0 0.0
        %1417 = vmatprep.subr.mxu0 0.0
        %1418 = vmatpush1.msra.mxu0 0.0
        %1419 = vmatprep.subr.mxu0 0.0
        %v1420 = vand.u32 %v340, 4294901760
        %1421 = vmatpush1.msra.mxu0 %v1420
        %1422 = vmatprep.subr.mxu0 0.0
        %v1423 = vand.u32 %v339, 4294901760
        %1424 = vmatpush1.msra.mxu0 %v1423
        %1425 = vmatprep.subr.mxu0 0.0
        %v1426 = vand.u32 %v338, 4294901760
        %1427 = vmatpush1.msra.mxu0 %v1426
        %1428 = vmatprep.subr.mxu0 0.0
        %1429 = vmatpush2.msra.mxu0 0.0
        %1430 = vmatprep.subr.mxu0 0.0
        %1431 = vmatpush2.msra.mxu0 0.0
        %1432 = vmatprep.subr.mxu0 0.0
        %1433 = vmatpush2.msra.mxu0 0.0
        %1434 = vmatprep.subr.mxu0 0.0
        %1435 = vmatpush2.msra.mxu0 0.0
        %1436 = vmatprep.subr.mxu0 0.0
        %1437 = vmatpush2.msra.mxu0 0.0
        %1438 = vmatprep.subr.mxu0 0.0
        %1439 = vmatpush2.msra.mxu0 0.0
        %1440 = vmatprep.subr.mxu0 0.0
        %1441 = vmatpush2.msra.mxu0 0.0
        %1442 = vmatprep.subr.mxu0 0.0
        %1443 = vmatpush2.msra.mxu0 0.0
        %1444 = vmatprep.subr.mxu0 0.0
        %1445 = vmatpush2.msra.mxu0 0.0
        %1446 = vmatprep.subr.mxu0 0.0
        %1447 = vmatpush2.msra.mxu0 0.0
        %1448 = vmatprep.subr.mxu0 0.0
        %1449 = vmatpush2.msra.mxu0 0.0
        %1450 = vmatprep.subr.mxu0 0.0
        %1451 = vmatpush2.msra.mxu0 0.0
        %1452 = vmatprep.subr.mxu0 0.0
        %1453 = vmatpush2.msra.mxu0 0.0
        %1454 = vmatprep.subr.mxu0 0.0
        %1455 = vmatpush2.msra.mxu0 0.0
        %1456 = vmatprep.subr.mxu0 0.0
        %1457 = vmatpush2.msra.mxu0 0.0
        %1458 = vmatprep.subr.mxu0 0.0
        %1459 = vmatpush2.msra.mxu0 0.0
        %1460 = vmatprep.mubr.f32.mxu0 0.0
        %v1461 = vand.u32 %v343, 4294901760
        %v1462 = vsub.f32 %v343, %v1461
        %v1463 = vand.u32 %v1462, 4294901760
        %1464 = vmatmul.mubr.f32.gmra.mxu0 %v1463
        %v1465 = vpop.f32.mrf.mxu0
        %v1466 = vadd.f32 %v1173, %v1465
        %v1467 = vpop.f32.mrf.mxu0
        %1468 = vmatprep.mubr.f32.mxu0 0.0
        %v1469 = vand.u32 %v346, 4294901760
        %v1470 = vsub.f32 %v346, %v1469
        %v1471 = vand.u32 %v1470, 4294901760
        %1472 = vmatmul.mubr.f32.gmra.mxu0 %v1471
        %v1473 = vpop.f32.mrf.mxu0
        %v1474 = vadd.f32 %v1180, %v1473
        %v1475 = vpop.f32.mrf.mxu0
        %1476 = vmatprep.mubr.f32.mxu0 0.0
        %v1477 = vand.u32 %v349, 4294901760
        %v1478 = vsub.f32 %v349, %v1477
        %v1479 = vand.u32 %v1478, 4294901760
        %1480 = vmatmul.mubr.f32.gmra.mxu0 %v1479
        %v1481 = vpop.f32.mrf.mxu0
        %v1482 = vadd.f32 %v1187, %v1481
        %v1483 = vpop.f32.mrf.mxu0
        %1484 = vmatprep.mubr.f32.mxu0 0.0
        %v1485 = vand.u32 %v352, 4294901760
        %v1486 = vsub.f32 %v352, %v1485
        %v1487 = vand.u32 %v1486, 4294901760
        %1488 = vmatmul.mubr.f32.gmra.mxu0 %v1487
        %v1489 = vpop.f32.mrf.mxu0
        %v1490 = vadd.f32 %v1194, %v1489
        %v1491 = vpop.f32.mrf.mxu0
        %1492 = vmatprep.mubr.f32.mxu0 0.0
        %v1493 = vand.u32 %v355, 4294901760
        %v1494 = vsub.f32 %v355, %v1493
        %v1495 = vand.u32 %v1494, 4294901760
        %1496 = vmatmul.mubr.f32.gmra.mxu0 %v1495
        %v1497 = vpop.f32.mrf.mxu0
        %v1498 = vadd.f32 %v1201, %v1497
        %v1499 = vpop.f32.mrf.mxu0
        %1500 = vmatprep.mubr.f32.mxu0 0.0
        %v1501 = vand.u32 %v358, 4294901760
        %v1502 = vsub.f32 %v358, %v1501
        %v1503 = vand.u32 %v1502, 4294901760
        %1504 = vmatmul.mubr.f32.gmra.mxu0 %v1503
        %v1505 = vpop.f32.mrf.mxu0
        %v1506 = vadd.f32 %v1208, %v1505
        %v1507 = vpop.f32.mrf.mxu0
        %1508 = vmatprep.mubr.f32.mxu0 0.0
        %v1509 = vand.u32 %v361, 4294901760
        %v1510 = vsub.f32 %v361, %v1509
        %v1511 = vand.u32 %v1510, 4294901760
        %1512 = vmatmul.mubr.f32.gmra.mxu0 %v1511
        %v1513 = vpop.f32.mrf.mxu0
        %v1514 = vadd.f32 %v1215, %v1513
        %v1515 = vpop.f32.mrf.mxu0
        %1516 = vmatprep.mubr.f32.mxu0 0.0
        %v1517 = vand.u32 %v364, 4294901760
        %v1518 = vsub.f32 %v364, %v1517
        %v1519 = vand.u32 %v1518, 4294901760
        %1520 = vmatmul.mubr.f32.gmra.mxu0 %v1519
        %v1521 = vpop.f32.mrf.mxu0
        %v1522 = vadd.f32 %v1222, %v1521
        %v1523 = vpop.f32.mrf.mxu0
        %1524 = vmatprep.mubr.f32.mxu0 0.0
        %v1525 = vand.u32 %v367, 4294901760
        %v1526 = vsub.f32 %v367, %v1525
        %v1527 = vand.u32 %v1526, 4294901760
        %1528 = vmatmul.mubr.f32.gmra.mxu0 %v1527
        %v1529 = vpop.f32.mrf.mxu0
        %v1530 = vadd.f32 %v1229, %v1529
        %v1531 = vpop.f32.mrf.mxu0
        %1532 = vmatprep.mubr.f32.mxu0 0.0
        %v1533 = vand.u32 %v370, 4294901760
        %v1534 = vsub.f32 %v370, %v1533
        %v1535 = vand.u32 %v1534, 4294901760
        %1536 = vmatmul.mubr.f32.gmra.mxu0 %v1535
        %v1537 = vpop.f32.mrf.mxu0
        %v1538 = vadd.f32 %v1236, %v1537
        %v1539 = vpop.f32.mrf.mxu0
        %1540 = vmatprep.mubr.f32.mxu0 0.0
        %v1541 = vand.u32 %v373, 4294901760
        %v1542 = vsub.f32 %v373, %v1541
        %v1543 = vand.u32 %v1542, 4294901760
        %1544 = vmatmul.mubr.f32.gmra.mxu0 %v1543
        %v1545 = vpop.f32.mrf.mxu0
        %v1546 = vadd.f32 %v1243, %v1545
        %v1547 = vpop.f32.mrf.mxu0
        %1548 = vmatprep.mubr.f32.mxu0 0.0
        %v1549 = vand.u32 %v376, 4294901760
        %v1550 = vsub.f32 %v376, %v1549
        %v1551 = vand.u32 %v1550, 4294901760
        %1552 = vmatmul.mubr.f32.gmra.mxu0 %v1551
        %v1553 = vpop.f32.mrf.mxu0
        %v1554 = vadd.f32 %v1250, %v1553
        %v1555 = vpop.f32.mrf.mxu0
        %1556 = vmatprep.mubr.f32.mxu0 0.0
        %v1557 = vand.u32 %v379, 4294901760
        %v1558 = vsub.f32 %v379, %v1557
        %v1559 = vand.u32 %v1558, 4294901760
        %1560 = vmatmul.mubr.f32.gmra.mxu0 %v1559
        %v1561 = vpop.f32.mrf.mxu0
        %v1562 = vadd.f32 %v1257, %v1561
        %v1563 = vpop.f32.mrf.mxu0
        %1564 = vmatprep.mubr.f32.mxu0 0.0
        %v1565 = vand.u32 %v382, 4294901760
        %v1566 = vsub.f32 %v382, %v1565
        %v1567 = vand.u32 %v1566, 4294901760
        %1568 = vmatmul.mubr.f32.gmra.mxu0 %v1567
        %v1569 = vpop.f32.mrf.mxu0
        %v1570 = vadd.f32 %v1264, %v1569
        %v1571 = vpop.f32.mrf.mxu0
        %1572 = vmatprep.mubr.f32.mxu0 0.0
        %v1573 = vand.u32 %v385, 4294901760
        %v1574 = vsub.f32 %v385, %v1573
        %v1575 = vand.u32 %v1574, 4294901760
        %1576 = vmatmul.mubr.f32.gmra.mxu0 %v1575
        %v1577 = vpop.f32.mrf.mxu0
        %v1578 = vadd.f32 %v1271, %v1577
        %v1579 = vpop.f32.mrf.mxu0
        %1580 = vmatprep.mubr.f32.mxu0 0.0
        %v1581 = vand.u32 %v388, 4294901760
        %v1582 = vsub.f32 %v388, %v1581
        %v1583 = vand.u32 %v1582, 4294901760
        %1584 = vmatmul.mubr.f32.gmra.mxu0 %v1583
        %v1585 = vpop.f32.mrf.mxu0
        %v1586 = vadd.f32 %v1278, %v1585
        %v1587 = vpop.f32.mrf.mxu0
        %1588 = vmatprep.mubr.f32.mxu0 0.0
        %v1589 = vand.u32 %v391, 4294901760
        %v1590 = vsub.f32 %v391, %v1589
        %v1591 = vand.u32 %v1590, 4294901760
        %1592 = vmatmul.mubr.f32.gmra.mxu0 %v1591
        %v1593 = vpop.f32.mrf.mxu0
        %v1594 = vadd.f32 %v1285, %v1593
        %v1595 = vpop.f32.mrf.mxu0
        %1596 = vmatprep.mubr.f32.mxu0 0.0
        %v1597 = vand.u32 %v394, 4294901760
        %v1598 = vsub.f32 %v394, %v1597
        %v1599 = vand.u32 %v1598, 4294901760
        %1600 = vmatmul.mubr.f32.gmra.mxu0 %v1599
        %v1601 = vpop.f32.mrf.mxu0
        %v1602 = vadd.f32 %v1292, %v1601
        %v1603 = vpop.f32.mrf.mxu0
        %1604 = vmatprep.mubr.f32.mxu0 0.0
        %v1605 = vand.u32 %v397, 4294901760
        %v1606 = vsub.f32 %v397, %v1605
        %v1607 = vand.u32 %v1606, 4294901760
        %1608 = vmatmul.mubr.f32.gmra.mxu0 %v1607
        %v1609 = vpop.f32.mrf.mxu0
        %v1610 = vadd.f32 %v1299, %v1609
        %v1611 = vpop.f32.mrf.mxu0
        %1612 = vmatprep.mubr.f32.mxu0 0.0
        %v1613 = vand.u32 %v400, 4294901760
        %v1614 = vsub.f32 %v400, %v1613
        %v1615 = vand.u32 %v1614, 4294901760
        %1616 = vmatmul.mubr.f32.gmra.mxu0 %v1615
        %v1617 = vpop.f32.mrf.mxu0
        %v1618 = vadd.f32 %v1306, %v1617
        %v1619 = vpop.f32.mrf.mxu0
        %1620 = vmatprep.mubr.f32.mxu0 0.0
        %v1621 = vand.u32 %v403, 4294901760
        %v1622 = vsub.f32 %v403, %v1621
        %v1623 = vand.u32 %v1622, 4294901760
        %1624 = vmatmul.mubr.f32.gmra.mxu0 %v1623
        %v1625 = vpop.f32.mrf.mxu0
        %v1626 = vadd.f32 %v1313, %v1625
        %v1627 = vpop.f32.mrf.mxu0
        %1628 = vmatprep.mubr.f32.mxu0 0.0
        %v1629 = vand.u32 %v406, 4294901760
        %v1630 = vsub.f32 %v406, %v1629
        %v1631 = vand.u32 %v1630, 4294901760
        %1632 = vmatmul.mubr.f32.gmra.mxu0 %v1631
        %v1633 = vpop.f32.mrf.mxu0
        %v1634 = vadd.f32 %v1320, %v1633
        %v1635 = vpop.f32.mrf.mxu0
        %1636 = vmatprep.mubr.f32.mxu0 0.0
        %v1637 = vand.u32 %v409, 4294901760
        %v1638 = vsub.f32 %v409, %v1637
        %v1639 = vand.u32 %v1638, 4294901760
        %1640 = vmatmul.mubr.f32.gmra.mxu0 %v1639
        %v1641 = vpop.f32.mrf.mxu0
        %v1642 = vadd.f32 %v1327, %v1641
        %v1643 = vpop.f32.mrf.mxu0
        %1644 = vmatprep.mubr.f32.mxu0 0.0
        %v1645 = vand.u32 %v412, 4294901760
        %v1646 = vsub.f32 %v412, %v1645
        %v1647 = vand.u32 %v1646, 4294901760
        %1648 = vmatmul.mubr.f32.gmra.mxu0 %v1647
        %v1649 = vpop.f32.mrf.mxu0
        %v1650 = vadd.f32 %v1334, %v1649
        %v1651 = vpop.f32.mrf.mxu0
        %1652 = vmatprep.mubr.f32.mxu0 0.0
        %v1653 = vand.u32 %v415, 4294901760
        %v1654 = vsub.f32 %v415, %v1653
        %v1655 = vand.u32 %v1654, 4294901760
        %1656 = vmatmul.mubr.f32.gmra.mxu0 %v1655
        %v1657 = vpop.f32.mrf.mxu0
        %v1658 = vadd.f32 %v1341, %v1657
        %v1659 = vpop.f32.mrf.mxu0
        %1660 = vmatprep.mubr.f32.mxu0 0.0
        %v1661 = vand.u32 %v418, 4294901760
        %v1662 = vsub.f32 %v418, %v1661
        %v1663 = vand.u32 %v1662, 4294901760
        %1664 = vmatmul.mubr.f32.gmra.mxu0 %v1663
        %v1665 = vpop.f32.mrf.mxu0
        %v1666 = vadd.f32 %v1348, %v1665
        %v1667 = vpop.f32.mrf.mxu0
        %1668 = vmatprep.mubr.f32.mxu0 0.0
        %v1669 = vand.u32 %v421, 4294901760
        %v1670 = vsub.f32 %v421, %v1669
        %v1671 = vand.u32 %v1670, 4294901760
        %1672 = vmatmul.mubr.f32.gmra.mxu0 %v1671
        %v1673 = vpop.f32.mrf.mxu0
        %v1674 = vadd.f32 %v1355, %v1673
        %v1675 = vpop.f32.mrf.mxu0
        %1676 = vmatprep.mubr.f32.mxu0 0.0
        %v1677 = vand.u32 %v424, 4294901760
        %v1678 = vsub.f32 %v424, %v1677
        %v1679 = vand.u32 %v1678, 4294901760
        %1680 = vmatmul.mubr.f32.gmra.mxu0 %v1679
        %v1681 = vpop.f32.mrf.mxu0
        %v1682 = vadd.f32 %v1362, %v1681
        %v1683 = vpop.f32.mrf.mxu0
        %1684 = vmatprep.mubr.f32.mxu0 0.0
        %v1685 = vand.u32 %v427, 4294901760
        %v1686 = vsub.f32 %v427, %v1685
        %v1687 = vand.u32 %v1686, 4294901760
        %1688 = vmatmul.mubr.f32.gmra.mxu0 %v1687
        %v1689 = vpop.f32.mrf.mxu0
        %v1690 = vadd.f32 %v1369, %v1689
        %v1691 = vpop.f32.mrf.mxu0
        %1692 = vmatprep.mubr.f32.mxu0 0.0
        %v1693 = vand.u32 %v430, 4294901760
        %v1694 = vsub.f32 %v430, %v1693
        %v1695 = vand.u32 %v1694, 4294901760
        %1696 = vmatmul.mubr.f32.gmra.mxu0 %v1695
        %v1697 = vpop.f32.mrf.mxu0
        %v1698 = vadd.f32 %v1376, %v1697
        %v1699 = vpop.f32.mrf.mxu0
        %1700 = vmatprep.mubr.f32.mxu0 0.0
        %v1701 = vand.u32 %v433, 4294901760
        %v1702 = vsub.f32 %v433, %v1701
        %v1703 = vand.u32 %v1702, 4294901760
        %1704 = vmatmul.mubr.f32.gmra.mxu0 %v1703
        %v1705 = vpop.f32.mrf.mxu0
        %v1706 = vadd.f32 %v1383, %v1705
        %v1707 = vpop.f32.mrf.mxu0
        %1708 = vmatprep.mubr.f32.mxu0 0.0
        %v1709 = vand.u32 %v436, 4294901760
        %v1710 = vsub.f32 %v436, %v1709
        %v1711 = vand.u32 %v1710, 4294901760
        %1712 = vmatmul.mubr.f32.gmra.mxu0 %v1711
        %v1713 = vpop.f32.mrf.mxu0
        %v1714 = vadd.f32 %v1390, %v1713
        %v1715 = vpop.f32.mrf.mxu0
        %1716 = vdwg.mxu0
        %1717 = vmatprep.subr.mxu0 0.0
        %1718 = vmatpush1.msra.mxu0 0.0
        %1719 = vmatprep.subr.mxu0 0.0
        %1720 = vmatpush1.msra.mxu0 0.0
        %1721 = vmatprep.subr.mxu0 0.0
        %1722 = vmatpush1.msra.mxu0 0.0
        %1723 = vmatprep.subr.mxu0 0.0
        %1724 = vmatpush1.msra.mxu0 0.0
        %1725 = vmatprep.subr.mxu0 0.0
        %1726 = vmatpush1.msra.mxu0 0.0
        %1727 = vmatprep.subr.mxu0 0.0
        %1728 = vmatpush1.msra.mxu0 0.0
        %1729 = vmatprep.subr.mxu0 0.0
        %1730 = vmatpush1.msra.mxu0 0.0
        %1731 = vmatprep.subr.mxu0 0.0
        %1732 = vmatpush1.msra.mxu0 0.0
        %1733 = vmatprep.subr.mxu0 0.0
        %1734 = vmatpush1.msra.mxu0 0.0
        %1735 = vmatprep.subr.mxu0 0.0
        %1736 = vmatpush1.msra.mxu0 0.0
        %1737 = vmatprep.subr.mxu0 0.0
        %1738 = vmatpush1.msra.mxu0 0.0
        %1739 = vmatprep.subr.mxu0 0.0
        %1740 = vmatpush1.msra.mxu0 0.0
        %1741 = vmatprep.subr.mxu0 0.0
        %1742 = vmatpush1.msra.mxu0 0.0
        %1743 = vmatprep.subr.mxu0 0.0
        %v1744 = vand.u32 %v340, 4294901760
        %v1745 = vsub.f32 %v340, %v1744
        %v1746 = vand.u32 %v1745, 4294901760
        %1747 = vmatpush1.msra.mxu0 %v1746
        %1748 = vmatprep.subr.mxu0 0.0
        %v1749 = vand.u32 %v339, 4294901760
        %v1750 = vsub.f32 %v339, %v1749
        %v1751 = vand.u32 %v1750, 4294901760
        %1752 = vmatpush1.msra.mxu0 %v1751
        %1753 = vmatprep.subr.mxu0 0.0
        %v1754 = vand.u32 %v338, 4294901760
        %v1755 = vsub.f32 %v338, %v1754
        %v1756 = vand.u32 %v1755, 4294901760
        %1757 = vmatpush1.msra.mxu0 %v1756
        %1758 = vmatprep.subr.mxu0 0.0
        %1759 = vmatpush2.msra.mxu0 0.0
        %1760 = vmatprep.subr.mxu0 0.0
        %1761 = vmatpush2.msra.mxu0 0.0
        %1762 = vmatprep.subr.mxu0 0.0
        %1763 = vmatpush2.msra.mxu0 0.0
        %1764 = vmatprep.subr.mxu0 0.0
        %1765 = vmatpush2.msra.mxu0 0.0
        %1766 = vmatprep.subr.mxu0 0.0
        %1767 = vmatpush2.msra.mxu0 0.0
        %1768 = vmatprep.subr.mxu0 0.0
        %1769 = vmatpush2.msra.mxu0 0.0
        %1770 = vmatprep.subr.mxu0 0.0
        %1771 = vmatpush2.msra.mxu0 0.0
        %1772 = vmatprep.subr.mxu0 0.0
        %1773 = vmatpush2.msra.mxu0 0.0
        %1774 = vmatprep.subr.mxu0 0.0
        %1775 = vmatpush2.msra.mxu0 0.0
        %1776 = vmatprep.subr.mxu0 0.0
        %1777 = vmatpush2.msra.mxu0 0.0
        %1778 = vmatprep.subr.mxu0 0.0
        %1779 = vmatpush2.msra.mxu0 0.0
        %1780 = vmatprep.subr.mxu0 0.0
        %1781 = vmatpush2.msra.mxu0 0.0
        %1782 = vmatprep.subr.mxu0 0.0
        %1783 = vmatpush2.msra.mxu0 0.0
        %1784 = vmatprep.subr.mxu0 0.0
        %1785 = vmatpush2.msra.mxu0 0.0
        %1786 = vmatprep.subr.mxu0 0.0
        %1787 = vmatpush2.msra.mxu0 0.0
        %1788 = vmatprep.subr.mxu0 0.0
        %1789 = vmatpush2.msra.mxu0 0.0
        %1790 = vmatprep.mubr.f32.mxu0 0.0
        %v1791 = vand.u32 %v343, 4294901760
        %1792 = vmatmul.mubr.f32.gmra.mxu0 %v1791
        %v1793 = vpop.f32.mrf.mxu0
        %v1794 = vadd.f32 %v1466, %v1793
        %v1795 = vpop.f32.mrf.mxu0
        %1796 = vmatprep.mubr.f32.mxu0 0.0
        %v1797 = vand.u32 %v346, 4294901760
        %1798 = vmatmul.mubr.f32.gmra.mxu0 %v1797
        %v1799 = vpop.f32.mrf.mxu0
        %v1800 = vadd.f32 %v1474, %v1799
        %v1801 = vpop.f32.mrf.mxu0
        %1802 = vmatprep.mubr.f32.mxu0 0.0
        %v1803 = vand.u32 %v349, 4294901760
        %1804 = vmatmul.mubr.f32.gmra.mxu0 %v1803
        %v1805 = vpop.f32.mrf.mxu0
        %v1806 = vadd.f32 %v1482, %v1805
        %v1807 = vpop.f32.mrf.mxu0
        %1808 = vmatprep.mubr.f32.mxu0 0.0
        %v1809 = vand.u32 %v352, 4294901760
        %1810 = vmatmul.mubr.f32.gmra.mxu0 %v1809
        %v1811 = vpop.f32.mrf.mxu0
        %v1812 = vadd.f32 %v1490, %v1811
        %v1813 = vpop.f32.mrf.mxu0
        %1814 = vmatprep.mubr.f32.mxu0 0.0
        %v1815 = vand.u32 %v355, 4294901760
        %1816 = vmatmul.mubr.f32.gmra.mxu0 %v1815
        %v1817 = vpop.f32.mrf.mxu0
        %v1818 = vadd.f32 %v1498, %v1817
        %v1819 = vpop.f32.mrf.mxu0
        %1820 = vmatprep.mubr.f32.mxu0 0.0
        %v1821 = vand.u32 %v358, 4294901760
        %1822 = vmatmul.mubr.f32.gmra.mxu0 %v1821
        %v1823 = vpop.f32.mrf.mxu0
        %v1824 = vadd.f32 %v1506, %v1823
        %v1825 = vpop.f32.mrf.mxu0
        %1826 = vmatprep.mubr.f32.mxu0 0.0
        %v1827 = vand.u32 %v361, 4294901760
        %1828 = vmatmul.mubr.f32.gmra.mxu0 %v1827
        %v1829 = vpop.f32.mrf.mxu0
        %v1830 = vadd.f32 %v1514, %v1829
        %v1831 = vpop.f32.mrf.mxu0
        %1832 = vmatprep.mubr.f32.mxu0 0.0
        %v1833 = vand.u32 %v364, 4294901760
        %1834 = vmatmul.mubr.f32.gmra.mxu0 %v1833
        %v1835 = vpop.f32.mrf.mxu0
        %v1836 = vadd.f32 %v1522, %v1835
        %v1837 = vpop.f32.mrf.mxu0
        %1838 = vmatprep.mubr.f32.mxu0 0.0
        %v1839 = vand.u32 %v367, 4294901760
        %1840 = vmatmul.mubr.f32.gmra.mxu0 %v1839
        %v1841 = vpop.f32.mrf.mxu0
        %v1842 = vadd.f32 %v1530, %v1841
        %v1843 = vpop.f32.mrf.mxu0
        %1844 = vmatprep.mubr.f32.mxu0 0.0
        %v1845 = vand.u32 %v370, 4294901760
        %1846 = vmatmul.mubr.f32.gmra.mxu0 %v1845
        %v1847 = vpop.f32.mrf.mxu0
        %v1848 = vadd.f32 %v1538, %v1847
        %v1849 = vpop.f32.mrf.mxu0
        %1850 = vmatprep.mubr.f32.mxu0 0.0
        %v1851 = vand.u32 %v373, 4294901760
        %1852 = vmatmul.mubr.f32.gmra.mxu0 %v1851
        %v1853 = vpop.f32.mrf.mxu0
        %v1854 = vadd.f32 %v1546, %v1853
        %v1855 = vpop.f32.mrf.mxu0
        %1856 = vmatprep.mubr.f32.mxu0 0.0
        %v1857 = vand.u32 %v376, 4294901760
        %1858 = vmatmul.mubr.f32.gmra.mxu0 %v1857
        %v1859 = vpop.f32.mrf.mxu0
        %v1860 = vadd.f32 %v1554, %v1859
        %v1861 = vpop.f32.mrf.mxu0
        %1862 = vmatprep.mubr.f32.mxu0 0.0
        %v1863 = vand.u32 %v379, 4294901760
        %1864 = vmatmul.mubr.f32.gmra.mxu0 %v1863
        %v1865 = vpop.f32.mrf.mxu0
        %v1866 = vadd.f32 %v1562, %v1865
        %v1867 = vpop.f32.mrf.mxu0
        %1868 = vmatprep.mubr.f32.mxu0 0.0
        %v1869 = vand.u32 %v382, 4294901760
        %1870 = vmatmul.mubr.f32.gmra.mxu0 %v1869
        %v1871 = vpop.f32.mrf.mxu0
        %v1872 = vadd.f32 %v1570, %v1871
        %v1873 = vpop.f32.mrf.mxu0
        %1874 = vmatprep.mubr.f32.mxu0 0.0
        %v1875 = vand.u32 %v385, 4294901760
        %1876 = vmatmul.mubr.f32.gmra.mxu0 %v1875
        %v1877 = vpop.f32.mrf.mxu0
        %v1878 = vadd.f32 %v1578, %v1877
        %v1879 = vpop.f32.mrf.mxu0
        %1880 = vmatprep.mubr.f32.mxu0 0.0
        %v1881 = vand.u32 %v388, 4294901760
        %1882 = vmatmul.mubr.f32.gmra.mxu0 %v1881
        %v1883 = vpop.f32.mrf.mxu0
        %v1884 = vadd.f32 %v1586, %v1883
        %v1885 = vpop.f32.mrf.mxu0
        %1886 = vmatprep.mubr.f32.mxu0 0.0
        %v1887 = vand.u32 %v391, 4294901760
        %1888 = vmatmul.mubr.f32.gmra.mxu0 %v1887
        %v1889 = vpop.f32.mrf.mxu0
        %v1890 = vadd.f32 %v1594, %v1889
        %v1891 = vpop.f32.mrf.mxu0
        %1892 = vmatprep.mubr.f32.mxu0 0.0
        %v1893 = vand.u32 %v394, 4294901760
        %1894 = vmatmul.mubr.f32.gmra.mxu0 %v1893
        %v1895 = vpop.f32.mrf.mxu0
        %v1896 = vadd.f32 %v1602, %v1895
        %v1897 = vpop.f32.mrf.mxu0
        %1898 = vmatprep.mubr.f32.mxu0 0.0
        %v1899 = vand.u32 %v397, 4294901760
        %1900 = vmatmul.mubr.f32.gmra.mxu0 %v1899
        %v1901 = vpop.f32.mrf.mxu0
        %v1902 = vadd.f32 %v1610, %v1901
        %v1903 = vpop.f32.mrf.mxu0
        %1904 = vmatprep.mubr.f32.mxu0 0.0
        %v1905 = vand.u32 %v400, 4294901760
        %1906 = vmatmul.mubr.f32.gmra.mxu0 %v1905
        %v1907 = vpop.f32.mrf.mxu0
        %v1908 = vadd.f32 %v1618, %v1907
        %v1909 = vpop.f32.mrf.mxu0
        %1910 = vmatprep.mubr.f32.mxu0 0.0
        %v1911 = vand.u32 %v403, 4294901760
        %1912 = vmatmul.mubr.f32.gmra.mxu0 %v1911
        %v1913 = vpop.f32.mrf.mxu0
        %v1914 = vadd.f32 %v1626, %v1913
        %v1915 = vpop.f32.mrf.mxu0
        %1916 = vmatprep.mubr.f32.mxu0 0.0
        %v1917 = vand.u32 %v406, 4294901760
        %1918 = vmatmul.mubr.f32.gmra.mxu0 %v1917
        %v1919 = vpop.f32.mrf.mxu0
        %v1920 = vadd.f32 %v1634, %v1919
        %v1921 = vpop.f32.mrf.mxu0
        %1922 = vmatprep.mubr.f32.mxu0 0.0
        %v1923 = vand.u32 %v409, 4294901760
        %1924 = vmatmul.mubr.f32.gmra.mxu0 %v1923
        %v1925 = vpop.f32.mrf.mxu0
        %v1926 = vadd.f32 %v1642, %v1925
        %v1927 = vpop.f32.mrf.mxu0
        %1928 = vmatprep.mubr.f32.mxu0 0.0
        %v1929 = vand.u32 %v412, 4294901760
        %1930 = vmatmul.mubr.f32.gmra.mxu0 %v1929
        %v1931 = vpop.f32.mrf.mxu0
        %v1932 = vadd.f32 %v1650, %v1931
        %v1933 = vpop.f32.mrf.mxu0
        %1934 = vmatprep.mubr.f32.mxu0 0.0
        %v1935 = vand.u32 %v415, 4294901760
        %1936 = vmatmul.mubr.f32.gmra.mxu0 %v1935
        %v1937 = vpop.f32.mrf.mxu0
        %v1938 = vadd.f32 %v1658, %v1937
        %v1939 = vpop.f32.mrf.mxu0
        %1940 = vmatprep.mubr.f32.mxu0 0.0
        %v1941 = vand.u32 %v418, 4294901760
        %1942 = vmatmul.mubr.f32.gmra.mxu0 %v1941
        %v1943 = vpop.f32.mrf.mxu0
        %v1944 = vadd.f32 %v1666, %v1943
        %v1945 = vpop.f32.mrf.mxu0
        %1946 = vmatprep.mubr.f32.mxu0 0.0
        %v1947 = vand.u32 %v421, 4294901760
        %1948 = vmatmul.mubr.f32.gmra.mxu0 %v1947
        %v1949 = vpop.f32.mrf.mxu0
        %v1950 = vadd.f32 %v1674, %v1949
        %v1951 = vpop.f32.mrf.mxu0
        %1952 = vmatprep.mubr.f32.mxu0 0.0
        %v1953 = vand.u32 %v424, 4294901760
        %1954 = vmatmul.mubr.f32.gmra.mxu0 %v1953
        %v1955 = vpop.f32.mrf.mxu0
        %v1956 = vadd.f32 %v1682, %v1955
        %v1957 = vpop.f32.mrf.mxu0
        %1958 = vmatprep.mubr.f32.mxu0 0.0
        %v1959 = vand.u32 %v427, 4294901760
        %1960 = vmatmul.mubr.f32.gmra.mxu0 %v1959
        %v1961 = vpop.f32.mrf.mxu0
        %v1962 = vadd.f32 %v1690, %v1961
        %v1963 = vpop.f32.mrf.mxu0
        %1964 = vmatprep.mubr.f32.mxu0 0.0
        %v1965 = vand.u32 %v430, 4294901760
        %1966 = vmatmul.mubr.f32.gmra.mxu0 %v1965
        %v1967 = vpop.f32.mrf.mxu0
        %v1968 = vadd.f32 %v1698, %v1967
        %v1969 = vpop.f32.mrf.mxu0
        %1970 = vmatprep.mubr.f32.mxu0 0.0
        %v1971 = vand.u32 %v433, 4294901760
        %1972 = vmatmul.mubr.f32.gmra.mxu0 %v1971
        %v1973 = vpop.f32.mrf.mxu0
        %v1974 = vadd.f32 %v1706, %v1973
        %v1975 = vpop.f32.mrf.mxu0
        %1976 = vmatprep.mubr.f32.mxu0 0.0
        %v1977 = vand.u32 %v436, 4294901760
        %1978 = vmatmul.mubr.f32.gmra.mxu0 %v1977
        %v1979 = vpop.f32.mrf.mxu0
        %v1980 = vadd.f32 %v1714, %v1979
        %v1981 = vpop.f32.mrf.mxu0
        %1982 = vdwg.mxu0
        %1983 = vmatprep.subr.mxu0 0.0
        %1984 = vmatpush1.msra.mxu0 0.0
        %1985 = vmatprep.subr.mxu0 0.0
        %1986 = vmatpush1.msra.mxu0 0.0
        %1987 = vmatprep.subr.mxu0 0.0
        %1988 = vmatpush1.msra.mxu0 0.0
        %1989 = vmatprep.subr.mxu0 0.0
        %1990 = vmatpush1.msra.mxu0 0.0
        %1991 = vmatprep.subr.mxu0 0.0
        %1992 = vmatpush1.msra.mxu0 0.0
        %1993 = vmatprep.subr.mxu0 0.0
        %1994 = vmatpush1.msra.mxu0 0.0
        %1995 = vmatprep.subr.mxu0 0.0
        %1996 = vmatpush1.msra.mxu0 0.0
        %1997 = vmatprep.subr.mxu0 0.0
        %1998 = vmatpush1.msra.mxu0 0.0
        %1999 = vmatprep.subr.mxu0 0.0
        %2000 = vmatpush1.msra.mxu0 0.0
        %2001 = vmatprep.subr.mxu0 0.0
        %2002 = vmatpush1.msra.mxu0 0.0
        %2003 = vmatprep.subr.mxu0 0.0
        %2004 = vmatpush1.msra.mxu0 0.0
        %2005 = vmatprep.subr.mxu0 0.0
        %2006 = vmatpush1.msra.mxu0 0.0
        %2007 = vmatprep.subr.mxu0 0.0
        %2008 = vmatpush1.msra.mxu0 0.0
        %2009 = vmatprep.subr.mxu0 0.0
        %v2010 = vand.u32 %v340, 4294901760
        %2011 = vmatpush1.msra.mxu0 %v2010
        %2012 = vmatprep.subr.mxu0 0.0
        %v2013 = vand.u32 %v339, 4294901760
        %2014 = vmatpush1.msra.mxu0 %v2013
        %2015 = vmatprep.subr.mxu0 0.0
        %v2016 = vand.u32 %v338, 4294901760
        %2017 = vmatpush1.msra.mxu0 %v2016
        %2018 = vmatprep.subr.mxu0 0.0
        %2019 = vmatpush2.msra.mxu0 0.0
        %2020 = vmatprep.subr.mxu0 0.0
        %2021 = vmatpush2.msra.mxu0 0.0
        %2022 = vmatprep.subr.mxu0 0.0
        %2023 = vmatpush2.msra.mxu0 0.0
        %2024 = vmatprep.subr.mxu0 0.0
        %2025 = vmatpush2.msra.mxu0 0.0
        %2026 = vmatprep.subr.mxu0 0.0
        %2027 = vmatpush2.msra.mxu0 0.0
        %2028 = vmatprep.subr.mxu0 0.0
        %2029 = vmatpush2.msra.mxu0 0.0
        %2030 = vmatprep.subr.mxu0 0.0
        %2031 = vmatpush2.msra.mxu0 0.0
        %2032 = vmatprep.subr.mxu0 0.0
        %2033 = vmatpush2.msra.mxu0 0.0
        %2034 = vmatprep.subr.mxu0 0.0
        %2035 = vmatpush2.msra.mxu0 0.0
        %2036 = vmatprep.subr.mxu0 0.0
        %2037 = vmatpush2.msra.mxu0 0.0
        %2038 = vmatprep.subr.mxu0 0.0
        %2039 = vmatpush2.msra.mxu0 0.0
        %2040 = vmatprep.subr.mxu0 0.0
        %2041 = vmatpush2.msra.mxu0 0.0
        %2042 = vmatprep.subr.mxu0 0.0
        %2043 = vmatpush2.msra.mxu0 0.0
        %2044 = vmatprep.subr.mxu0 0.0
        %2045 = vmatpush2.msra.mxu0 0.0
        %2046 = vmatprep.subr.mxu0 0.0
        %2047 = vmatpush2.msra.mxu0 0.0
        %2048 = vmatprep.subr.mxu0 0.0
        %2049 = vmatpush2.msra.mxu0 0.0
        %2050 = vmatprep.mubr.f32.mxu0 0.0
        %v2051 = vand.u32 %v343, 4294901760
        %2052 = vmatmul.mubr.f32.gmra.mxu0 %v2051
        %v2053 = vpop.f32.mrf.mxu0
        %v2054 = vadd.f32 %v1794, %v2053
        %v2055 = vpop.f32.mrf.mxu0
        %2056 = vmatprep.mubr.f32.mxu0 0.0
        %v2057 = vand.u32 %v346, 4294901760
        %2058 = vmatmul.mubr.f32.gmra.mxu0 %v2057
        %v2059 = vpop.f32.mrf.mxu0
        %v2060 = vadd.f32 %v1800, %v2059
        %v2061 = vpop.f32.mrf.mxu0
        %2062 = vmatprep.mubr.f32.mxu0 0.0
        %v2063 = vand.u32 %v349, 4294901760
        %2064 = vmatmul.mubr.f32.gmra.mxu0 %v2063
        %v2065 = vpop.f32.mrf.mxu0
        %v2066 = vadd.f32 %v1806, %v2065
        %v2067 = vpop.f32.mrf.mxu0
        %2068 = vmatprep.mubr.f32.mxu0 0.0
        %v2069 = vand.u32 %v352, 4294901760
        %2070 = vmatmul.mubr.f32.gmra.mxu0 %v2069
        %v2071 = vpop.f32.mrf.mxu0
        %v2072 = vadd.f32 %v1812, %v2071
        %v2073 = vpop.f32.mrf.mxu0
        %2074 = vmatprep.mubr.f32.mxu0 0.0
        %v2075 = vand.u32 %v355, 4294901760
        %2076 = vmatmul.mubr.f32.gmra.mxu0 %v2075
        %v2077 = vpop.f32.mrf.mxu0
        %v2078 = vadd.f32 %v1818, %v2077
        %v2079 = vpop.f32.mrf.mxu0
        %2080 = vmatprep.mubr.f32.mxu0 0.0
        %v2081 = vand.u32 %v358, 4294901760
        %2082 = vmatmul.mubr.f32.gmra.mxu0 %v2081
        %v2083 = vpop.f32.mrf.mxu0
        %v2084 = vadd.f32 %v1824, %v2083
        %v2085 = vpop.f32.mrf.mxu0
        %2086 = vmatprep.mubr.f32.mxu0 0.0
        %v2087 = vand.u32 %v361, 4294901760
        %2088 = vmatmul.mubr.f32.gmra.mxu0 %v2087
        %v2089 = vpop.f32.mrf.mxu0
        %v2090 = vadd.f32 %v1830, %v2089
        %v2091 = vpop.f32.mrf.mxu0
        %2092 = vmatprep.mubr.f32.mxu0 0.0
        %v2093 = vand.u32 %v364, 4294901760
        %2094 = vmatmul.mubr.f32.gmra.mxu0 %v2093
        %v2095 = vpop.f32.mrf.mxu0
        %v2096 = vadd.f32 %v1836, %v2095
        %v2097 = vpop.f32.mrf.mxu0
        %2098 = vmatprep.mubr.f32.mxu0 0.0
        %v2099 = vand.u32 %v367, 4294901760
        %2100 = vmatmul.mubr.f32.gmra.mxu0 %v2099
        %v2101 = vpop.f32.mrf.mxu0
        %v2102 = vadd.f32 %v1842, %v2101
        %v2103 = vpop.f32.mrf.mxu0
        %2104 = vmatprep.mubr.f32.mxu0 0.0
        %v2105 = vand.u32 %v370, 4294901760
        %2106 = vmatmul.mubr.f32.gmra.mxu0 %v2105
        %v2107 = vpop.f32.mrf.mxu0
        %v2108 = vadd.f32 %v1848, %v2107
        %v2109 = vpop.f32.mrf.mxu0
        %2110 = vmatprep.mubr.f32.mxu0 0.0
        %v2111 = vand.u32 %v373, 4294901760
        %2112 = vmatmul.mubr.f32.gmra.mxu0 %v2111
        %v2113 = vpop.f32.mrf.mxu0
        %v2114 = vadd.f32 %v1854, %v2113
        %v2115 = vpop.f32.mrf.mxu0
        %2116 = vmatprep.mubr.f32.mxu0 0.0
        %v2117 = vand.u32 %v376, 4294901760
        %2118 = vmatmul.mubr.f32.gmra.mxu0 %v2117
        %v2119 = vpop.f32.mrf.mxu0
        %v2120 = vadd.f32 %v1860, %v2119
        %v2121 = vpop.f32.mrf.mxu0
        %2122 = vmatprep.mubr.f32.mxu0 0.0
        %v2123 = vand.u32 %v379, 4294901760
        %2124 = vmatmul.mubr.f32.gmra.mxu0 %v2123
        %v2125 = vpop.f32.mrf.mxu0
        %v2126 = vadd.f32 %v1866, %v2125
        %v2127 = vpop.f32.mrf.mxu0
        %2128 = vmatprep.mubr.f32.mxu0 0.0
        %v2129 = vand.u32 %v382, 4294901760
        %2130 = vmatmul.mubr.f32.gmra.mxu0 %v2129
        %v2131 = vpop.f32.mrf.mxu0
        %v2132 = vadd.f32 %v1872, %v2131
        %v2133 = vpop.f32.mrf.mxu0
        %2134 = vmatprep.mubr.f32.mxu0 0.0
        %v2135 = vand.u32 %v385, 4294901760
        %2136 = vmatmul.mubr.f32.gmra.mxu0 %v2135
        %v2137 = vpop.f32.mrf.mxu0
        %v2138 = vadd.f32 %v1878, %v2137
        %v2139 = vpop.f32.mrf.mxu0
        %2140 = vmatprep.mubr.f32.mxu0 0.0
        %v2141 = vand.u32 %v388, 4294901760
        %2142 = vmatmul.mubr.f32.gmra.mxu0 %v2141
        %v2143 = vpop.f32.mrf.mxu0
        %v2144 = vadd.f32 %v1884, %v2143
        %v2145 = vpop.f32.mrf.mxu0
        %2146 = vmatprep.mubr.f32.mxu0 0.0
        %v2147 = vand.u32 %v391, 4294901760
        %2148 = vmatmul.mubr.f32.gmra.mxu0 %v2147
        %v2149 = vpop.f32.mrf.mxu0
        %v2150 = vadd.f32 %v1890, %v2149
        %v2151 = vpop.f32.mrf.mxu0
        %2152 = vmatprep.mubr.f32.mxu0 0.0
        %v2153 = vand.u32 %v394, 4294901760
        %2154 = vmatmul.mubr.f32.gmra.mxu0 %v2153
        %v2155 = vpop.f32.mrf.mxu0
        %v2156 = vadd.f32 %v1896, %v2155
        %v2157 = vpop.f32.mrf.mxu0
        %2158 = vmatprep.mubr.f32.mxu0 0.0
        %v2159 = vand.u32 %v397, 4294901760
        %2160 = vmatmul.mubr.f32.gmra.mxu0 %v2159
        %v2161 = vpop.f32.mrf.mxu0
        %v2162 = vadd.f32 %v1902, %v2161
        %v2163 = vpop.f32.mrf.mxu0
        %2164 = vmatprep.mubr.f32.mxu0 0.0
        %v2165 = vand.u32 %v400, 4294901760
        %2166 = vmatmul.mubr.f32.gmra.mxu0 %v2165
        %v2167 = vpop.f32.mrf.mxu0
        %v2168 = vadd.f32 %v1908, %v2167
        %v2169 = vpop.f32.mrf.mxu0
        %2170 = vmatprep.mubr.f32.mxu0 0.0
        %v2171 = vand.u32 %v403, 4294901760
        %2172 = vmatmul.mubr.f32.gmra.mxu0 %v2171
        %v2173 = vpop.f32.mrf.mxu0
        %v2174 = vadd.f32 %v1914, %v2173
        %v2175 = vpop.f32.mrf.mxu0
        %2176 = vmatprep.mubr.f32.mxu0 0.0
        %v2177 = vand.u32 %v406, 4294901760
        %2178 = vmatmul.mubr.f32.gmra.mxu0 %v2177
        %v2179 = vpop.f32.mrf.mxu0
        %v2180 = vadd.f32 %v1920, %v2179
        %v2181 = vpop.f32.mrf.mxu0
        %2182 = vmatprep.mubr.f32.mxu0 0.0
        %v2183 = vand.u32 %v409, 4294901760
        %2184 = vmatmul.mubr.f32.gmra.mxu0 %v2183
        %v2185 = vpop.f32.mrf.mxu0
        %v2186 = vadd.f32 %v1926, %v2185
        %v2187 = vpop.f32.mrf.mxu0
        %2188 = vmatprep.mubr.f32.mxu0 0.0
        %v2189 = vand.u32 %v412, 4294901760
        %2190 = vmatmul.mubr.f32.gmra.mxu0 %v2189
        %v2191 = vpop.f32.mrf.mxu0
        %v2192 = vadd.f32 %v1932, %v2191
        %v2193 = vpop.f32.mrf.mxu0
        %2194 = vmatprep.mubr.f32.mxu0 0.0
        %v2195 = vand.u32 %v415, 4294901760
        %2196 = vmatmul.mubr.f32.gmra.mxu0 %v2195
        %v2197 = vpop.f32.mrf.mxu0
        %v2198 = vadd.f32 %v1938, %v2197
        %v2199 = vpop.f32.mrf.mxu0
        %2200 = vmatprep.mubr.f32.mxu0 0.0
        %v2201 = vand.u32 %v418, 4294901760
        %2202 = vmatmul.mubr.f32.gmra.mxu0 %v2201
        %v2203 = vpop.f32.mrf.mxu0
        %v2204 = vadd.f32 %v1944, %v2203
        %v2205 = vpop.f32.mrf.mxu0
        %2206 = vmatprep.mubr.f32.mxu0 0.0
        %v2207 = vand.u32 %v421, 4294901760
        %2208 = vmatmul.mubr.f32.gmra.mxu0 %v2207
        %v2209 = vpop.f32.mrf.mxu0
        %v2210 = vadd.f32 %v1950, %v2209
        %v2211 = vpop.f32.mrf.mxu0
        %2212 = vmatprep.mubr.f32.mxu0 0.0
        %v2213 = vand.u32 %v424, 4294901760
        %2214 = vmatmul.mubr.f32.gmra.mxu0 %v2213
        %v2215 = vpop.f32.mrf.mxu0
        %v2216 = vadd.f32 %v1956, %v2215
        %v2217 = vpop.f32.mrf.mxu0
        %2218 = vmatprep.mubr.f32.mxu0 0.0
        %v2219 = vand.u32 %v427, 4294901760
        %2220 = vmatmul.mubr.f32.gmra.mxu0 %v2219
        %v2221 = vpop.f32.mrf.mxu0
        %v2222 = vadd.f32 %v1962, %v2221
        %v2223 = vpop.f32.mrf.mxu0
        %2224 = vmatprep.mubr.f32.mxu0 0.0
        %v2225 = vand.u32 %v430, 4294901760
        %2226 = vmatmul.mubr.f32.gmra.mxu0 %v2225
        %v2227 = vpop.f32.mrf.mxu0
        %v2228 = vadd.f32 %v1968, %v2227
        %v2229 = vpop.f32.mrf.mxu0
        %2230 = vmatprep.mubr.f32.mxu0 0.0
        %v2231 = vand.u32 %v433, 4294901760
        %2232 = vmatmul.mubr.f32.gmra.mxu0 %v2231
        %v2233 = vpop.f32.mrf.mxu0
        %v2234 = vadd.f32 %v1974, %v2233
        %v2235 = vpop.f32.mrf.mxu0
        %2236 = vmatprep.mubr.f32.mxu0 0.0
        %v2237 = vand.u32 %v436, 4294901760
        %2238 = vmatmul.mubr.f32.gmra.mxu0 %v2237
        %v2239 = vpop.f32.mrf.mxu0
        %v2240 = vadd.f32 %v1980, %v2239
        %v2241 = vpop.f32.mrf.mxu0
        %2242 = vdwg.mxu0
        %2243 = vmatprep.subr.mxu0 0.0
        %v2244 = vand.u32 %v273, 4294901760
        %2245 = vmatpush1.msra.mxu0 %v2244
        %2246 = vmatprep.subr.mxu0 0.0
        %v2247 = vand.u32 %v272, 4294901760
        %2248 = vmatpush1.msra.mxu0 %v2247
        %2249 = vmatprep.subr.mxu0 0.0
        %v2250 = vand.u32 %v271, 4294901760
        %2251 = vmatpush1.msra.mxu0 %v2250
        %2252 = vmatprep.subr.mxu0 0.0
        %v2253 = vand.u32 %v270, 4294901760
        %2254 = vmatpush1.msra.mxu0 %v2253
        %2255 = vmatprep.subr.mxu0 0.0
        %v2256 = vand.u32 %v269, 4294901760
        %2257 = vmatpush1.msra.mxu0 %v2256
        %2258 = vmatprep.subr.mxu0 0.0
        %v2259 = vand.u32 %v268, 4294901760
        %2260 = vmatpush1.msra.mxu0 %v2259
        %2261 = vmatprep.subr.mxu0 0.0
        %v2262 = vand.u32 %v267, 4294901760
        %2263 = vmatpush1.msra.mxu0 %v2262
        %2264 = vmatprep.subr.mxu0 0.0
        %v2265 = vand.u32 %v266, 4294901760
        %2266 = vmatpush1.msra.mxu0 %v2265
        %2267 = vmatprep.subr.mxu0 0.0
        %v2268 = vand.u32 %v265, 4294901760
        %2269 = vmatpush1.msra.mxu0 %v2268
        %2270 = vmatprep.subr.mxu0 0.0
        %v2271 = vand.u32 %v264, 4294901760
        %2272 = vmatpush1.msra.mxu0 %v2271
        %2273 = vmatprep.subr.mxu0 0.0
        %v2274 = vand.u32 %v263, 4294901760
        %2275 = vmatpush1.msra.mxu0 %v2274
        %2276 = vmatprep.subr.mxu0 0.0
        %v2277 = vand.u32 %v262, 4294901760
        %2278 = vmatpush1.msra.mxu0 %v2277
        %2279 = vmatprep.subr.mxu0 0.0
        %v2280 = vand.u32 %v261, 4294901760
        %2281 = vmatpush1.msra.mxu0 %v2280
        %2282 = vmatprep.subr.mxu0 0.0
        %v2283 = vand.u32 %v260, 4294901760
        %2284 = vmatpush1.msra.mxu0 %v2283
        %2285 = vmatprep.subr.mxu0 0.0
        %v2286 = vand.u32 %v259, 4294901760
        %2287 = vmatpush1.msra.mxu0 %v2286
        %2288 = vmatprep.subr.mxu0 0.0
        %v2289 = vand.u32 %v258, 4294901760
        %2290 = vmatpush1.msra.mxu0 %v2289
        %2291 = vmatprep.subr.mxu0 0.0
        %2292 = vmatpush2.msra.mxu0 0.0
        %2293 = vmatprep.subr.mxu0 0.0
        %2294 = vmatpush2.msra.mxu0 0.0
        %2295 = vmatprep.subr.mxu0 0.0
        %2296 = vmatpush2.msra.mxu0 0.0
        %2297 = vmatprep.subr.mxu0 0.0
        %2298 = vmatpush2.msra.mxu0 0.0
        %2299 = vmatprep.subr.mxu0 0.0
        %2300 = vmatpush2.msra.mxu0 0.0
        %2301 = vmatprep.subr.mxu0 0.0
        %2302 = vmatpush2.msra.mxu0 0.0
        %2303 = vmatprep.subr.mxu0 0.0
        %2304 = vmatpush2.msra.mxu0 0.0
        %2305 = vmatprep.subr.mxu0 0.0
        %2306 = vmatpush2.msra.mxu0 0.0
        %2307 = vmatprep.subr.mxu0 0.0
        %2308 = vmatpush2.msra.mxu0 0.0
        %2309 = vmatprep.subr.mxu0 0.0
        %2310 = vmatpush2.msra.mxu0 0.0
        %2311 = vmatprep.subr.mxu0 0.0
        %2312 = vmatpush2.msra.mxu0 0.0
        %2313 = vmatprep.subr.mxu0 0.0
        %2314 = vmatpush2.msra.mxu0 0.0
        %2315 = vmatprep.subr.mxu0 0.0
        %2316 = vmatpush2.msra.mxu0 0.0
        %2317 = vmatprep.subr.mxu0 0.0
        %2318 = vmatpush2.msra.mxu0 0.0
        %2319 = vmatprep.subr.mxu0 0.0
        %2320 = vmatpush2.msra.mxu0 0.0
        %2321 = vmatprep.subr.mxu0 0.0
        %2322 = vmatpush2.msra.mxu0 0.0
        %2323 = vmatprep.mubr.f32.mxu0 0.0
        %v2324 = vand.u32 %v274, 4294901760
        %v2325 = vsub.f32 %v274, %v2324
        %v2326 = vand.u32 %v2325, 4294901760
        %v2327 = vsub.f32 %v2325, %v2326
        %v2328 = vand.u32 %v2327, 4294901760
        %2329 = vmatmul.mubr.f32.gmra.mxu0 %v2328
        %v2330 = vpop.f32.mrf.mxu0
        %v2331 = vadd.f32 %v2054, %v2330
        %v2332 = vpop.f32.mrf.mxu0
        %2333 = vmatprep.mubr.f32.mxu0 0.0
        %v2334 = vand.u32 %v275, 4294901760
        %v2335 = vsub.f32 %v275, %v2334
        %v2336 = vand.u32 %v2335, 4294901760
        %v2337 = vsub.f32 %v2335, %v2336
        %v2338 = vand.u32 %v2337, 4294901760
        %2339 = vmatmul.mubr.f32.gmra.mxu0 %v2338
        %v2340 = vpop.f32.mrf.mxu0
        %v2341 = vadd.f32 %v2060, %v2340
        %v2342 = vpop.f32.mrf.mxu0
        %2343 = vmatprep.mubr.f32.mxu0 0.0
        %v2344 = vand.u32 %v276, 4294901760
        %v2345 = vsub.f32 %v276, %v2344
        %v2346 = vand.u32 %v2345, 4294901760
        %v2347 = vsub.f32 %v2345, %v2346
        %v2348 = vand.u32 %v2347, 4294901760
        %2349 = vmatmul.mubr.f32.gmra.mxu0 %v2348
        %v2350 = vpop.f32.mrf.mxu0
        %v2351 = vadd.f32 %v2066, %v2350
        %v2352 = vpop.f32.mrf.mxu0
        %2353 = vmatprep.mubr.f32.mxu0 0.0
        %v2354 = vand.u32 %v277, 4294901760
        %v2355 = vsub.f32 %v277, %v2354
        %v2356 = vand.u32 %v2355, 4294901760
        %v2357 = vsub.f32 %v2355, %v2356
        %v2358 = vand.u32 %v2357, 4294901760
        %2359 = vmatmul.mubr.f32.gmra.mxu0 %v2358
        %v2360 = vpop.f32.mrf.mxu0
        %v2361 = vadd.f32 %v2072, %v2360
        %v2362 = vpop.f32.mrf.mxu0
        %2363 = vmatprep.mubr.f32.mxu0 0.0
        %v2364 = vand.u32 %v278, 4294901760
        %v2365 = vsub.f32 %v278, %v2364
        %v2366 = vand.u32 %v2365, 4294901760
        %v2367 = vsub.f32 %v2365, %v2366
        %v2368 = vand.u32 %v2367, 4294901760
        %2369 = vmatmul.mubr.f32.gmra.mxu0 %v2368
        %v2370 = vpop.f32.mrf.mxu0
        %v2371 = vadd.f32 %v2078, %v2370
        %v2372 = vpop.f32.mrf.mxu0
        %2373 = vmatprep.mubr.f32.mxu0 0.0
        %v2374 = vand.u32 %v279, 4294901760
        %v2375 = vsub.f32 %v279, %v2374
        %v2376 = vand.u32 %v2375, 4294901760
        %v2377 = vsub.f32 %v2375, %v2376
        %v2378 = vand.u32 %v2377, 4294901760
        %2379 = vmatmul.mubr.f32.gmra.mxu0 %v2378
        %v2380 = vpop.f32.mrf.mxu0
        %v2381 = vadd.f32 %v2084, %v2380
        %v2382 = vpop.f32.mrf.mxu0
        %2383 = vmatprep.mubr.f32.mxu0 0.0
        %v2384 = vand.u32 %v280, 4294901760
        %v2385 = vsub.f32 %v280, %v2384
        %v2386 = vand.u32 %v2385, 4294901760
        %v2387 = vsub.f32 %v2385, %v2386
        %v2388 = vand.u32 %v2387, 4294901760
        %2389 = vmatmul.mubr.f32.gmra.mxu0 %v2388
        %v2390 = vpop.f32.mrf.mxu0
        %v2391 = vadd.f32 %v2090, %v2390
        %v2392 = vpop.f32.mrf.mxu0
        %2393 = vmatprep.mubr.f32.mxu0 0.0
        %v2394 = vand.u32 %v281, 4294901760
        %v2395 = vsub.f32 %v281, %v2394
        %v2396 = vand.u32 %v2395, 4294901760
        %v2397 = vsub.f32 %v2395, %v2396
        %v2398 = vand.u32 %v2397, 4294901760
        %2399 = vmatmul.mubr.f32.gmra.mxu0 %v2398
        %v2400 = vpop.f32.mrf.mxu0
        %v2401 = vadd.f32 %v2096, %v2400
        %v2402 = vpop.f32.mrf.mxu0
        %2403 = vmatprep.mubr.f32.mxu0 0.0
        %v2404 = vand.u32 %v282, 4294901760
        %v2405 = vsub.f32 %v282, %v2404
        %v2406 = vand.u32 %v2405, 4294901760
        %v2407 = vsub.f32 %v2405, %v2406
        %v2408 = vand.u32 %v2407, 4294901760
        %2409 = vmatmul.mubr.f32.gmra.mxu0 %v2408
        %v2410 = vpop.f32.mrf.mxu0
        %v2411 = vadd.f32 %v2102, %v2410
        %v2412 = vpop.f32.mrf.mxu0
        %2413 = vmatprep.mubr.f32.mxu0 0.0
        %v2414 = vand.u32 %v283, 4294901760
        %v2415 = vsub.f32 %v283, %v2414
        %v2416 = vand.u32 %v2415, 4294901760
        %v2417 = vsub.f32 %v2415, %v2416
        %v2418 = vand.u32 %v2417, 4294901760
        %2419 = vmatmul.mubr.f32.gmra.mxu0 %v2418
        %v2420 = vpop.f32.mrf.mxu0
        %v2421 = vadd.f32 %v2108, %v2420
        %v2422 = vpop.f32.mrf.mxu0
        %2423 = vmatprep.mubr.f32.mxu0 0.0
        %v2424 = vand.u32 %v284, 4294901760
        %v2425 = vsub.f32 %v284, %v2424
        %v2426 = vand.u32 %v2425, 4294901760
        %v2427 = vsub.f32 %v2425, %v2426
        %v2428 = vand.u32 %v2427, 4294901760
        %2429 = vmatmul.mubr.f32.gmra.mxu0 %v2428
        %v2430 = vpop.f32.mrf.mxu0
        %v2431 = vadd.f32 %v2114, %v2430
        %v2432 = vpop.f32.mrf.mxu0
        %2433 = vmatprep.mubr.f32.mxu0 0.0
        %v2434 = vand.u32 %v285, 4294901760
        %v2435 = vsub.f32 %v285, %v2434
        %v2436 = vand.u32 %v2435, 4294901760
        %v2437 = vsub.f32 %v2435, %v2436
        %v2438 = vand.u32 %v2437, 4294901760
        %2439 = vmatmul.mubr.f32.gmra.mxu0 %v2438
        %v2440 = vpop.f32.mrf.mxu0
        %v2441 = vadd.f32 %v2120, %v2440
        %v2442 = vpop.f32.mrf.mxu0
        %2443 = vmatprep.mubr.f32.mxu0 0.0
        %v2444 = vand.u32 %v286, 4294901760
        %v2445 = vsub.f32 %v286, %v2444
        %v2446 = vand.u32 %v2445, 4294901760
        %v2447 = vsub.f32 %v2445, %v2446
        %v2448 = vand.u32 %v2447, 4294901760
        %2449 = vmatmul.mubr.f32.gmra.mxu0 %v2448
        %v2450 = vpop.f32.mrf.mxu0
        %v2451 = vadd.f32 %v2126, %v2450
        %v2452 = vpop.f32.mrf.mxu0
        %2453 = vmatprep.mubr.f32.mxu0 0.0
        %v2454 = vand.u32 %v287, 4294901760
        %v2455 = vsub.f32 %v287, %v2454
        %v2456 = vand.u32 %v2455, 4294901760
        %v2457 = vsub.f32 %v2455, %v2456
        %v2458 = vand.u32 %v2457, 4294901760
        %2459 = vmatmul.mubr.f32.gmra.mxu0 %v2458
        %v2460 = vpop.f32.mrf.mxu0
        %v2461 = vadd.f32 %v2132, %v2460
        %v2462 = vpop.f32.mrf.mxu0
        %2463 = vmatprep.mubr.f32.mxu0 0.0
        %v2464 = vand.u32 %v288, 4294901760
        %v2465 = vsub.f32 %v288, %v2464
        %v2466 = vand.u32 %v2465, 4294901760
        %v2467 = vsub.f32 %v2465, %v2466
        %v2468 = vand.u32 %v2467, 4294901760
        %2469 = vmatmul.mubr.f32.gmra.mxu0 %v2468
        %v2470 = vpop.f32.mrf.mxu0
        %v2471 = vadd.f32 %v2138, %v2470
        %v2472 = vpop.f32.mrf.mxu0
        %2473 = vmatprep.mubr.f32.mxu0 0.0
        %v2474 = vand.u32 %v289, 4294901760
        %v2475 = vsub.f32 %v289, %v2474
        %v2476 = vand.u32 %v2475, 4294901760
        %v2477 = vsub.f32 %v2475, %v2476
        %v2478 = vand.u32 %v2477, 4294901760
        %2479 = vmatmul.mubr.f32.gmra.mxu0 %v2478
        %v2480 = vpop.f32.mrf.mxu0
        %v2481 = vadd.f32 %v2144, %v2480
        %v2482 = vpop.f32.mrf.mxu0
        %2483 = vmatprep.mubr.f32.mxu0 0.0
        %v2484 = vand.u32 %v290, 4294901760
        %v2485 = vsub.f32 %v290, %v2484
        %v2486 = vand.u32 %v2485, 4294901760
        %v2487 = vsub.f32 %v2485, %v2486
        %v2488 = vand.u32 %v2487, 4294901760
        %2489 = vmatmul.mubr.f32.gmra.mxu0 %v2488
        %v2490 = vpop.f32.mrf.mxu0
        %v2491 = vadd.f32 %v2150, %v2490
        %v2492 = vpop.f32.mrf.mxu0
        %2493 = vmatprep.mubr.f32.mxu0 0.0
        %v2494 = vand.u32 %v291, 4294901760
        %v2495 = vsub.f32 %v291, %v2494
        %v2496 = vand.u32 %v2495, 4294901760
        %v2497 = vsub.f32 %v2495, %v2496
        %v2498 = vand.u32 %v2497, 4294901760
        %2499 = vmatmul.mubr.f32.gmra.mxu0 %v2498
        %v2500 = vpop.f32.mrf.mxu0
        %v2501 = vadd.f32 %v2156, %v2500
        %v2502 = vpop.f32.mrf.mxu0
        %2503 = vmatprep.mubr.f32.mxu0 0.0
        %v2504 = vand.u32 %v292, 4294901760
        %v2505 = vsub.f32 %v292, %v2504
        %v2506 = vand.u32 %v2505, 4294901760
        %v2507 = vsub.f32 %v2505, %v2506
        %v2508 = vand.u32 %v2507, 4294901760
        %2509 = vmatmul.mubr.f32.gmra.mxu0 %v2508
        %v2510 = vpop.f32.mrf.mxu0
        %v2511 = vadd.f32 %v2162, %v2510
        %v2512 = vpop.f32.mrf.mxu0
        %2513 = vmatprep.mubr.f32.mxu0 0.0
        %v2514 = vand.u32 %v293, 4294901760
        %v2515 = vsub.f32 %v293, %v2514
        %v2516 = vand.u32 %v2515, 4294901760
        %v2517 = vsub.f32 %v2515, %v2516
        %v2518 = vand.u32 %v2517, 4294901760
        %2519 = vmatmul.mubr.f32.gmra.mxu0 %v2518
        %v2520 = vpop.f32.mrf.mxu0
        %v2521 = vadd.f32 %v2168, %v2520
        %v2522 = vpop.f32.mrf.mxu0
        %2523 = vmatprep.mubr.f32.mxu0 0.0
        %v2524 = vand.u32 %v294, 4294901760
        %v2525 = vsub.f32 %v294, %v2524
        %v2526 = vand.u32 %v2525, 4294901760
        %v2527 = vsub.f32 %v2525, %v2526
        %v2528 = vand.u32 %v2527, 4294901760
        %2529 = vmatmul.mubr.f32.gmra.mxu0 %v2528
        %v2530 = vpop.f32.mrf.mxu0
        %v2531 = vadd.f32 %v2174, %v2530
        %v2532 = vpop.f32.mrf.mxu0
        %2533 = vmatprep.mubr.f32.mxu0 0.0
        %v2534 = vand.u32 %v295, 4294901760
        %v2535 = vsub.f32 %v295, %v2534
        %v2536 = vand.u32 %v2535, 4294901760
        %v2537 = vsub.f32 %v2535, %v2536
        %v2538 = vand.u32 %v2537, 4294901760
        %2539 = vmatmul.mubr.f32.gmra.mxu0 %v2538
        %v2540 = vpop.f32.mrf.mxu0
        %v2541 = vadd.f32 %v2180, %v2540
        %v2542 = vpop.f32.mrf.mxu0
        %2543 = vmatprep.mubr.f32.mxu0 0.0
        %v2544 = vand.u32 %v296, 4294901760
        %v2545 = vsub.f32 %v296, %v2544
        %v2546 = vand.u32 %v2545, 4294901760
        %v2547 = vsub.f32 %v2545, %v2546
        %v2548 = vand.u32 %v2547, 4294901760
        %2549 = vmatmul.mubr.f32.gmra.mxu0 %v2548
        %v2550 = vpop.f32.mrf.mxu0
        %v2551 = vadd.f32 %v2186, %v2550
        %v2552 = vpop.f32.mrf.mxu0
        %2553 = vmatprep.mubr.f32.mxu0 0.0
        %v2554 = vand.u32 %v297, 4294901760
        %v2555 = vsub.f32 %v297, %v2554
        %v2556 = vand.u32 %v2555, 4294901760
        %v2557 = vsub.f32 %v2555, %v2556
        %v2558 = vand.u32 %v2557, 4294901760
        %2559 = vmatmul.mubr.f32.gmra.mxu0 %v2558
        %v2560 = vpop.f32.mrf.mxu0
        %v2561 = vadd.f32 %v2192, %v2560
        %v2562 = vpop.f32.mrf.mxu0
        %2563 = vmatprep.mubr.f32.mxu0 0.0
        %v2564 = vand.u32 %v298, 4294901760
        %v2565 = vsub.f32 %v298, %v2564
        %v2566 = vand.u32 %v2565, 4294901760
        %v2567 = vsub.f32 %v2565, %v2566
        %v2568 = vand.u32 %v2567, 4294901760
        %2569 = vmatmul.mubr.f32.gmra.mxu0 %v2568
        %v2570 = vpop.f32.mrf.mxu0
        %v2571 = vadd.f32 %v2198, %v2570
        %v2572 = vpop.f32.mrf.mxu0
        %2573 = vmatprep.mubr.f32.mxu0 0.0
        %v2574 = vand.u32 %v299, 4294901760
        %v2575 = vsub.f32 %v299, %v2574
        %v2576 = vand.u32 %v2575, 4294901760
        %v2577 = vsub.f32 %v2575, %v2576
        %v2578 = vand.u32 %v2577, 4294901760
        %2579 = vmatmul.mubr.f32.gmra.mxu0 %v2578
        %v2580 = vpop.f32.mrf.mxu0
        %v2581 = vadd.f32 %v2204, %v2580
        %v2582 = vpop.f32.mrf.mxu0
        %2583 = vmatprep.mubr.f32.mxu0 0.0
        %v2584 = vand.u32 %v300, 4294901760
        %v2585 = vsub.f32 %v300, %v2584
        %v2586 = vand.u32 %v2585, 4294901760
        %v2587 = vsub.f32 %v2585, %v2586
        %v2588 = vand.u32 %v2587, 4294901760
        %2589 = vmatmul.mubr.f32.gmra.mxu0 %v2588
        %v2590 = vpop.f32.mrf.mxu0
        %v2591 = vadd.f32 %v2210, %v2590
        %v2592 = vpop.f32.mrf.mxu0
        %2593 = vmatprep.mubr.f32.mxu0 0.0
        %v2594 = vand.u32 %v301, 4294901760
        %v2595 = vsub.f32 %v301, %v2594
        %v2596 = vand.u32 %v2595, 4294901760
        %v2597 = vsub.f32 %v2595, %v2596
        %v2598 = vand.u32 %v2597, 4294901760
        %2599 = vmatmul.mubr.f32.gmra.mxu0 %v2598
        %v2600 = vpop.f32.mrf.mxu0
        %v2601 = vadd.f32 %v2216, %v2600
        %v2602 = vpop.f32.mrf.mxu0
        %2603 = vmatprep.mubr.f32.mxu0 0.0
        %v2604 = vand.u32 %v302, 4294901760
        %v2605 = vsub.f32 %v302, %v2604
        %v2606 = vand.u32 %v2605, 4294901760
        %v2607 = vsub.f32 %v2605, %v2606
        %v2608 = vand.u32 %v2607, 4294901760
        %2609 = vmatmul.mubr.f32.gmra.mxu0 %v2608
        %v2610 = vpop.f32.mrf.mxu0
        %v2611 = vadd.f32 %v2222, %v2610
        %v2612 = vpop.f32.mrf.mxu0
        %2613 = vmatprep.mubr.f32.mxu0 0.0
        %v2614 = vand.u32 %v303, 4294901760
        %v2615 = vsub.f32 %v303, %v2614
        %v2616 = vand.u32 %v2615, 4294901760
        %v2617 = vsub.f32 %v2615, %v2616
        %v2618 = vand.u32 %v2617, 4294901760
        %2619 = vmatmul.mubr.f32.gmra.mxu0 %v2618
        %v2620 = vpop.f32.mrf.mxu0
        %v2621 = vadd.f32 %v2228, %v2620
        %v2622 = vpop.f32.mrf.mxu0
        %2623 = vmatprep.mubr.f32.mxu0 0.0
        %v2624 = vand.u32 %v304, 4294901760
        %v2625 = vsub.f32 %v304, %v2624
        %v2626 = vand.u32 %v2625, 4294901760
        %v2627 = vsub.f32 %v2625, %v2626
        %v2628 = vand.u32 %v2627, 4294901760
        %2629 = vmatmul.mubr.f32.gmra.mxu0 %v2628
        %v2630 = vpop.f32.mrf.mxu0
        %v2631 = vadd.f32 %v2234, %v2630
        %v2632 = vpop.f32.mrf.mxu0
        %2633 = vmatprep.mubr.f32.mxu0 0.0
        %v2634 = vand.u32 %v305, 4294901760
        %v2635 = vsub.f32 %v305, %v2634
        %v2636 = vand.u32 %v2635, 4294901760
        %v2637 = vsub.f32 %v2635, %v2636
        %v2638 = vand.u32 %v2637, 4294901760
        %2639 = vmatmul.mubr.f32.gmra.mxu0 %v2638
        %v2640 = vpop.f32.mrf.mxu0
        %v2641 = vadd.f32 %v2240, %v2640
        %v2642 = vpop.f32.mrf.mxu0
        %2643 = vdwg.mxu0
        %2644 = vmatprep.subr.mxu0 0.0
        %v2645 = vand.u32 %v273, 4294901760
        %v2646 = vsub.f32 %v273, %v2645
        %v2647 = vand.u32 %v2646, 4294901760
        %v2648 = vsub.f32 %v2646, %v2647
        %v2649 = vand.u32 %v2648, 4294901760
        %2650 = vmatpush1.msra.mxu0 %v2649
        %2651 = vmatprep.subr.mxu0 0.0
        %v2652 = vand.u32 %v272, 4294901760
        %v2653 = vsub.f32 %v272, %v2652
        %v2654 = vand.u32 %v2653, 4294901760
        %v2655 = vsub.f32 %v2653, %v2654
        %v2656 = vand.u32 %v2655, 4294901760
        %2657 = vmatpush1.msra.mxu0 %v2656
        %2658 = vmatprep.subr.mxu0 0.0
        %v2659 = vand.u32 %v271, 4294901760
        %v2660 = vsub.f32 %v271, %v2659
        %v2661 = vand.u32 %v2660, 4294901760
        %v2662 = vsub.f32 %v2660, %v2661
        %v2663 = vand.u32 %v2662, 4294901760
        %2664 = vmatpush1.msra.mxu0 %v2663
        %2665 = vmatprep.subr.mxu0 0.0
        %v2666 = vand.u32 %v270, 4294901760
        %v2667 = vsub.f32 %v270, %v2666
        %v2668 = vand.u32 %v2667, 4294901760
        %v2669 = vsub.f32 %v2667, %v2668
        %v2670 = vand.u32 %v2669, 4294901760
        %2671 = vmatpush1.msra.mxu0 %v2670
        %2672 = vmatprep.subr.mxu0 0.0
        %v2673 = vand.u32 %v269, 4294901760
        %v2674 = vsub.f32 %v269, %v2673
        %v2675 = vand.u32 %v2674, 4294901760
        %v2676 = vsub.f32 %v2674, %v2675
        %v2677 = vand.u32 %v2676, 4294901760
        %2678 = vmatpush1.msra.mxu0 %v2677
        %2679 = vmatprep.subr.mxu0 0.0
        %v2680 = vand.u32 %v268, 4294901760
        %v2681 = vsub.f32 %v268, %v2680
        %v2682 = vand.u32 %v2681, 4294901760
        %v2683 = vsub.f32 %v2681, %v2682
        %v2684 = vand.u32 %v2683, 4294901760
        %2685 = vmatpush1.msra.mxu0 %v2684
        %2686 = vmatprep.subr.mxu0 0.0
        %v2687 = vand.u32 %v267, 4294901760
        %v2688 = vsub.f32 %v267, %v2687
        %v2689 = vand.u32 %v2688, 4294901760
        %v2690 = vsub.f32 %v2688, %v2689
        %v2691 = vand.u32 %v2690, 4294901760
        %2692 = vmatpush1.msra.mxu0 %v2691
        %2693 = vmatprep.subr.mxu0 0.0
        %v2694 = vand.u32 %v266, 4294901760
        %v2695 = vsub.f32 %v266, %v2694
        %v2696 = vand.u32 %v2695, 4294901760
        %v2697 = vsub.f32 %v2695, %v2696
        %v2698 = vand.u32 %v2697, 4294901760
        %2699 = vmatpush1.msra.mxu0 %v2698
        %2700 = vmatprep.subr.mxu0 0.0
        %v2701 = vand.u32 %v265, 4294901760
        %v2702 = vsub.f32 %v265, %v2701
        %v2703 = vand.u32 %v2702, 4294901760
        %v2704 = vsub.f32 %v2702, %v2703
        %v2705 = vand.u32 %v2704, 4294901760
        %2706 = vmatpush1.msra.mxu0 %v2705
        %2707 = vmatprep.subr.mxu0 0.0
        %v2708 = vand.u32 %v264, 4294901760
        %v2709 = vsub.f32 %v264, %v2708
        %v2710 = vand.u32 %v2709, 4294901760
        %v2711 = vsub.f32 %v2709, %v2710
        %v2712 = vand.u32 %v2711, 4294901760
        %2713 = vmatpush1.msra.mxu0 %v2712
        %2714 = vmatprep.subr.mxu0 0.0
        %v2715 = vand.u32 %v263, 4294901760
        %v2716 = vsub.f32 %v263, %v2715
        %v2717 = vand.u32 %v2716, 4294901760
        %v2718 = vsub.f32 %v2716, %v2717
        %v2719 = vand.u32 %v2718, 4294901760
        %2720 = vmatpush1.msra.mxu0 %v2719
        %2721 = vmatprep.subr.mxu0 0.0
        %v2722 = vand.u32 %v262, 4294901760
        %v2723 = vsub.f32 %v262, %v2722
        %v2724 = vand.u32 %v2723, 4294901760
        %v2725 = vsub.f32 %v2723, %v2724
        %v2726 = vand.u32 %v2725, 4294901760
        %2727 = vmatpush1.msra.mxu0 %v2726
        %2728 = vmatprep.subr.mxu0 0.0
        %v2729 = vand.u32 %v261, 4294901760
        %v2730 = vsub.f32 %v261, %v2729
        %v2731 = vand.u32 %v2730, 4294901760
        %v2732 = vsub.f32 %v2730, %v2731
        %v2733 = vand.u32 %v2732, 4294901760
        %2734 = vmatpush1.msra.mxu0 %v2733
        %2735 = vmatprep.subr.mxu0 0.0
        %v2736 = vand.u32 %v260, 4294901760
        %v2737 = vsub.f32 %v260, %v2736
        %v2738 = vand.u32 %v2737, 4294901760
        %v2739 = vsub.f32 %v2737, %v2738
        %v2740 = vand.u32 %v2739, 4294901760
        %2741 = vmatpush1.msra.mxu0 %v2740
        %2742 = vmatprep.subr.mxu0 0.0
        %v2743 = vand.u32 %v259, 4294901760
        %v2744 = vsub.f32 %v259, %v2743
        %v2745 = vand.u32 %v2744, 4294901760
        %v2746 = vsub.f32 %v2744, %v2745
        %v2747 = vand.u32 %v2746, 4294901760
        %2748 = vmatpush1.msra.mxu0 %v2747
        %2749 = vmatprep.subr.mxu0 0.0
        %v2750 = vand.u32 %v258, 4294901760
        %v2751 = vsub.f32 %v258, %v2750
        %v2752 = vand.u32 %v2751, 4294901760
        %v2753 = vsub.f32 %v2751, %v2752
        %v2754 = vand.u32 %v2753, 4294901760
        %2755 = vmatpush1.msra.mxu0 %v2754
        %2756 = vmatprep.subr.mxu0 0.0
        %2757 = vmatpush2.msra.mxu0 0.0
        %2758 = vmatprep.subr.mxu0 0.0
        %2759 = vmatpush2.msra.mxu0 0.0
        %2760 = vmatprep.subr.mxu0 0.0
        %2761 = vmatpush2.msra.mxu0 0.0
        %2762 = vmatprep.subr.mxu0 0.0
        %2763 = vmatpush2.msra.mxu0 0.0
        %2764 = vmatprep.subr.mxu0 0.0
        %2765 = vmatpush2.msra.mxu0 0.0
        %2766 = vmatprep.subr.mxu0 0.0
        %2767 = vmatpush2.msra.mxu0 0.0
        %2768 = vmatprep.subr.mxu0 0.0
        %2769 = vmatpush2.msra.mxu0 0.0
        %2770 = vmatprep.subr.mxu0 0.0
        %2771 = vmatpush2.msra.mxu0 0.0
        %2772 = vmatprep.subr.mxu0 0.0
        %2773 = vmatpush2.msra.mxu0 0.0
        %2774 = vmatprep.subr.mxu0 0.0
        %2775 = vmatpush2.msra.mxu0 0.0
        %2776 = vmatprep.subr.mxu0 0.0
        %2777 = vmatpush2.msra.mxu0 0.0
        %2778 = vmatprep.subr.mxu0 0.0
        %2779 = vmatpush2.msra.mxu0 0.0
        %2780 = vmatprep.subr.mxu0 0.0
        %2781 = vmatpush2.msra.mxu0 0.0
        %2782 = vmatprep.subr.mxu0 0.0
        %2783 = vmatpush2.msra.mxu0 0.0
        %2784 = vmatprep.subr.mxu0 0.0
        %2785 = vmatpush2.msra.mxu0 0.0
        %2786 = vmatprep.subr.mxu0 0.0
        %2787 = vmatpush2.msra.mxu0 0.0
        %2788 = vmatprep.mubr.f32.mxu0 0.0
        %v2789 = vand.u32 %v274, 4294901760
        %2790 = vmatmul.mubr.f32.gmra.mxu0 %v2789
        %v2791 = vpop.f32.mrf.mxu0
        %v2792 = vadd.f32 %v2331, %v2791
        %v2793 = vpop.f32.mrf.mxu0
        %2794 = vmatprep.mubr.f32.mxu0 0.0
        %v2795 = vand.u32 %v275, 4294901760
        %2796 = vmatmul.mubr.f32.gmra.mxu0 %v2795
        %v2797 = vpop.f32.mrf.mxu0
        %v2798 = vadd.f32 %v2341, %v2797
        %v2799 = vpop.f32.mrf.mxu0
        %2800 = vmatprep.mubr.f32.mxu0 0.0
        %v2801 = vand.u32 %v276, 4294901760
        %2802 = vmatmul.mubr.f32.gmra.mxu0 %v2801
        %v2803 = vpop.f32.mrf.mxu0
        %v2804 = vadd.f32 %v2351, %v2803
        %v2805 = vpop.f32.mrf.mxu0
        %2806 = vmatprep.mubr.f32.mxu0 0.0
        %v2807 = vand.u32 %v277, 4294901760
        %2808 = vmatmul.mubr.f32.gmra.mxu0 %v2807
        %v2809 = vpop.f32.mrf.mxu0
        %v2810 = vadd.f32 %v2361, %v2809
        %v2811 = vpop.f32.mrf.mxu0
        %2812 = vmatprep.mubr.f32.mxu0 0.0
        %v2813 = vand.u32 %v278, 4294901760
        %2814 = vmatmul.mubr.f32.gmra.mxu0 %v2813
        %v2815 = vpop.f32.mrf.mxu0
        %v2816 = vadd.f32 %v2371, %v2815
        %v2817 = vpop.f32.mrf.mxu0
        %2818 = vmatprep.mubr.f32.mxu0 0.0
        %v2819 = vand.u32 %v279, 4294901760
        %2820 = vmatmul.mubr.f32.gmra.mxu0 %v2819
        %v2821 = vpop.f32.mrf.mxu0
        %v2822 = vadd.f32 %v2381, %v2821
        %v2823 = vpop.f32.mrf.mxu0
        %2824 = vmatprep.mubr.f32.mxu0 0.0
        %v2825 = vand.u32 %v280, 4294901760
        %2826 = vmatmul.mubr.f32.gmra.mxu0 %v2825
        %v2827 = vpop.f32.mrf.mxu0
        %v2828 = vadd.f32 %v2391, %v2827
        %v2829 = vpop.f32.mrf.mxu0
        %2830 = vmatprep.mubr.f32.mxu0 0.0
        %v2831 = vand.u32 %v281, 4294901760
        %2832 = vmatmul.mubr.f32.gmra.mxu0 %v2831
        %v2833 = vpop.f32.mrf.mxu0
        %v2834 = vadd.f32 %v2401, %v2833
        %v2835 = vpop.f32.mrf.mxu0
        %2836 = vmatprep.mubr.f32.mxu0 0.0
        %v2837 = vand.u32 %v282, 4294901760
        %2838 = vmatmul.mubr.f32.gmra.mxu0 %v2837
        %v2839 = vpop.f32.mrf.mxu0
        %v2840 = vadd.f32 %v2411, %v2839
        %v2841 = vpop.f32.mrf.mxu0
        %2842 = vmatprep.mubr.f32.mxu0 0.0
        %v2843 = vand.u32 %v283, 4294901760
        %2844 = vmatmul.mubr.f32.gmra.mxu0 %v2843
        %v2845 = vpop.f32.mrf.mxu0
        %v2846 = vadd.f32 %v2421, %v2845
        %v2847 = vpop.f32.mrf.mxu0
        %2848 = vmatprep.mubr.f32.mxu0 0.0
        %v2849 = vand.u32 %v284, 4294901760
        %2850 = vmatmul.mubr.f32.gmra.mxu0 %v2849
        %v2851 = vpop.f32.mrf.mxu0
        %v2852 = vadd.f32 %v2431, %v2851
        %v2853 = vpop.f32.mrf.mxu0
        %2854 = vmatprep.mubr.f32.mxu0 0.0
        %v2855 = vand.u32 %v285, 4294901760
        %2856 = vmatmul.mubr.f32.gmra.mxu0 %v2855
        %v2857 = vpop.f32.mrf.mxu0
        %v2858 = vadd.f32 %v2441, %v2857
        %v2859 = vpop.f32.mrf.mxu0
        %2860 = vmatprep.mubr.f32.mxu0 0.0
        %v2861 = vand.u32 %v286, 4294901760
        %2862 = vmatmul.mubr.f32.gmra.mxu0 %v2861
        %v2863 = vpop.f32.mrf.mxu0
        %v2864 = vadd.f32 %v2451, %v2863
        %v2865 = vpop.f32.mrf.mxu0
        %2866 = vmatprep.mubr.f32.mxu0 0.0
        %v2867 = vand.u32 %v287, 4294901760
        %2868 = vmatmul.mubr.f32.gmra.mxu0 %v2867
        %v2869 = vpop.f32.mrf.mxu0
        %v2870 = vadd.f32 %v2461, %v2869
        %v2871 = vpop.f32.mrf.mxu0
        %2872 = vmatprep.mubr.f32.mxu0 0.0
        %v2873 = vand.u32 %v288, 4294901760
        %2874 = vmatmul.mubr.f32.gmra.mxu0 %v2873
        %v2875 = vpop.f32.mrf.mxu0
        %v2876 = vadd.f32 %v2471, %v2875
        %v2877 = vpop.f32.mrf.mxu0
        %2878 = vmatprep.mubr.f32.mxu0 0.0
        %v2879 = vand.u32 %v289, 4294901760
        %2880 = vmatmul.mubr.f32.gmra.mxu0 %v2879
        %v2881 = vpop.f32.mrf.mxu0
        %v2882 = vadd.f32 %v2481, %v2881
        %v2883 = vpop.f32.mrf.mxu0
        %2884 = vmatprep.mubr.f32.mxu0 0.0
        %v2885 = vand.u32 %v290, 4294901760
        %2886 = vmatmul.mubr.f32.gmra.mxu0 %v2885
        %v2887 = vpop.f32.mrf.mxu0
        %v2888 = vadd.f32 %v2491, %v2887
        %v2889 = vpop.f32.mrf.mxu0
        %2890 = vmatprep.mubr.f32.mxu0 0.0
        %v2891 = vand.u32 %v291, 4294901760
        %2892 = vmatmul.mubr.f32.gmra.mxu0 %v2891
        %v2893 = vpop.f32.mrf.mxu0
        %v2894 = vadd.f32 %v2501, %v2893
        %v2895 = vpop.f32.mrf.mxu0
        %2896 = vmatprep.mubr.f32.mxu0 0.0
        %v2897 = vand.u32 %v292, 4294901760
        %2898 = vmatmul.mubr.f32.gmra.mxu0 %v2897
        %v2899 = vpop.f32.mrf.mxu0
        %v2900 = vadd.f32 %v2511, %v2899
        %v2901 = vpop.f32.mrf.mxu0
        %2902 = vmatprep.mubr.f32.mxu0 0.0
        %v2903 = vand.u32 %v293, 4294901760
        %2904 = vmatmul.mubr.f32.gmra.mxu0 %v2903
        %v2905 = vpop.f32.mrf.mxu0
        %v2906 = vadd.f32 %v2521, %v2905
        %v2907 = vpop.f32.mrf.mxu0
        %2908 = vmatprep.mubr.f32.mxu0 0.0
        %v2909 = vand.u32 %v294, 4294901760
        %2910 = vmatmul.mubr.f32.gmra.mxu0 %v2909
        %v2911 = vpop.f32.mrf.mxu0
        %v2912 = vadd.f32 %v2531, %v2911
        %v2913 = vpop.f32.mrf.mxu0
        %2914 = vmatprep.mubr.f32.mxu0 0.0
        %v2915 = vand.u32 %v295, 4294901760
        %2916 = vmatmul.mubr.f32.gmra.mxu0 %v2915
        %v2917 = vpop.f32.mrf.mxu0
        %v2918 = vadd.f32 %v2541, %v2917
        %v2919 = vpop.f32.mrf.mxu0
        %2920 = vmatprep.mubr.f32.mxu0 0.0
        %v2921 = vand.u32 %v296, 4294901760
        %2922 = vmatmul.mubr.f32.gmra.mxu0 %v2921
        %v2923 = vpop.f32.mrf.mxu0
        %v2924 = vadd.f32 %v2551, %v2923
        %v2925 = vpop.f32.mrf.mxu0
        %2926 = vmatprep.mubr.f32.mxu0 0.0
        %v2927 = vand.u32 %v297, 4294901760
        %2928 = vmatmul.mubr.f32.gmra.mxu0 %v2927
        %v2929 = vpop.f32.mrf.mxu0
        %v2930 = vadd.f32 %v2561, %v2929
        %v2931 = vpop.f32.mrf.mxu0
        %2932 = vmatprep.mubr.f32.mxu0 0.0
        %v2933 = vand.u32 %v298, 4294901760
        %2934 = vmatmul.mubr.f32.gmra.mxu0 %v2933
        %v2935 = vpop.f32.mrf.mxu0
        %v2936 = vadd.f32 %v2571, %v2935
        %v2937 = vpop.f32.mrf.mxu0
        %2938 = vmatprep.mubr.f32.mxu0 0.0
        %v2939 = vand.u32 %v299, 4294901760
        %2940 = vmatmul.mubr.f32.gmra.mxu0 %v2939
        %v2941 = vpop.f32.mrf.mxu0
        %v2942 = vadd.f32 %v2581, %v2941
        %v2943 = vpop.f32.mrf.mxu0
        %2944 = vmatprep.mubr.f32.mxu0 0.0
        %v2945 = vand.u32 %v300, 4294901760
        %2946 = vmatmul.mubr.f32.gmra.mxu0 %v2945
        %v2947 = vpop.f32.mrf.mxu0
        %v2948 = vadd.f32 %v2591, %v2947
        %v2949 = vpop.f32.mrf.mxu0
        %2950 = vmatprep.mubr.f32.mxu0 0.0
        %v2951 = vand.u32 %v301, 4294901760
        %2952 = vmatmul.mubr.f32.gmra.mxu0 %v2951
        %v2953 = vpop.f32.mrf.mxu0
        %v2954 = vadd.f32 %v2601, %v2953
        %v2955 = vpop.f32.mrf.mxu0
        %2956 = vmatprep.mubr.f32.mxu0 0.0
        %v2957 = vand.u32 %v302, 4294901760
        %2958 = vmatmul.mubr.f32.gmra.mxu0 %v2957
        %v2959 = vpop.f32.mrf.mxu0
        %v2960 = vadd.f32 %v2611, %v2959
        %v2961 = vpop.f32.mrf.mxu0
        %2962 = vmatprep.mubr.f32.mxu0 0.0
        %v2963 = vand.u32 %v303, 4294901760
        %2964 = vmatmul.mubr.f32.gmra.mxu0 %v2963
        %v2965 = vpop.f32.mrf.mxu0
        %v2966 = vadd.f32 %v2621, %v2965
        %v2967 = vpop.f32.mrf.mxu0
        %2968 = vmatprep.mubr.f32.mxu0 0.0
        %v2969 = vand.u32 %v304, 4294901760
        %2970 = vmatmul.mubr.f32.gmra.mxu0 %v2969
        %v2971 = vpop.f32.mrf.mxu0
        %v2972 = vadd.f32 %v2631, %v2971
        %v2973 = vpop.f32.mrf.mxu0
        %2974 = vmatprep.mubr.f32.mxu0 0.0
        %v2975 = vand.u32 %v305, 4294901760
        %2976 = vmatmul.mubr.f32.gmra.mxu0 %v2975
        %v2977 = vpop.f32.mrf.mxu0
        %v2978 = vadd.f32 %v2641, %v2977
        %v2979 = vpop.f32.mrf.mxu0
        %2980 = vdwg.mxu0
        %2981 = vmatprep.subr.mxu0 0.0
        %v2982 = vand.u32 %v273, 4294901760
        %v2983 = vsub.f32 %v273, %v2982
        %2984 = vmatpush1.msra.mxu0 %v2983
        %2985 = vmatprep.subr.mxu0 0.0
        %v2986 = vand.u32 %v272, 4294901760
        %v2987 = vsub.f32 %v272, %v2986
        %2988 = vmatpush1.msra.mxu0 %v2987
        %2989 = vmatprep.subr.mxu0 0.0
        %v2990 = vand.u32 %v271, 4294901760
        %v2991 = vsub.f32 %v271, %v2990
        %2992 = vmatpush1.msra.mxu0 %v2991
        %2993 = vmatprep.subr.mxu0 0.0
        %v2994 = vand.u32 %v270, 4294901760
        %v2995 = vsub.f32 %v270, %v2994
        %2996 = vmatpush1.msra.mxu0 %v2995
        %2997 = vmatprep.subr.mxu0 0.0
        %v2998 = vand.u32 %v269, 4294901760
        %v2999 = vsub.f32 %v269, %v2998
        %3000 = vmatpush1.msra.mxu0 %v2999
        %3001 = vmatprep.subr.mxu0 0.0
        %v3002 = vand.u32 %v268, 4294901760
        %v3003 = vsub.f32 %v268, %v3002
        %3004 = vmatpush1.msra.mxu0 %v3003
        %3005 = vmatprep.subr.mxu0 0.0
        %v3006 = vand.u32 %v267, 4294901760
        %v3007 = vsub.f32 %v267, %v3006
        %3008 = vmatpush1.msra.mxu0 %v3007
        %3009 = vmatprep.subr.mxu0 0.0
        %v3010 = vand.u32 %v266, 4294901760
        %v3011 = vsub.f32 %v266, %v3010
        %3012 = vmatpush1.msra.mxu0 %v3011
        %3013 = vmatprep.subr.mxu0 0.0
        %v3014 = vand.u32 %v265, 4294901760
        %v3015 = vsub.f32 %v265, %v3014
        %3016 = vmatpush1.msra.mxu0 %v3015
        %3017 = vmatprep.subr.mxu0 0.0
        %v3018 = vand.u32 %v264, 4294901760
        %v3019 = vsub.f32 %v264, %v3018
        %3020 = vmatpush1.msra.mxu0 %v3019
        %3021 = vmatprep.subr.mxu0 0.0
        %v3022 = vand.u32 %v263, 4294901760
        %v3023 = vsub.f32 %v263, %v3022
        %3024 = vmatpush1.msra.mxu0 %v3023
        %3025 = vmatprep.subr.mxu0 0.0
        %v3026 = vand.u32 %v262, 4294901760
        %v3027 = vsub.f32 %v262, %v3026
        %3028 = vmatpush1.msra.mxu0 %v3027
        %3029 = vmatprep.subr.mxu0 0.0
        %v3030 = vand.u32 %v261, 4294901760
        %v3031 = vsub.f32 %v261, %v3030
        %3032 = vmatpush1.msra.mxu0 %v3031
        %3033 = vmatprep.subr.mxu0 0.0
        %v3034 = vand.u32 %v260, 4294901760
        %v3035 = vsub.f32 %v260, %v3034
        %3036 = vmatpush1.msra.mxu0 %v3035
        %3037 = vmatprep.subr.mxu0 0.0
        %v3038 = vand.u32 %v259, 4294901760
        %v3039 = vsub.f32 %v259, %v3038
        %3040 = vmatpush1.msra.mxu0 %v3039
        %3041 = vmatprep.subr.mxu0 0.0
        %v3042 = vand.u32 %v258, 4294901760
        %v3043 = vsub.f32 %v258, %v3042
        %3044 = vmatpush1.msra.mxu0 %v3043
        %3045 = vmatprep.subr.mxu0 0.0
        %3046 = vmatpush2.msra.mxu0 0.0
        %3047 = vmatprep.subr.mxu0 0.0
        %3048 = vmatpush2.msra.mxu0 0.0
        %3049 = vmatprep.subr.mxu0 0.0
        %3050 = vmatpush2.msra.mxu0 0.0
        %3051 = vmatprep.subr.mxu0 0.0
        %3052 = vmatpush2.msra.mxu0 0.0
        %3053 = vmatprep.subr.mxu0 0.0
        %3054 = vmatpush2.msra.mxu0 0.0
        %3055 = vmatprep.subr.mxu0 0.0
        %3056 = vmatpush2.msra.mxu0 0.0
        %3057 = vmatprep.subr.mxu0 0.0
        %3058 = vmatpush2.msra.mxu0 0.0
        %3059 = vmatprep.subr.mxu0 0.0
        %3060 = vmatpush2.msra.mxu0 0.0
        %3061 = vmatprep.subr.mxu0 0.0
        %3062 = vmatpush2.msra.mxu0 0.0
        %3063 = vmatprep.subr.mxu0 0.0
        %3064 = vmatpush2.msra.mxu0 0.0
        %3065 = vmatprep.subr.mxu0 0.0
        %3066 = vmatpush2.msra.mxu0 0.0
        %3067 = vmatprep.subr.mxu0 0.0
        %3068 = vmatpush2.msra.mxu0 0.0
        %3069 = vmatprep.subr.mxu0 0.0
        %3070 = vmatpush2.msra.mxu0 0.0
        %3071 = vmatprep.subr.mxu0 0.0
        %3072 = vmatpush2.msra.mxu0 0.0
        %3073 = vmatprep.subr.mxu0 0.0
        %3074 = vmatpush2.msra.mxu0 0.0
        %3075 = vmatprep.subr.mxu0 0.0
        %3076 = vmatpush2.msra.mxu0 0.0
        %3077 = vmatprep.mubr.f32.mxu0 0.0
        %v3078 = vand.u32 %v274, 4294901760
        %v3079 = vsub.f32 %v274, %v3078
        %3080 = vmatmul.mubr.f32.gmra.mxu0 %v3079
        %v3081 = vpop.f32.mrf.mxu0
        %v3082 = vadd.f32 %v2792, %v3081
        %v3083 = vpop.f32.mrf.mxu0
        %3084 = vmatprep.mubr.f32.mxu0 0.0
        %v3085 = vand.u32 %v275, 4294901760
        %v3086 = vsub.f32 %v275, %v3085
        %3087 = vmatmul.mubr.f32.gmra.mxu0 %v3086
        %v3088 = vpop.f32.mrf.mxu0
        %v3089 = vadd.f32 %v2798, %v3088
        %v3090 = vpop.f32.mrf.mxu0
        %3091 = vmatprep.mubr.f32.mxu0 0.0
        %v3092 = vand.u32 %v276, 4294901760
        %v3093 = vsub.f32 %v276, %v3092
        %3094 = vmatmul.mubr.f32.gmra.mxu0 %v3093
        %v3095 = vpop.f32.mrf.mxu0
        %v3096 = vadd.f32 %v2804, %v3095
        %v3097 = vpop.f32.mrf.mxu0
        %3098 = vmatprep.mubr.f32.mxu0 0.0
        %v3099 = vand.u32 %v277, 4294901760
        %v3100 = vsub.f32 %v277, %v3099
        %3101 = vmatmul.mubr.f32.gmra.mxu0 %v3100
        %v3102 = vpop.f32.mrf.mxu0
        %v3103 = vadd.f32 %v2810, %v3102
        %v3104 = vpop.f32.mrf.mxu0
        %3105 = vmatprep.mubr.f32.mxu0 0.0
        %v3106 = vand.u32 %v278, 4294901760
        %v3107 = vsub.f32 %v278, %v3106
        %3108 = vmatmul.mubr.f32.gmra.mxu0 %v3107
        %v3109 = vpop.f32.mrf.mxu0
        %v3110 = vadd.f32 %v2816, %v3109
        %v3111 = vpop.f32.mrf.mxu0
        %3112 = vmatprep.mubr.f32.mxu0 0.0
        %v3113 = vand.u32 %v279, 4294901760
        %v3114 = vsub.f32 %v279, %v3113
        %3115 = vmatmul.mubr.f32.gmra.mxu0 %v3114
        %v3116 = vpop.f32.mrf.mxu0
        %v3117 = vadd.f32 %v2822, %v3116
        %v3118 = vpop.f32.mrf.mxu0
        %3119 = vmatprep.mubr.f32.mxu0 0.0
        %v3120 = vand.u32 %v280, 4294901760
        %v3121 = vsub.f32 %v280, %v3120
        %3122 = vmatmul.mubr.f32.gmra.mxu0 %v3121
        %v3123 = vpop.f32.mrf.mxu0
        %v3124 = vadd.f32 %v2828, %v3123
        %v3125 = vpop.f32.mrf.mxu0
        %3126 = vmatprep.mubr.f32.mxu0 0.0
        %v3127 = vand.u32 %v281, 4294901760
        %v3128 = vsub.f32 %v281, %v3127
        %3129 = vmatmul.mubr.f32.gmra.mxu0 %v3128
        %v3130 = vpop.f32.mrf.mxu0
        %v3131 = vadd.f32 %v2834, %v3130
        %v3132 = vpop.f32.mrf.mxu0
        %3133 = vmatprep.mubr.f32.mxu0 0.0
        %v3134 = vand.u32 %v282, 4294901760
        %v3135 = vsub.f32 %v282, %v3134
        %3136 = vmatmul.mubr.f32.gmra.mxu0 %v3135
        %v3137 = vpop.f32.mrf.mxu0
        %v3138 = vadd.f32 %v2840, %v3137
        %v3139 = vpop.f32.mrf.mxu0
        %3140 = vmatprep.mubr.f32.mxu0 0.0
        %v3141 = vand.u32 %v283, 4294901760
        %v3142 = vsub.f32 %v283, %v3141
        %3143 = vmatmul.mubr.f32.gmra.mxu0 %v3142
        %v3144 = vpop.f32.mrf.mxu0
        %v3145 = vadd.f32 %v2846, %v3144
        %v3146 = vpop.f32.mrf.mxu0
        %3147 = vmatprep.mubr.f32.mxu0 0.0
        %v3148 = vand.u32 %v284, 4294901760
        %v3149 = vsub.f32 %v284, %v3148
        %3150 = vmatmul.mubr.f32.gmra.mxu0 %v3149
        %v3151 = vpop.f32.mrf.mxu0
        %v3152 = vadd.f32 %v2852, %v3151
        %v3153 = vpop.f32.mrf.mxu0
        %3154 = vmatprep.mubr.f32.mxu0 0.0
        %v3155 = vand.u32 %v285, 4294901760
        %v3156 = vsub.f32 %v285, %v3155
        %3157 = vmatmul.mubr.f32.gmra.mxu0 %v3156
        %v3158 = vpop.f32.mrf.mxu0
        %v3159 = vadd.f32 %v2858, %v3158
        %v3160 = vpop.f32.mrf.mxu0
        %3161 = vmatprep.mubr.f32.mxu0 0.0
        %v3162 = vand.u32 %v286, 4294901760
        %v3163 = vsub.f32 %v286, %v3162
        %3164 = vmatmul.mubr.f32.gmra.mxu0 %v3163
        %v3165 = vpop.f32.mrf.mxu0
        %v3166 = vadd.f32 %v2864, %v3165
        %v3167 = vpop.f32.mrf.mxu0
        %3168 = vmatprep.mubr.f32.mxu0 0.0
        %v3169 = vand.u32 %v287, 4294901760
        %v3170 = vsub.f32 %v287, %v3169
        %3171 = vmatmul.mubr.f32.gmra.mxu0 %v3170
        %v3172 = vpop.f32.mrf.mxu0
        %v3173 = vadd.f32 %v2870, %v3172
        %v3174 = vpop.f32.mrf.mxu0
        %3175 = vmatprep.mubr.f32.mxu0 0.0
        %v3176 = vand.u32 %v288, 4294901760
        %v3177 = vsub.f32 %v288, %v3176
        %3178 = vmatmul.mubr.f32.gmra.mxu0 %v3177
        %v3179 = vpop.f32.mrf.mxu0
        %v3180 = vadd.f32 %v2876, %v3179
        %v3181 = vpop.f32.mrf.mxu0
        %3182 = vmatprep.mubr.f32.mxu0 0.0
        %v3183 = vand.u32 %v289, 4294901760
        %v3184 = vsub.f32 %v289, %v3183
        %3185 = vmatmul.mubr.f32.gmra.mxu0 %v3184
        %v3186 = vpop.f32.mrf.mxu0
        %v3187 = vadd.f32 %v2882, %v3186
        %v3188 = vpop.f32.mrf.mxu0
        %3189 = vmatprep.mubr.f32.mxu0 0.0
        %v3190 = vand.u32 %v290, 4294901760
        %v3191 = vsub.f32 %v290, %v3190
        %3192 = vmatmul.mubr.f32.gmra.mxu0 %v3191
        %v3193 = vpop.f32.mrf.mxu0
        %v3194 = vadd.f32 %v2888, %v3193
        %v3195 = vpop.f32.mrf.mxu0
        %3196 = vmatprep.mubr.f32.mxu0 0.0
        %v3197 = vand.u32 %v291, 4294901760
        %v3198 = vsub.f32 %v291, %v3197
        %3199 = vmatmul.mubr.f32.gmra.mxu0 %v3198
        %v3200 = vpop.f32.mrf.mxu0
        %v3201 = vadd.f32 %v2894, %v3200
        %v3202 = vpop.f32.mrf.mxu0
        %3203 = vmatprep.mubr.f32.mxu0 0.0
        %v3204 = vand.u32 %v292, 4294901760
        %v3205 = vsub.f32 %v292, %v3204
        %3206 = vmatmul.mubr.f32.gmra.mxu0 %v3205
        %v3207 = vpop.f32.mrf.mxu0
        %v3208 = vadd.f32 %v2900, %v3207
        %v3209 = vpop.f32.mrf.mxu0
        %3210 = vmatprep.mubr.f32.mxu0 0.0
        %v3211 = vand.u32 %v293, 4294901760
        %v3212 = vsub.f32 %v293, %v3211
        %3213 = vmatmul.mubr.f32.gmra.mxu0 %v3212
        %v3214 = vpop.f32.mrf.mxu0
        %v3215 = vadd.f32 %v2906, %v3214
        %v3216 = vpop.f32.mrf.mxu0
        %3217 = vmatprep.mubr.f32.mxu0 0.0
        %v3218 = vand.u32 %v294, 4294901760
        %v3219 = vsub.f32 %v294, %v3218
        %3220 = vmatmul.mubr.f32.gmra.mxu0 %v3219
        %v3221 = vpop.f32.mrf.mxu0
        %v3222 = vadd.f32 %v2912, %v3221
        %v3223 = vpop.f32.mrf.mxu0
        %3224 = vmatprep.mubr.f32.mxu0 0.0
        %v3225 = vand.u32 %v295, 4294901760
        %v3226 = vsub.f32 %v295, %v3225
        %3227 = vmatmul.mubr.f32.gmra.mxu0 %v3226
        %v3228 = vpop.f32.mrf.mxu0
        %v3229 = vadd.f32 %v2918, %v3228
        %v3230 = vpop.f32.mrf.mxu0
        %3231 = vmatprep.mubr.f32.mxu0 0.0
        %v3232 = vand.u32 %v296, 4294901760
        %v3233 = vsub.f32 %v296, %v3232
        %3234 = vmatmul.mubr.f32.gmra.mxu0 %v3233
        %v3235 = vpop.f32.mrf.mxu0
        %v3236 = vadd.f32 %v2924, %v3235
        %v3237 = vpop.f32.mrf.mxu0
        %3238 = vmatprep.mubr.f32.mxu0 0.0
        %v3239 = vand.u32 %v297, 4294901760
        %v3240 = vsub.f32 %v297, %v3239
        %3241 = vmatmul.mubr.f32.gmra.mxu0 %v3240
        %v3242 = vpop.f32.mrf.mxu0
        %v3243 = vadd.f32 %v2930, %v3242
        %v3244 = vpop.f32.mrf.mxu0
        %3245 = vmatprep.mubr.f32.mxu0 0.0
        %v3246 = vand.u32 %v298, 4294901760
        %v3247 = vsub.f32 %v298, %v3246
        %3248 = vmatmul.mubr.f32.gmra.mxu0 %v3247
        %v3249 = vpop.f32.mrf.mxu0
        %v3250 = vadd.f32 %v2936, %v3249
        %v3251 = vpop.f32.mrf.mxu0
        %3252 = vmatprep.mubr.f32.mxu0 0.0
        %v3253 = vand.u32 %v299, 4294901760
        %v3254 = vsub.f32 %v299, %v3253
        %3255 = vmatmul.mubr.f32.gmra.mxu0 %v3254
        %v3256 = vpop.f32.mrf.mxu0
        %v3257 = vadd.f32 %v2942, %v3256
        %v3258 = vpop.f32.mrf.mxu0
        %3259 = vmatprep.mubr.f32.mxu0 0.0
        %v3260 = vand.u32 %v300, 4294901760
        %v3261 = vsub.f32 %v300, %v3260
        %3262 = vmatmul.mubr.f32.gmra.mxu0 %v3261
        %v3263 = vpop.f32.mrf.mxu0
        %v3264 = vadd.f32 %v2948, %v3263
        %v3265 = vpop.f32.mrf.mxu0
        %3266 = vmatprep.mubr.f32.mxu0 0.0
        %v3267 = vand.u32 %v301, 4294901760
        %v3268 = vsub.f32 %v301, %v3267
        %3269 = vmatmul.mubr.f32.gmra.mxu0 %v3268
        %v3270 = vpop.f32.mrf.mxu0
        %v3271 = vadd.f32 %v2954, %v3270
        %v3272 = vpop.f32.mrf.mxu0
        %3273 = vmatprep.mubr.f32.mxu0 0.0
        %v3274 = vand.u32 %v302, 4294901760
        %v3275 = vsub.f32 %v302, %v3274
        %3276 = vmatmul.mubr.f32.gmra.mxu0 %v3275
        %v3277 = vpop.f32.mrf.mxu0
        %v3278 = vadd.f32 %v2960, %v3277
        %v3279 = vpop.f32.mrf.mxu0
        %3280 = vmatprep.mubr.f32.mxu0 0.0
        %v3281 = vand.u32 %v303, 4294901760
        %v3282 = vsub.f32 %v303, %v3281
        %3283 = vmatmul.mubr.f32.gmra.mxu0 %v3282
        %v3284 = vpop.f32.mrf.mxu0
        %v3285 = vadd.f32 %v2966, %v3284
        %v3286 = vpop.f32.mrf.mxu0
        %3287 = vmatprep.mubr.f32.mxu0 0.0
        %v3288 = vand.u32 %v304, 4294901760
        %v3289 = vsub.f32 %v304, %v3288
        %3290 = vmatmul.mubr.f32.gmra.mxu0 %v3289
        %v3291 = vpop.f32.mrf.mxu0
        %v3292 = vadd.f32 %v2972, %v3291
        %v3293 = vpop.f32.mrf.mxu0
        %3294 = vmatprep.mubr.f32.mxu0 0.0
        %v3295 = vand.u32 %v305, 4294901760
        %v3296 = vsub.f32 %v305, %v3295
        %3297 = vmatmul.mubr.f32.gmra.mxu0 %v3296
        %v3298 = vpop.f32.mrf.mxu0
        %v3299 = vadd.f32 %v2978, %v3298
        %v3300 = vpop.f32.mrf.mxu0
        %3301 = vdwg.mxu0
        %3302 = vmatprep.subr.mxu0 0.0
        %v3303 = vand.u32 %v273, 4294901760
        %3304 = vmatpush1.msra.mxu0 %v3303
        %3305 = vmatprep.subr.mxu0 0.0
        %v3306 = vand.u32 %v272, 4294901760
        %3307 = vmatpush1.msra.mxu0 %v3306
        %3308 = vmatprep.subr.mxu0 0.0
        %v3309 = vand.u32 %v271, 4294901760
        %3310 = vmatpush1.msra.mxu0 %v3309
        %3311 = vmatprep.subr.mxu0 0.0
        %v3312 = vand.u32 %v270, 4294901760
        %3313 = vmatpush1.msra.mxu0 %v3312
        %3314 = vmatprep.subr.mxu0 0.0
        %v3315 = vand.u32 %v269, 4294901760
        %3316 = vmatpush1.msra.mxu0 %v3315
        %3317 = vmatprep.subr.mxu0 0.0
        %v3318 = vand.u32 %v268, 4294901760
        %3319 = vmatpush1.msra.mxu0 %v3318
        %3320 = vmatprep.subr.mxu0 0.0
        %v3321 = vand.u32 %v267, 4294901760
        %3322 = vmatpush1.msra.mxu0 %v3321
        %3323 = vmatprep.subr.mxu0 0.0
        %v3324 = vand.u32 %v266, 4294901760
        %3325 = vmatpush1.msra.mxu0 %v3324
        %3326 = vmatprep.subr.mxu0 0.0
        %v3327 = vand.u32 %v265, 4294901760
        %3328 = vmatpush1.msra.mxu0 %v3327
        %3329 = vmatprep.subr.mxu0 0.0
        %v3330 = vand.u32 %v264, 4294901760
        %3331 = vmatpush1.msra.mxu0 %v3330
        %3332 = vmatprep.subr.mxu0 0.0
        %v3333 = vand.u32 %v263, 4294901760
        %3334 = vmatpush1.msra.mxu0 %v3333
        %3335 = vmatprep.subr.mxu0 0.0
        %v3336 = vand.u32 %v262, 4294901760
        %3337 = vmatpush1.msra.mxu0 %v3336
        %3338 = vmatprep.subr.mxu0 0.0
        %v3339 = vand.u32 %v261, 4294901760
        %3340 = vmatpush1.msra.mxu0 %v3339
        %3341 = vmatprep.subr.mxu0 0.0
        %v3342 = vand.u32 %v260, 4294901760
        %3343 = vmatpush1.msra.mxu0 %v3342
        %3344 = vmatprep.subr.mxu0 0.0
        %v3345 = vand.u32 %v259, 4294901760
        %3346 = vmatpush1.msra.mxu0 %v3345
        %3347 = vmatprep.subr.mxu0 0.0
        %v3348 = vand.u32 %v258, 4294901760
        %3349 = vmatpush1.msra.mxu0 %v3348
        %3350 = vmatprep.subr.mxu0 0.0
        %3351 = vmatpush2.msra.mxu0 0.0
        %3352 = vmatprep.subr.mxu0 0.0
        %3353 = vmatpush2.msra.mxu0 0.0
        %3354 = vmatprep.subr.mxu0 0.0
        %3355 = vmatpush2.msra.mxu0 0.0
        %3356 = vmatprep.subr.mxu0 0.0
        %3357 = vmatpush2.msra.mxu0 0.0
        %3358 = vmatprep.subr.mxu0 0.0
        %3359 = vmatpush2.msra.mxu0 0.0
        %3360 = vmatprep.subr.mxu0 0.0
        %3361 = vmatpush2.msra.mxu0 0.0
        %3362 = vmatprep.subr.mxu0 0.0
        %3363 = vmatpush2.msra.mxu0 0.0
        %3364 = vmatprep.subr.mxu0 0.0
        %3365 = vmatpush2.msra.mxu0 0.0
        %3366 = vmatprep.subr.mxu0 0.0
        %3367 = vmatpush2.msra.mxu0 0.0
        %3368 = vmatprep.subr.mxu0 0.0
        %3369 = vmatpush2.msra.mxu0 0.0
        %3370 = vmatprep.subr.mxu0 0.0
        %3371 = vmatpush2.msra.mxu0 0.0
        %3372 = vmatprep.subr.mxu0 0.0
        %3373 = vmatpush2.msra.mxu0 0.0
        %3374 = vmatprep.subr.mxu0 0.0
        %3375 = vmatpush2.msra.mxu0 0.0
        %3376 = vmatprep.subr.mxu0 0.0
        %3377 = vmatpush2.msra.mxu0 0.0
        %3378 = vmatprep.subr.mxu0 0.0
        %3379 = vmatpush2.msra.mxu0 0.0
        %3380 = vmatprep.subr.mxu0 0.0
        %3381 = vmatpush2.msra.mxu0 0.0
        %3382 = vmatprep.mubr.f32.mxu0 0.0
        %v3383 = vand.u32 %v274, 4294901760
        %v3384 = vsub.f32 %v274, %v3383
        %v3385 = vand.u32 %v3384, 4294901760
        %3386 = vmatmul.mubr.f32.gmra.mxu0 %v3385
        %v3387 = vpop.f32.mrf.mxu0
        %v3388 = vadd.f32 %v3082, %v3387
        %v3389 = vpop.f32.mrf.mxu0
        %3390 = vmatprep.mubr.f32.mxu0 0.0
        %v3391 = vand.u32 %v275, 4294901760
        %v3392 = vsub.f32 %v275, %v3391
        %v3393 = vand.u32 %v3392, 4294901760
        %3394 = vmatmul.mubr.f32.gmra.mxu0 %v3393
        %v3395 = vpop.f32.mrf.mxu0
        %v3396 = vadd.f32 %v3089, %v3395
        %v3397 = vpop.f32.mrf.mxu0
        %3398 = vmatprep.mubr.f32.mxu0 0.0
        %v3399 = vand.u32 %v276, 4294901760
        %v3400 = vsub.f32 %v276, %v3399
        %v3401 = vand.u32 %v3400, 4294901760
        %3402 = vmatmul.mubr.f32.gmra.mxu0 %v3401
        %v3403 = vpop.f32.mrf.mxu0
        %v3404 = vadd.f32 %v3096, %v3403
        %v3405 = vpop.f32.mrf.mxu0
        %3406 = vmatprep.mubr.f32.mxu0 0.0
        %v3407 = vand.u32 %v277, 4294901760
        %v3408 = vsub.f32 %v277, %v3407
        %v3409 = vand.u32 %v3408, 4294901760
        %3410 = vmatmul.mubr.f32.gmra.mxu0 %v3409
        %v3411 = vpop.f32.mrf.mxu0
        %v3412 = vadd.f32 %v3103, %v3411
        %v3413 = vpop.f32.mrf.mxu0
        %3414 = vmatprep.mubr.f32.mxu0 0.0
        %v3415 = vand.u32 %v278, 4294901760
        %v3416 = vsub.f32 %v278, %v3415
        %v3417 = vand.u32 %v3416, 4294901760
        %3418 = vmatmul.mubr.f32.gmra.mxu0 %v3417
        %v3419 = vpop.f32.mrf.mxu0
        %v3420 = vadd.f32 %v3110, %v3419
        %v3421 = vpop.f32.mrf.mxu0
        %3422 = vmatprep.mubr.f32.mxu0 0.0
        %v3423 = vand.u32 %v279, 4294901760
        %v3424 = vsub.f32 %v279, %v3423
        %v3425 = vand.u32 %v3424, 4294901760
        %3426 = vmatmul.mubr.f32.gmra.mxu0 %v3425
        %v3427 = vpop.f32.mrf.mxu0
        %v3428 = vadd.f32 %v3117, %v3427
        %v3429 = vpop.f32.mrf.mxu0
        %3430 = vmatprep.mubr.f32.mxu0 0.0
        %v3431 = vand.u32 %v280, 4294901760
        %v3432 = vsub.f32 %v280, %v3431
        %v3433 = vand.u32 %v3432, 4294901760
        %3434 = vmatmul.mubr.f32.gmra.mxu0 %v3433
        %v3435 = vpop.f32.mrf.mxu0
        %v3436 = vadd.f32 %v3124, %v3435
        %v3437 = vpop.f32.mrf.mxu0
        %3438 = vmatprep.mubr.f32.mxu0 0.0
        %v3439 = vand.u32 %v281, 4294901760
        %v3440 = vsub.f32 %v281, %v3439
        %v3441 = vand.u32 %v3440, 4294901760
        %3442 = vmatmul.mubr.f32.gmra.mxu0 %v3441
        %v3443 = vpop.f32.mrf.mxu0
        %v3444 = vadd.f32 %v3131, %v3443
        %v3445 = vpop.f32.mrf.mxu0
        %3446 = vmatprep.mubr.f32.mxu0 0.0
        %v3447 = vand.u32 %v282, 4294901760
        %v3448 = vsub.f32 %v282, %v3447
        %v3449 = vand.u32 %v3448, 4294901760
        %3450 = vmatmul.mubr.f32.gmra.mxu0 %v3449
        %v3451 = vpop.f32.mrf.mxu0
        %v3452 = vadd.f32 %v3138, %v3451
        %v3453 = vpop.f32.mrf.mxu0
        %3454 = vmatprep.mubr.f32.mxu0 0.0
        %v3455 = vand.u32 %v283, 4294901760
        %v3456 = vsub.f32 %v283, %v3455
        %v3457 = vand.u32 %v3456, 4294901760
        %3458 = vmatmul.mubr.f32.gmra.mxu0 %v3457
        %v3459 = vpop.f32.mrf.mxu0
        %v3460 = vadd.f32 %v3145, %v3459
        %v3461 = vpop.f32.mrf.mxu0
        %3462 = vmatprep.mubr.f32.mxu0 0.0
        %v3463 = vand.u32 %v284, 4294901760
        %v3464 = vsub.f32 %v284, %v3463
        %v3465 = vand.u32 %v3464, 4294901760
        %3466 = vmatmul.mubr.f32.gmra.mxu0 %v3465
        %v3467 = vpop.f32.mrf.mxu0
        %v3468 = vadd.f32 %v3152, %v3467
        %v3469 = vpop.f32.mrf.mxu0
        %3470 = vmatprep.mubr.f32.mxu0 0.0
        %v3471 = vand.u32 %v285, 4294901760
        %v3472 = vsub.f32 %v285, %v3471
        %v3473 = vand.u32 %v3472, 4294901760
        %3474 = vmatmul.mubr.f32.gmra.mxu0 %v3473
        %v3475 = vpop.f32.mrf.mxu0
        %v3476 = vadd.f32 %v3159, %v3475
        %v3477 = vpop.f32.mrf.mxu0
        %3478 = vmatprep.mubr.f32.mxu0 0.0
        %v3479 = vand.u32 %v286, 4294901760
        %v3480 = vsub.f32 %v286, %v3479
        %v3481 = vand.u32 %v3480, 4294901760
        %3482 = vmatmul.mubr.f32.gmra.mxu0 %v3481
        %v3483 = vpop.f32.mrf.mxu0
        %v3484 = vadd.f32 %v3166, %v3483
        %v3485 = vpop.f32.mrf.mxu0
        %3486 = vmatprep.mubr.f32.mxu0 0.0
        %v3487 = vand.u32 %v287, 4294901760
        %v3488 = vsub.f32 %v287, %v3487
        %v3489 = vand.u32 %v3488, 4294901760
        %3490 = vmatmul.mubr.f32.gmra.mxu0 %v3489
        %v3491 = vpop.f32.mrf.mxu0
        %v3492 = vadd.f32 %v3173, %v3491
        %v3493 = vpop.f32.mrf.mxu0
        %3494 = vmatprep.mubr.f32.mxu0 0.0
        %v3495 = vand.u32 %v288, 4294901760
        %v3496 = vsub.f32 %v288, %v3495
        %v3497 = vand.u32 %v3496, 4294901760
        %3498 = vmatmul.mubr.f32.gmra.mxu0 %v3497
        %v3499 = vpop.f32.mrf.mxu0
        %v3500 = vadd.f32 %v3180, %v3499
        %v3501 = vpop.f32.mrf.mxu0
        %3502 = vmatprep.mubr.f32.mxu0 0.0
        %v3503 = vand.u32 %v289, 4294901760
        %v3504 = vsub.f32 %v289, %v3503
        %v3505 = vand.u32 %v3504, 4294901760
        %3506 = vmatmul.mubr.f32.gmra.mxu0 %v3505
        %v3507 = vpop.f32.mrf.mxu0
        %v3508 = vadd.f32 %v3187, %v3507
        %v3509 = vpop.f32.mrf.mxu0
        %3510 = vmatprep.mubr.f32.mxu0 0.0
        %v3511 = vand.u32 %v290, 4294901760
        %v3512 = vsub.f32 %v290, %v3511
        %v3513 = vand.u32 %v3512, 4294901760
        %3514 = vmatmul.mubr.f32.gmra.mxu0 %v3513
        %v3515 = vpop.f32.mrf.mxu0
        %v3516 = vadd.f32 %v3194, %v3515
        %v3517 = vpop.f32.mrf.mxu0
        %3518 = vmatprep.mubr.f32.mxu0 0.0
        %v3519 = vand.u32 %v291, 4294901760
        %v3520 = vsub.f32 %v291, %v3519
        %v3521 = vand.u32 %v3520, 4294901760
        %3522 = vmatmul.mubr.f32.gmra.mxu0 %v3521
        %v3523 = vpop.f32.mrf.mxu0
        %v3524 = vadd.f32 %v3201, %v3523
        %v3525 = vpop.f32.mrf.mxu0
        %3526 = vmatprep.mubr.f32.mxu0 0.0
        %v3527 = vand.u32 %v292, 4294901760
        %v3528 = vsub.f32 %v292, %v3527
        %v3529 = vand.u32 %v3528, 4294901760
        %3530 = vmatmul.mubr.f32.gmra.mxu0 %v3529
        %v3531 = vpop.f32.mrf.mxu0
        %v3532 = vadd.f32 %v3208, %v3531
        %v3533 = vpop.f32.mrf.mxu0
        %3534 = vmatprep.mubr.f32.mxu0 0.0
        %v3535 = vand.u32 %v293, 4294901760
        %v3536 = vsub.f32 %v293, %v3535
        %v3537 = vand.u32 %v3536, 4294901760
        %3538 = vmatmul.mubr.f32.gmra.mxu0 %v3537
        %v3539 = vpop.f32.mrf.mxu0
        %v3540 = vadd.f32 %v3215, %v3539
        %v3541 = vpop.f32.mrf.mxu0
        %3542 = vmatprep.mubr.f32.mxu0 0.0
        %v3543 = vand.u32 %v294, 4294901760
        %v3544 = vsub.f32 %v294, %v3543
        %v3545 = vand.u32 %v3544, 4294901760
        %3546 = vmatmul.mubr.f32.gmra.mxu0 %v3545
        %v3547 = vpop.f32.mrf.mxu0
        %v3548 = vadd.f32 %v3222, %v3547
        %v3549 = vpop.f32.mrf.mxu0
        %3550 = vmatprep.mubr.f32.mxu0 0.0
        %v3551 = vand.u32 %v295, 4294901760
        %v3552 = vsub.f32 %v295, %v3551
        %v3553 = vand.u32 %v3552, 4294901760
        %3554 = vmatmul.mubr.f32.gmra.mxu0 %v3553
        %v3555 = vpop.f32.mrf.mxu0
        %v3556 = vadd.f32 %v3229, %v3555
        %v3557 = vpop.f32.mrf.mxu0
        %3558 = vmatprep.mubr.f32.mxu0 0.0
        %v3559 = vand.u32 %v296, 4294901760
        %v3560 = vsub.f32 %v296, %v3559
        %v3561 = vand.u32 %v3560, 4294901760
        %3562 = vmatmul.mubr.f32.gmra.mxu0 %v3561
        %v3563 = vpop.f32.mrf.mxu0
        %v3564 = vadd.f32 %v3236, %v3563
        %v3565 = vpop.f32.mrf.mxu0
        %3566 = vmatprep.mubr.f32.mxu0 0.0
        %v3567 = vand.u32 %v297, 4294901760
        %v3568 = vsub.f32 %v297, %v3567
        %v3569 = vand.u32 %v3568, 4294901760
        %3570 = vmatmul.mubr.f32.gmra.mxu0 %v3569
        %v3571 = vpop.f32.mrf.mxu0
        %v3572 = vadd.f32 %v3243, %v3571
        %v3573 = vpop.f32.mrf.mxu0
        %3574 = vmatprep.mubr.f32.mxu0 0.0
        %v3575 = vand.u32 %v298, 4294901760
        %v3576 = vsub.f32 %v298, %v3575
        %v3577 = vand.u32 %v3576, 4294901760
        %3578 = vmatmul.mubr.f32.gmra.mxu0 %v3577
        %v3579 = vpop.f32.mrf.mxu0
        %v3580 = vadd.f32 %v3250, %v3579
        %v3581 = vpop.f32.mrf.mxu0
        %3582 = vmatprep.mubr.f32.mxu0 0.0
        %v3583 = vand.u32 %v299, 4294901760
        %v3584 = vsub.f32 %v299, %v3583
        %v3585 = vand.u32 %v3584, 4294901760
        %3586 = vmatmul.mubr.f32.gmra.mxu0 %v3585
        %v3587 = vpop.f32.mrf.mxu0
        %v3588 = vadd.f32 %v3257, %v3587
        %v3589 = vpop.f32.mrf.mxu0
        %3590 = vmatprep.mubr.f32.mxu0 0.0
        %v3591 = vand.u32 %v300, 4294901760
        %v3592 = vsub.f32 %v300, %v3591
        %v3593 = vand.u32 %v3592, 4294901760
        %3594 = vmatmul.mubr.f32.gmra.mxu0 %v3593
        %v3595 = vpop.f32.mrf.mxu0
        %v3596 = vadd.f32 %v3264, %v3595
        %v3597 = vpop.f32.mrf.mxu0
        %3598 = vmatprep.mubr.f32.mxu0 0.0
        %v3599 = vand.u32 %v301, 4294901760
        %v3600 = vsub.f32 %v301, %v3599
        %v3601 = vand.u32 %v3600, 4294901760
        %3602 = vmatmul.mubr.f32.gmra.mxu0 %v3601
        %v3603 = vpop.f32.mrf.mxu0
        %v3604 = vadd.f32 %v3271, %v3603
        %v3605 = vpop.f32.mrf.mxu0
        %3606 = vmatprep.mubr.f32.mxu0 0.0
        %v3607 = vand.u32 %v302, 4294901760
        %v3608 = vsub.f32 %v302, %v3607
        %v3609 = vand.u32 %v3608, 4294901760
        %3610 = vmatmul.mubr.f32.gmra.mxu0 %v3609
        %v3611 = vpop.f32.mrf.mxu0
        %v3612 = vadd.f32 %v3278, %v3611
        %v3613 = vpop.f32.mrf.mxu0
        %3614 = vmatprep.mubr.f32.mxu0 0.0
        %v3615 = vand.u32 %v303, 4294901760
        %v3616 = vsub.f32 %v303, %v3615
        %v3617 = vand.u32 %v3616, 4294901760
        %3618 = vmatmul.mubr.f32.gmra.mxu0 %v3617
        %v3619 = vpop.f32.mrf.mxu0
        %v3620 = vadd.f32 %v3285, %v3619
        %v3621 = vpop.f32.mrf.mxu0
        %3622 = vmatprep.mubr.f32.mxu0 0.0
        %v3623 = vand.u32 %v304, 4294901760
        %v3624 = vsub.f32 %v304, %v3623
        %v3625 = vand.u32 %v3624, 4294901760
        %3626 = vmatmul.mubr.f32.gmra.mxu0 %v3625
        %v3627 = vpop.f32.mrf.mxu0
        %v3628 = vadd.f32 %v3292, %v3627
        %v3629 = vpop.f32.mrf.mxu0
        %3630 = vmatprep.mubr.f32.mxu0 0.0
        %v3631 = vand.u32 %v305, 4294901760
        %v3632 = vsub.f32 %v305, %v3631
        %v3633 = vand.u32 %v3632, 4294901760
        %3634 = vmatmul.mubr.f32.gmra.mxu0 %v3633
        %v3635 = vpop.f32.mrf.mxu0
        %v3636 = vadd.f32 %v3299, %v3635
        %v3637 = vpop.f32.mrf.mxu0
        %3638 = vdwg.mxu0
        %3639 = vmatprep.subr.mxu0 0.0
        %v3640 = vand.u32 %v273, 4294901760
        %v3641 = vsub.f32 %v273, %v3640
        %v3642 = vand.u32 %v3641, 4294901760
        %3643 = vmatpush1.msra.mxu0 %v3642
        %3644 = vmatprep.subr.mxu0 0.0
        %v3645 = vand.u32 %v272, 4294901760
        %v3646 = vsub.f32 %v272, %v3645
        %v3647 = vand.u32 %v3646, 4294901760
        %3648 = vmatpush1.msra.mxu0 %v3647
        %3649 = vmatprep.subr.mxu0 0.0
        %v3650 = vand.u32 %v271, 4294901760
        %v3651 = vsub.f32 %v271, %v3650
        %v3652 = vand.u32 %v3651, 4294901760
        %3653 = vmatpush1.msra.mxu0 %v3652
        %3654 = vmatprep.subr.mxu0 0.0
        %v3655 = vand.u32 %v270, 4294901760
        %v3656 = vsub.f32 %v270, %v3655
        %v3657 = vand.u32 %v3656, 4294901760
        %3658 = vmatpush1.msra.mxu0 %v3657
        %3659 = vmatprep.subr.mxu0 0.0
        %v3660 = vand.u32 %v269, 4294901760
        %v3661 = vsub.f32 %v269, %v3660
        %v3662 = vand.u32 %v3661, 4294901760
        %3663 = vmatpush1.msra.mxu0 %v3662
        %3664 = vmatprep.subr.mxu0 0.0
        %v3665 = vand.u32 %v268, 4294901760
        %v3666 = vsub.f32 %v268, %v3665
        %v3667 = vand.u32 %v3666, 4294901760
        %3668 = vmatpush1.msra.mxu0 %v3667
        %3669 = vmatprep.subr.mxu0 0.0
        %v3670 = vand.u32 %v267, 4294901760
        %v3671 = vsub.f32 %v267, %v3670
        %v3672 = vand.u32 %v3671, 4294901760
        %3673 = vmatpush1.msra.mxu0 %v3672
        %3674 = vmatprep.subr.mxu0 0.0
        %v3675 = vand.u32 %v266, 4294901760
        %v3676 = vsub.f32 %v266, %v3675
        %v3677 = vand.u32 %v3676, 4294901760
        %3678 = vmatpush1.msra.mxu0 %v3677
        %3679 = vmatprep.subr.mxu0 0.0
        %v3680 = vand.u32 %v265, 4294901760
        %v3681 = vsub.f32 %v265, %v3680
        %v3682 = vand.u32 %v3681, 4294901760
        %3683 = vmatpush1.msra.mxu0 %v3682
        %3684 = vmatprep.subr.mxu0 0.0
        %v3685 = vand.u32 %v264, 4294901760
        %v3686 = vsub.f32 %v264, %v3685
        %v3687 = vand.u32 %v3686, 4294901760
        %3688 = vmatpush1.msra.mxu0 %v3687
        %3689 = vmatprep.subr.mxu0 0.0
        %v3690 = vand.u32 %v263, 4294901760
        %v3691 = vsub.f32 %v263, %v3690
        %v3692 = vand.u32 %v3691, 4294901760
        %3693 = vmatpush1.msra.mxu0 %v3692
        %3694 = vmatprep.subr.mxu0 0.0
        %v3695 = vand.u32 %v262, 4294901760
        %v3696 = vsub.f32 %v262, %v3695
        %v3697 = vand.u32 %v3696, 4294901760
        %3698 = vmatpush1.msra.mxu0 %v3697
        %3699 = vmatprep.subr.mxu0 0.0
        %v3700 = vand.u32 %v261, 4294901760
        %v3701 = vsub.f32 %v261, %v3700
        %v3702 = vand.u32 %v3701, 4294901760
        %3703 = vmatpush1.msra.mxu0 %v3702
        %3704 = vmatprep.subr.mxu0 0.0
        %v3705 = vand.u32 %v260, 4294901760
        %v3706 = vsub.f32 %v260, %v3705
        %v3707 = vand.u32 %v3706, 4294901760
        %3708 = vmatpush1.msra.mxu0 %v3707
        %3709 = vmatprep.subr.mxu0 0.0
        %v3710 = vand.u32 %v259, 4294901760
        %v3711 = vsub.f32 %v259, %v3710
        %v3712 = vand.u32 %v3711, 4294901760
        %3713 = vmatpush1.msra.mxu0 %v3712
        %3714 = vmatprep.subr.mxu0 0.0
        %v3715 = vand.u32 %v258, 4294901760
        %v3716 = vsub.f32 %v258, %v3715
        %v3717 = vand.u32 %v3716, 4294901760
        %3718 = vmatpush1.msra.mxu0 %v3717
        %3719 = vmatprep.subr.mxu0 0.0
        %3720 = vmatpush2.msra.mxu0 0.0
        %3721 = vmatprep.subr.mxu0 0.0
        %3722 = vmatpush2.msra.mxu0 0.0
        %3723 = vmatprep.subr.mxu0 0.0
        %3724 = vmatpush2.msra.mxu0 0.0
        %3725 = vmatprep.subr.mxu0 0.0
        %3726 = vmatpush2.msra.mxu0 0.0
        %3727 = vmatprep.subr.mxu0 0.0
        %3728 = vmatpush2.msra.mxu0 0.0
        %3729 = vmatprep.subr.mxu0 0.0
        %3730 = vmatpush2.msra.mxu0 0.0
        %3731 = vmatprep.subr.mxu0 0.0
        %3732 = vmatpush2.msra.mxu0 0.0
        %3733 = vmatprep.subr.mxu0 0.0
        %3734 = vmatpush2.msra.mxu0 0.0
        %3735 = vmatprep.subr.mxu0 0.0
        %3736 = vmatpush2.msra.mxu0 0.0
        %3737 = vmatprep.subr.mxu0 0.0
        %3738 = vmatpush2.msra.mxu0 0.0
        %3739 = vmatprep.subr.mxu0 0.0
        %3740 = vmatpush2.msra.mxu0 0.0
        %3741 = vmatprep.subr.mxu0 0.0
        %3742 = vmatpush2.msra.mxu0 0.0
        %3743 = vmatprep.subr.mxu0 0.0
        %3744 = vmatpush2.msra.mxu0 0.0
        %3745 = vmatprep.subr.mxu0 0.0
        %3746 = vmatpush2.msra.mxu0 0.0
        %3747 = vmatprep.subr.mxu0 0.0
        %3748 = vmatpush2.msra.mxu0 0.0
        %3749 = vmatprep.subr.mxu0 0.0
        %3750 = vmatpush2.msra.mxu0 0.0
        %3751 = vmatprep.mubr.f32.mxu0 0.0
        %v3752 = vand.u32 %v274, 4294901760
        %3753 = vmatmul.mubr.f32.gmra.mxu0 %v3752
        %v3754 = vpop.f32.mrf.mxu0
        %v3755 = vadd.f32 %v3388, %v3754
        %v3756 = vpop.f32.mrf.mxu0
        %3757 = vmatprep.mubr.f32.mxu0 0.0
        %v3758 = vand.u32 %v275, 4294901760
        %3759 = vmatmul.mubr.f32.gmra.mxu0 %v3758
        %v3760 = vpop.f32.mrf.mxu0
        %v3761 = vadd.f32 %v3396, %v3760
        %v3762 = vpop.f32.mrf.mxu0
        %3763 = vmatprep.mubr.f32.mxu0 0.0
        %v3764 = vand.u32 %v276, 4294901760
        %3765 = vmatmul.mubr.f32.gmra.mxu0 %v3764
        %v3766 = vpop.f32.mrf.mxu0
        %v3767 = vadd.f32 %v3404, %v3766
        %v3768 = vpop.f32.mrf.mxu0
        %3769 = vmatprep.mubr.f32.mxu0 0.0
        %v3770 = vand.u32 %v277, 4294901760
        %3771 = vmatmul.mubr.f32.gmra.mxu0 %v3770
        %v3772 = vpop.f32.mrf.mxu0
        %v3773 = vadd.f32 %v3412, %v3772
        %v3774 = vpop.f32.mrf.mxu0
        %3775 = vmatprep.mubr.f32.mxu0 0.0
        %v3776 = vand.u32 %v278, 4294901760
        %3777 = vmatmul.mubr.f32.gmra.mxu0 %v3776
        %v3778 = vpop.f32.mrf.mxu0
        %v3779 = vadd.f32 %v3420, %v3778
        %v3780 = vpop.f32.mrf.mxu0
        %3781 = vmatprep.mubr.f32.mxu0 0.0
        %v3782 = vand.u32 %v279, 4294901760
        %3783 = vmatmul.mubr.f32.gmra.mxu0 %v3782
        %v3784 = vpop.f32.mrf.mxu0
        %v3785 = vadd.f32 %v3428, %v3784
        %v3786 = vpop.f32.mrf.mxu0
        %3787 = vmatprep.mubr.f32.mxu0 0.0
        %v3788 = vand.u32 %v280, 4294901760
        %3789 = vmatmul.mubr.f32.gmra.mxu0 %v3788
        %v3790 = vpop.f32.mrf.mxu0
        %v3791 = vadd.f32 %v3436, %v3790
        %v3792 = vpop.f32.mrf.mxu0
        %3793 = vmatprep.mubr.f32.mxu0 0.0
        %v3794 = vand.u32 %v281, 4294901760
        %3795 = vmatmul.mubr.f32.gmra.mxu0 %v3794
        %v3796 = vpop.f32.mrf.mxu0
        %v3797 = vadd.f32 %v3444, %v3796
        %v3798 = vpop.f32.mrf.mxu0
        %3799 = vmatprep.mubr.f32.mxu0 0.0
        %v3800 = vand.u32 %v282, 4294901760
        %3801 = vmatmul.mubr.f32.gmra.mxu0 %v3800
        %v3802 = vpop.f32.mrf.mxu0
        %v3803 = vadd.f32 %v3452, %v3802
        %v3804 = vpop.f32.mrf.mxu0
        %3805 = vmatprep.mubr.f32.mxu0 0.0
        %v3806 = vand.u32 %v283, 4294901760
        %3807 = vmatmul.mubr.f32.gmra.mxu0 %v3806
        %v3808 = vpop.f32.mrf.mxu0
        %v3809 = vadd.f32 %v3460, %v3808
        %v3810 = vpop.f32.mrf.mxu0
        %3811 = vmatprep.mubr.f32.mxu0 0.0
        %v3812 = vand.u32 %v284, 4294901760
        %3813 = vmatmul.mubr.f32.gmra.mxu0 %v3812
        %v3814 = vpop.f32.mrf.mxu0
        %v3815 = vadd.f32 %v3468, %v3814
        %v3816 = vpop.f32.mrf.mxu0
        %3817 = vmatprep.mubr.f32.mxu0 0.0
        %v3818 = vand.u32 %v285, 4294901760
        %3819 = vmatmul.mubr.f32.gmra.mxu0 %v3818
        %v3820 = vpop.f32.mrf.mxu0
        %v3821 = vadd.f32 %v3476, %v3820
        %v3822 = vpop.f32.mrf.mxu0
        %3823 = vmatprep.mubr.f32.mxu0 0.0
        %v3824 = vand.u32 %v286, 4294901760
        %3825 = vmatmul.mubr.f32.gmra.mxu0 %v3824
        %v3826 = vpop.f32.mrf.mxu0
        %v3827 = vadd.f32 %v3484, %v3826
        %v3828 = vpop.f32.mrf.mxu0
        %3829 = vmatprep.mubr.f32.mxu0 0.0
        %v3830 = vand.u32 %v287, 4294901760
        %3831 = vmatmul.mubr.f32.gmra.mxu0 %v3830
        %v3832 = vpop.f32.mrf.mxu0
        %v3833 = vadd.f32 %v3492, %v3832
        %v3834 = vpop.f32.mrf.mxu0
        %3835 = vmatprep.mubr.f32.mxu0 0.0
        %v3836 = vand.u32 %v288, 4294901760
        %3837 = vmatmul.mubr.f32.gmra.mxu0 %v3836
        %v3838 = vpop.f32.mrf.mxu0
        %v3839 = vadd.f32 %v3500, %v3838
        %v3840 = vpop.f32.mrf.mxu0
        %3841 = vmatprep.mubr.f32.mxu0 0.0
        %v3842 = vand.u32 %v289, 4294901760
        %3843 = vmatmul.mubr.f32.gmra.mxu0 %v3842
        %v3844 = vpop.f32.mrf.mxu0
        %v3845 = vadd.f32 %v3508, %v3844
        %v3846 = vpop.f32.mrf.mxu0
        %3847 = vmatprep.mubr.f32.mxu0 0.0
        %v3848 = vand.u32 %v290, 4294901760
        %3849 = vmatmul.mubr.f32.gmra.mxu0 %v3848
        %v3850 = vpop.f32.mrf.mxu0
        %v3851 = vadd.f32 %v3516, %v3850
        %v3852 = vpop.f32.mrf.mxu0
        %3853 = vmatprep.mubr.f32.mxu0 0.0
        %v3854 = vand.u32 %v291, 4294901760
        %3855 = vmatmul.mubr.f32.gmra.mxu0 %v3854
        %v3856 = vpop.f32.mrf.mxu0
        %v3857 = vadd.f32 %v3524, %v3856
        %v3858 = vpop.f32.mrf.mxu0
        %3859 = vmatprep.mubr.f32.mxu0 0.0
        %v3860 = vand.u32 %v292, 4294901760
        %3861 = vmatmul.mubr.f32.gmra.mxu0 %v3860
        %v3862 = vpop.f32.mrf.mxu0
        %v3863 = vadd.f32 %v3532, %v3862
        %v3864 = vpop.f32.mrf.mxu0
        %3865 = vmatprep.mubr.f32.mxu0 0.0
        %v3866 = vand.u32 %v293, 4294901760
        %3867 = vmatmul.mubr.f32.gmra.mxu0 %v3866
        %v3868 = vpop.f32.mrf.mxu0
        %v3869 = vadd.f32 %v3540, %v3868
        %v3870 = vpop.f32.mrf.mxu0
        %3871 = vmatprep.mubr.f32.mxu0 0.0
        %v3872 = vand.u32 %v294, 4294901760
        %3873 = vmatmul.mubr.f32.gmra.mxu0 %v3872
        %v3874 = vpop.f32.mrf.mxu0
        %v3875 = vadd.f32 %v3548, %v3874
        %v3876 = vpop.f32.mrf.mxu0
        %3877 = vmatprep.mubr.f32.mxu0 0.0
        %v3878 = vand.u32 %v295, 4294901760
        %3879 = vmatmul.mubr.f32.gmra.mxu0 %v3878
        %v3880 = vpop.f32.mrf.mxu0
        %v3881 = vadd.f32 %v3556, %v3880
        %v3882 = vpop.f32.mrf.mxu0
        %3883 = vmatprep.mubr.f32.mxu0 0.0
        %v3884 = vand.u32 %v296, 4294901760
        %3885 = vmatmul.mubr.f32.gmra.mxu0 %v3884
        %v3886 = vpop.f32.mrf.mxu0
        %v3887 = vadd.f32 %v3564, %v3886
        %v3888 = vpop.f32.mrf.mxu0
        %3889 = vmatprep.mubr.f32.mxu0 0.0
        %v3890 = vand.u32 %v297, 4294901760
        %3891 = vmatmul.mubr.f32.gmra.mxu0 %v3890
        %v3892 = vpop.f32.mrf.mxu0
        %v3893 = vadd.f32 %v3572, %v3892
        %v3894 = vpop.f32.mrf.mxu0
        %3895 = vmatprep.mubr.f32.mxu0 0.0
        %v3896 = vand.u32 %v298, 4294901760
        %3897 = vmatmul.mubr.f32.gmra.mxu0 %v3896
        %v3898 = vpop.f32.mrf.mxu0
        %v3899 = vadd.f32 %v3580, %v3898
        %v3900 = vpop.f32.mrf.mxu0
        %3901 = vmatprep.mubr.f32.mxu0 0.0
        %v3902 = vand.u32 %v299, 4294901760
        %3903 = vmatmul.mubr.f32.gmra.mxu0 %v3902
        %v3904 = vpop.f32.mrf.mxu0
        %v3905 = vadd.f32 %v3588, %v3904
        %v3906 = vpop.f32.mrf.mxu0
        %3907 = vmatprep.mubr.f32.mxu0 0.0
        %v3908 = vand.u32 %v300, 4294901760
        %3909 = vmatmul.mubr.f32.gmra.mxu0 %v3908
        %v3910 = vpop.f32.mrf.mxu0
        %v3911 = vadd.f32 %v3596, %v3910
        %v3912 = vpop.f32.mrf.mxu0
        %3913 = vmatprep.mubr.f32.mxu0 0.0
        %v3914 = vand.u32 %v301, 4294901760
        %3915 = vmatmul.mubr.f32.gmra.mxu0 %v3914
        %v3916 = vpop.f32.mrf.mxu0
        %v3917 = vadd.f32 %v3604, %v3916
        %v3918 = vpop.f32.mrf.mxu0
        %3919 = vmatprep.mubr.f32.mxu0 0.0
        %v3920 = vand.u32 %v302, 4294901760
        %3921 = vmatmul.mubr.f32.gmra.mxu0 %v3920
        %v3922 = vpop.f32.mrf.mxu0
        %v3923 = vadd.f32 %v3612, %v3922
        %v3924 = vpop.f32.mrf.mxu0
        %3925 = vmatprep.mubr.f32.mxu0 0.0
        %v3926 = vand.u32 %v303, 4294901760
        %3927 = vmatmul.mubr.f32.gmra.mxu0 %v3926
        %v3928 = vpop.f32.mrf.mxu0
        %v3929 = vadd.f32 %v3620, %v3928
        %v3930 = vpop.f32.mrf.mxu0
        %3931 = vmatprep.mubr.f32.mxu0 0.0
        %v3932 = vand.u32 %v304, 4294901760
        %3933 = vmatmul.mubr.f32.gmra.mxu0 %v3932
        %v3934 = vpop.f32.mrf.mxu0
        %v3935 = vadd.f32 %v3628, %v3934
        %v3936 = vpop.f32.mrf.mxu0
        %3937 = vmatprep.mubr.f32.mxu0 0.0
        %v3938 = vand.u32 %v305, 4294901760
        %3939 = vmatmul.mubr.f32.gmra.mxu0 %v3938
        %v3940 = vpop.f32.mrf.mxu0
        %v3941 = vadd.f32 %v3636, %v3940
        %v3942 = vpop.f32.mrf.mxu0
        %3943 = vdwg.mxu0
        %3944 = vmatprep.subr.mxu0 0.0
        %v3945 = vand.u32 %v273, 4294901760
        %3946 = vmatpush1.msra.mxu0 %v3945
        %3947 = vmatprep.subr.mxu0 0.0
        %v3948 = vand.u32 %v272, 4294901760
        %3949 = vmatpush1.msra.mxu0 %v3948
        %3950 = vmatprep.subr.mxu0 0.0
        %v3951 = vand.u32 %v271, 4294901760
        %3952 = vmatpush1.msra.mxu0 %v3951
        %3953 = vmatprep.subr.mxu0 0.0
        %v3954 = vand.u32 %v270, 4294901760
        %3955 = vmatpush1.msra.mxu0 %v3954
        %3956 = vmatprep.subr.mxu0 0.0
        %v3957 = vand.u32 %v269, 4294901760
        %3958 = vmatpush1.msra.mxu0 %v3957
        %3959 = vmatprep.subr.mxu0 0.0
        %v3960 = vand.u32 %v268, 4294901760
        %3961 = vmatpush1.msra.mxu0 %v3960
        %3962 = vmatprep.subr.mxu0 0.0
        %v3963 = vand.u32 %v267, 4294901760
        %3964 = vmatpush1.msra.mxu0 %v3963
        %3965 = vmatprep.subr.mxu0 0.0
        %v3966 = vand.u32 %v266, 4294901760
        %3967 = vmatpush1.msra.mxu0 %v3966
        %3968 = vmatprep.subr.mxu0 0.0
        %v3969 = vand.u32 %v265, 4294901760
        %3970 = vmatpush1.msra.mxu0 %v3969
        %3971 = vmatprep.subr.mxu0 0.0
        %v3972 = vand.u32 %v264, 4294901760
        %3973 = vmatpush1.msra.mxu0 %v3972
        %3974 = vmatprep.subr.mxu0 0.0
        %v3975 = vand.u32 %v263, 4294901760
        %3976 = vmatpush1.msra.mxu0 %v3975
        %3977 = vmatprep.subr.mxu0 0.0
        %v3978 = vand.u32 %v262, 4294901760
        %3979 = vmatpush1.msra.mxu0 %v3978
        %3980 = vmatprep.subr.mxu0 0.0
        %v3981 = vand.u32 %v261, 4294901760
        %3982 = vmatpush1.msra.mxu0 %v3981
        %3983 = vmatprep.subr.mxu0 0.0
        %v3984 = vand.u32 %v260, 4294901760
        %3985 = vmatpush1.msra.mxu0 %v3984
        %3986 = vmatprep.subr.mxu0 0.0
        %v3987 = vand.u32 %v259, 4294901760
        %3988 = vmatpush1.msra.mxu0 %v3987
        %3989 = vmatprep.subr.mxu0 0.0
        %v3990 = vand.u32 %v258, 4294901760
        %3991 = vmatpush1.msra.mxu0 %v3990
        %3992 = vmatprep.subr.mxu0 0.0
        %3993 = vmatpush2.msra.mxu0 0.0
        %3994 = vmatprep.subr.mxu0 0.0
        %3995 = vmatpush2.msra.mxu0 0.0
        %3996 = vmatprep.subr.mxu0 0.0
        %3997 = vmatpush2.msra.mxu0 0.0
        %3998 = vmatprep.subr.mxu0 0.0
        %3999 = vmatpush2.msra.mxu0 0.0
        %4000 = vmatprep.subr.mxu0 0.0
        %4001 = vmatpush2.msra.mxu0 0.0
        %4002 = vmatprep.subr.mxu0 0.0
        %4003 = vmatpush2.msra.mxu0 0.0
        %4004 = vmatprep.subr.mxu0 0.0
        %4005 = vmatpush2.msra.mxu0 0.0
        %4006 = vmatprep.subr.mxu0 0.0
        %4007 = vmatpush2.msra.mxu0 0.0
        %4008 = vmatprep.subr.mxu0 0.0
        %4009 = vmatpush2.msra.mxu0 0.0
        %4010 = vmatprep.subr.mxu0 0.0
        %4011 = vmatpush2.msra.mxu0 0.0
        %4012 = vmatprep.subr.mxu0 0.0
        %4013 = vmatpush2.msra.mxu0 0.0
        %4014 = vmatprep.subr.mxu0 0.0
        %4015 = vmatpush2.msra.mxu0 0.0
        %4016 = vmatprep.subr.mxu0 0.0
        %4017 = vmatpush2.msra.mxu0 0.0
        %4018 = vmatprep.subr.mxu0 0.0
        %4019 = vmatpush2.msra.mxu0 0.0
        %4020 = vmatprep.subr.mxu0 0.0
        %4021 = vmatpush2.msra.mxu0 0.0
        %4022 = vmatprep.subr.mxu0 0.0
        %4023 = vmatpush2.msra.mxu0 0.0
        %4024 = vmatprep.mubr.f32.mxu0 0.0
        %v4025 = vand.u32 %v274, 4294901760
        %4026 = vmatmul.mubr.f32.gmra.mxu0 %v4025
        %v4027 = vpop.f32.mrf.mxu0
        %v4028 = vadd.f32 %v3755, %v4027
        %v4029 = vpop.f32.mrf.mxu0
        %4030 = vmatprep.mubr.f32.mxu0 0.0
        %v4031 = vand.u32 %v275, 4294901760
        %4032 = vmatmul.mubr.f32.gmra.mxu0 %v4031
        %v4033 = vpop.f32.mrf.mxu0
        %v4034 = vadd.f32 %v3761, %v4033
        %v4035 = vpop.f32.mrf.mxu0
        %4036 = vmatprep.mubr.f32.mxu0 0.0
        %v4037 = vand.u32 %v276, 4294901760
        %4038 = vmatmul.mubr.f32.gmra.mxu0 %v4037
        %v4039 = vpop.f32.mrf.mxu0
        %v4040 = vadd.f32 %v3767, %v4039
        %v4041 = vpop.f32.mrf.mxu0
        %4042 = vmatprep.mubr.f32.mxu0 0.0
        %v4043 = vand.u32 %v277, 4294901760
        %4044 = vmatmul.mubr.f32.gmra.mxu0 %v4043
        %v4045 = vpop.f32.mrf.mxu0
        %v4046 = vadd.f32 %v3773, %v4045
        %v4047 = vpop.f32.mrf.mxu0
        %4048 = vmatprep.mubr.f32.mxu0 0.0
        %v4049 = vand.u32 %v278, 4294901760
        %4050 = vmatmul.mubr.f32.gmra.mxu0 %v4049
        %v4051 = vpop.f32.mrf.mxu0
        %v4052 = vadd.f32 %v3779, %v4051
        %v4053 = vpop.f32.mrf.mxu0
        %4054 = vmatprep.mubr.f32.mxu0 0.0
        %v4055 = vand.u32 %v279, 4294901760
        %4056 = vmatmul.mubr.f32.gmra.mxu0 %v4055
        %v4057 = vpop.f32.mrf.mxu0
        %v4058 = vadd.f32 %v3785, %v4057
        %v4059 = vpop.f32.mrf.mxu0
        %4060 = vmatprep.mubr.f32.mxu0 0.0
        %v4061 = vand.u32 %v280, 4294901760
        %4062 = vmatmul.mubr.f32.gmra.mxu0 %v4061
        %v4063 = vpop.f32.mrf.mxu0
        %v4064 = vadd.f32 %v3791, %v4063
        %v4065 = vpop.f32.mrf.mxu0
        %4066 = vmatprep.mubr.f32.mxu0 0.0
        %v4067 = vand.u32 %v281, 4294901760
        %4068 = vmatmul.mubr.f32.gmra.mxu0 %v4067
        %v4069 = vpop.f32.mrf.mxu0
        %v4070 = vadd.f32 %v3797, %v4069
        %v4071 = vpop.f32.mrf.mxu0
        %4072 = vmatprep.mubr.f32.mxu0 0.0
        %v4073 = vand.u32 %v282, 4294901760
        %4074 = vmatmul.mubr.f32.gmra.mxu0 %v4073
        %v4075 = vpop.f32.mrf.mxu0
        %v4076 = vadd.f32 %v3803, %v4075
        %v4077 = vpop.f32.mrf.mxu0
        %4078 = vmatprep.mubr.f32.mxu0 0.0
        %v4079 = vand.u32 %v283, 4294901760
        %4080 = vmatmul.mubr.f32.gmra.mxu0 %v4079
        %v4081 = vpop.f32.mrf.mxu0
        %v4082 = vadd.f32 %v3809, %v4081
        %v4083 = vpop.f32.mrf.mxu0
        %4084 = vmatprep.mubr.f32.mxu0 0.0
        %v4085 = vand.u32 %v284, 4294901760
        %4086 = vmatmul.mubr.f32.gmra.mxu0 %v4085
        %v4087 = vpop.f32.mrf.mxu0
        %v4088 = vadd.f32 %v3815, %v4087
        %v4089 = vpop.f32.mrf.mxu0
        %4090 = vmatprep.mubr.f32.mxu0 0.0
        %v4091 = vand.u32 %v285, 4294901760
        %4092 = vmatmul.mubr.f32.gmra.mxu0 %v4091
        %v4093 = vpop.f32.mrf.mxu0
        %v4094 = vadd.f32 %v3821, %v4093
        %v4095 = vpop.f32.mrf.mxu0
        %4096 = vmatprep.mubr.f32.mxu0 0.0
        %v4097 = vand.u32 %v286, 4294901760
        %4098 = vmatmul.mubr.f32.gmra.mxu0 %v4097
        %v4099 = vpop.f32.mrf.mxu0
        %v4100 = vadd.f32 %v3827, %v4099
        %v4101 = vpop.f32.mrf.mxu0
        %4102 = vmatprep.mubr.f32.mxu0 0.0
        %v4103 = vand.u32 %v287, 4294901760
        %4104 = vmatmul.mubr.f32.gmra.mxu0 %v4103
        %v4105 = vpop.f32.mrf.mxu0
        %v4106 = vadd.f32 %v3833, %v4105
        %v4107 = vpop.f32.mrf.mxu0
        %4108 = vmatprep.mubr.f32.mxu0 0.0
        %v4109 = vand.u32 %v288, 4294901760
        %4110 = vmatmul.mubr.f32.gmra.mxu0 %v4109
        %v4111 = vpop.f32.mrf.mxu0
        %v4112 = vadd.f32 %v3839, %v4111
        %v4113 = vpop.f32.mrf.mxu0
        %4114 = vmatprep.mubr.f32.mxu0 0.0
        %v4115 = vand.u32 %v289, 4294901760
        %4116 = vmatmul.mubr.f32.gmra.mxu0 %v4115
        %v4117 = vpop.f32.mrf.mxu0
        %v4118 = vadd.f32 %v3845, %v4117
        %v4119 = vpop.f32.mrf.mxu0
        %4120 = vmatprep.mubr.f32.mxu0 0.0
        %v4121 = vand.u32 %v290, 4294901760
        %4122 = vmatmul.mubr.f32.gmra.mxu0 %v4121
        %v4123 = vpop.f32.mrf.mxu0
        %v4124 = vadd.f32 %v3851, %v4123
        %v4125 = vpop.f32.mrf.mxu0
        %4126 = vmatprep.mubr.f32.mxu0 0.0
        %v4127 = vand.u32 %v291, 4294901760
        %4128 = vmatmul.mubr.f32.gmra.mxu0 %v4127
        %v4129 = vpop.f32.mrf.mxu0
        %v4130 = vadd.f32 %v3857, %v4129
        %v4131 = vpop.f32.mrf.mxu0
        %4132 = vmatprep.mubr.f32.mxu0 0.0
        %v4133 = vand.u32 %v292, 4294901760
        %4134 = vmatmul.mubr.f32.gmra.mxu0 %v4133
        %v4135 = vpop.f32.mrf.mxu0
        %v4136 = vadd.f32 %v3863, %v4135
        %v4137 = vpop.f32.mrf.mxu0
        %4138 = vmatprep.mubr.f32.mxu0 0.0
        %v4139 = vand.u32 %v293, 4294901760
        %4140 = vmatmul.mubr.f32.gmra.mxu0 %v4139
        %v4141 = vpop.f32.mrf.mxu0
        %v4142 = vadd.f32 %v3869, %v4141
        %v4143 = vpop.f32.mrf.mxu0
        %4144 = vmatprep.mubr.f32.mxu0 0.0
        %v4145 = vand.u32 %v294, 4294901760
        %4146 = vmatmul.mubr.f32.gmra.mxu0 %v4145
        %v4147 = vpop.f32.mrf.mxu0
        %v4148 = vadd.f32 %v3875, %v4147
        %v4149 = vpop.f32.mrf.mxu0
        %4150 = vmatprep.mubr.f32.mxu0 0.0
        %v4151 = vand.u32 %v295, 4294901760
        %4152 = vmatmul.mubr.f32.gmra.mxu0 %v4151
        %v4153 = vpop.f32.mrf.mxu0
        %v4154 = vadd.f32 %v3881, %v4153
        %v4155 = vpop.f32.mrf.mxu0
        %4156 = vmatprep.mubr.f32.mxu0 0.0
        %v4157 = vand.u32 %v296, 4294901760
        %4158 = vmatmul.mubr.f32.gmra.mxu0 %v4157
        %v4159 = vpop.f32.mrf.mxu0
        %v4160 = vadd.f32 %v3887, %v4159
        %v4161 = vpop.f32.mrf.mxu0
        %4162 = vmatprep.mubr.f32.mxu0 0.0
        %v4163 = vand.u32 %v297, 4294901760
        %4164 = vmatmul.mubr.f32.gmra.mxu0 %v4163
        %v4165 = vpop.f32.mrf.mxu0
        %v4166 = vadd.f32 %v3893, %v4165
        %v4167 = vpop.f32.mrf.mxu0
        %4168 = vmatprep.mubr.f32.mxu0 0.0
        %v4169 = vand.u32 %v298, 4294901760
        %4170 = vmatmul.mubr.f32.gmra.mxu0 %v4169
        %v4171 = vpop.f32.mrf.mxu0
        %v4172 = vadd.f32 %v3899, %v4171
        %v4173 = vpop.f32.mrf.mxu0
        %4174 = vmatprep.mubr.f32.mxu0 0.0
        %v4175 = vand.u32 %v299, 4294901760
        %4176 = vmatmul.mubr.f32.gmra.mxu0 %v4175
        %v4177 = vpop.f32.mrf.mxu0
        %v4178 = vadd.f32 %v3905, %v4177
        %v4179 = vpop.f32.mrf.mxu0
        %4180 = vmatprep.mubr.f32.mxu0 0.0
        %v4181 = vand.u32 %v300, 4294901760
        %4182 = vmatmul.mubr.f32.gmra.mxu0 %v4181
        %v4183 = vpop.f32.mrf.mxu0
        %v4184 = vadd.f32 %v3911, %v4183
        %v4185 = vpop.f32.mrf.mxu0
        %4186 = vmatprep.mubr.f32.mxu0 0.0
        %v4187 = vand.u32 %v301, 4294901760
        %4188 = vmatmul.mubr.f32.gmra.mxu0 %v4187
        %v4189 = vpop.f32.mrf.mxu0
        %v4190 = vadd.f32 %v3917, %v4189
        %v4191 = vpop.f32.mrf.mxu0
        %4192 = vmatprep.mubr.f32.mxu0 0.0
        %v4193 = vand.u32 %v302, 4294901760
        %4194 = vmatmul.mubr.f32.gmra.mxu0 %v4193
        %v4195 = vpop.f32.mrf.mxu0
        %v4196 = vadd.f32 %v3923, %v4195
        %v4197 = vpop.f32.mrf.mxu0
        %4198 = vmatprep.mubr.f32.mxu0 0.0
        %v4199 = vand.u32 %v303, 4294901760
        %4200 = vmatmul.mubr.f32.gmra.mxu0 %v4199
        %v4201 = vpop.f32.mrf.mxu0
        %v4202 = vadd.f32 %v3929, %v4201
        %v4203 = vpop.f32.mrf.mxu0
        %4204 = vmatprep.mubr.f32.mxu0 0.0
        %v4205 = vand.u32 %v304, 4294901760
        %4206 = vmatmul.mubr.f32.gmra.mxu0 %v4205
        %v4207 = vpop.f32.mrf.mxu0
        %v4208 = vadd.f32 %v3935, %v4207
        %v4209 = vpop.f32.mrf.mxu0
        %4210 = vmatprep.mubr.f32.mxu0 0.0
        %v4211 = vand.u32 %v305, 4294901760
        %4212 = vmatmul.mubr.f32.gmra.mxu0 %v4211
        %v4213 = vpop.f32.mrf.mxu0
        %v4214 = vadd.f32 %v3941, %v4213
        %v4215 = vpop.f32.mrf.mxu0
        %4216 = vdwg.mxu0
        %s4217 = sld [smem:[#allocation4]]
        %v4218 = vstv %s4217
        %v4219 = vadd.f32 %v4218, %v4028
        %v4220 = vadd.f32 %v4218, %v4034
        %v4221 = vadd.f32 %v4218, %v4040
        %v4222 = vadd.f32 %v4218, %v4046
        %v4223 = vadd.f32 %v4218, %v4052
        %v4224 = vadd.f32 %v4218, %v4058
        %v4225 = vadd.f32 %v4218, %v4064
        %v4226 = vadd.f32 %v4218, %v4070
        %v4227 = vadd.f32 %v4218, %v4076
        %v4228 = vadd.f32 %v4218, %v4082
        %v4229 = vadd.f32 %v4218, %v4088
        %v4230 = vadd.f32 %v4218, %v4094
        %v4231 = vadd.f32 %v4218, %v4100
        %v4232 = vadd.f32 %v4218, %v4106
        %v4233 = vadd.f32 %v4218, %v4112
        %v4234 = vadd.f32 %v4218, %v4118
        %s4235 = sld [smem:[#allocation4 + $0x1]]
        %v4236 = vstv %s4235
        %v4237 = vadd.f32 %v4236, %v4124
        %v4238 = vadd.f32 %v4236, %v4130
        %v4239 = vadd.f32 %v4236, %v4136
        %v4240 = vadd.f32 %v4236, %v4142
        %v4241 = vadd.f32 %v4236, %v4148
        %v4242 = vadd.f32 %v4236, %v4154
        %v4243 = vadd.f32 %v4236, %v4160
        %v4244 = vadd.f32 %v4236, %v4166
        %v4245 = vadd.f32 %v4236, %v4172
        %v4246 = vadd.f32 %v4236, %v4178
        %v4247 = vadd.f32 %v4236, %v4184
        %v4248 = vadd.f32 %v4236, %v4190
        %v4249 = vadd.f32 %v4236, %v4196
        %v4250 = vadd.f32 %v4236, %v4202
        %v4251 = vadd.f32 %v4236, %v4208
        %v4252 = vadd.f32 %v4236, %v4214
        %v4253 = vld [vmem:[%s241] sm:$0xff]
        %v4254 = vld [vmem:[%s241 + $0x8] sm:$0xff]
        %v4255 = vld [vmem:[%s241 + $0x10] sm:$0xff]
        %v4256 = vld [vmem:[%s241 + $0x18] sm:$0xff]
        %v4257 = vld [vmem:[%s241 + $0x20] sm:$0xff]
        %v4258 = vld [vmem:[%s241 + $0x28] sm:$0xff]
        %v4259 = vld [vmem:[%s241 + $0x30] sm:$0xff]
        %v4260 = vld [vmem:[%s241 + $0x38] sm:$0xff]
        %v4261 = vld [vmem:[%s241 + $0x40] sm:$0xff]
        %v4262 = vld [vmem:[%s241 + $0x48] sm:$0xff]
        %v4263 = vld [vmem:[%s241 + $0x50] sm:$0xff]
        %v4264 = vld [vmem:[%s241 + $0x58] sm:$0xff]
        %v4265 = vld [vmem:[%s241 + $0x60] sm:$0xff]
        %v4266 = vld [vmem:[%s241 + $0x68] sm:$0xff]
        %v4267 = vld [vmem:[%s241 + $0x70] sm:$0xff]
        %v4268 = vld [vmem:[%s241 + $0x78] sm:$0xff]
        %v4269 = vsub.f32 %v4253, %v4219
        %v4270 = vsub.f32 %v4254, %v4220
        %v4271 = vsub.f32 %v4255, %v4221
        %v4272 = vsub.f32 %v4256, %v4222
        %v4273 = vsub.f32 %v4257, %v4223
        %v4274 = vsub.f32 %v4258, %v4224
        %v4275 = vsub.f32 %v4259, %v4225
        %v4276 = vsub.f32 %v4260, %v4226
        %v4277 = vsub.f32 %v4261, %v4227
        %v4278 = vsub.f32 %v4262, %v4228
        %v4279 = vsub.f32 %v4263, %v4229
        %v4280 = vsub.f32 %v4264, %v4230
        %v4281 = vsub.f32 %v4265, %v4231
        %v4282 = vsub.f32 %v4266, %v4232
        %v4283 = vsub.f32 %v4267, %v4233
        %v4284 = vsub.f32 %v4268, %v4234
        %v4285 = vmul.f32 %v4269, %v4269
        %v4286 = vmul.f32 %v4270, %v4270
        %v4287 = vmul.f32 %v4271, %v4271
        %v4288 = vmul.f32 %v4272, %v4272
        %v4289 = vmul.f32 %v4273, %v4273
        %v4290 = vmul.f32 %v4274, %v4274
        %v4291 = vmul.f32 %v4275, %v4275
        %v4292 = vmul.f32 %v4276, %v4276
        %v4293 = vmul.f32 %v4277, %v4277
        %v4294 = vmul.f32 %v4278, %v4278
        %v4295 = vmul.f32 %v4279, %v4279
        %v4296 = vmul.f32 %v4280, %v4280
        %v4297 = vmul.f32 %v4281, %v4281
        %v4298 = vmul.f32 %v4282, %v4282
        %v4299 = vmul.f32 %v4283, %v4283
        %v4300 = vmul.f32 %v4284, %v4284
        %v4301 = vsub.f32 0.0, %v4237
        %v4302 = vsub.f32 0.0, %v4238
        %v4303 = vsub.f32 0.0, %v4239
        %v4304 = vsub.f32 0.0, %v4240
        %v4305 = vsub.f32 0.0, %v4241
        %v4306 = vsub.f32 0.0, %v4242
        %v4307 = vsub.f32 0.0, %v4243
        %v4308 = vsub.f32 0.0, %v4244
        %v4309 = vsub.f32 0.0, %v4245
        %v4310 = vsub.f32 0.0, %v4246
        %v4311 = vsub.f32 0.0, %v4247
        %v4312 = vsub.f32 0.0, %v4248
        %v4313 = vsub.f32 0.0, %v4249
        %v4314 = vsub.f32 0.0, %v4250
        %v4315 = vsub.f32 0.0, %v4251
        %v4316 = vsub.f32 0.0, %v4252
        %v4317 = vmul.f32 %v4301, 1.442695
        %v4318 = vpow.pop %v4317
        %v4319 = vmul.f32 %v4302, 1.442695
        %v4320 = vpow.pop %v4319
        %v4321 = vmul.f32 %v4303, 1.442695
        %v4322 = vpow.pop %v4321
        %v4323 = vmul.f32 %v4304, 1.442695
        %v4324 = vpow.pop %v4323
        %v4325 = vmul.f32 %v4305, 1.442695
        %v4326 = vpow.pop %v4325
        %v4327 = vmul.f32 %v4306, 1.442695
        %v4328 = vpow.pop %v4327
        %v4329 = vmul.f32 %v4307, 1.442695
        %v4330 = vpow.pop %v4329
        %v4331 = vmul.f32 %v4308, 1.442695
        %v4332 = vpow.pop %v4331
        %v4333 = vmul.f32 %v4309, 1.442695
        %v4334 = vpow.pop %v4333
        %v4335 = vmul.f32 %v4310, 1.442695
        %v4336 = vpow.pop %v4335
        %v4337 = vmul.f32 %v4311, 1.442695
        %v4338 = vpow.pop %v4337
        %v4339 = vmul.f32 %v4312, 1.442695
        %v4340 = vpow.pop %v4339
        %v4341 = vmul.f32 %v4313, 1.442695
        %v4342 = vpow.pop %v4341
        %v4343 = vmul.f32 %v4314, 1.442695
        %v4344 = vpow.pop %v4343
        %v4345 = vmul.f32 %v4315, 1.442695
        %v4346 = vpow.pop %v4345
        %v4347 = vmul.f32 %v4316, 1.442695
        %v4348 = vpow.pop %v4347
        %v4349 = vmul.f32 %v4285, %v4318
        %v4350 = vmul.f32 %v4286, %v4320
        %v4351 = vmul.f32 %v4287, %v4322
        %v4352 = vmul.f32 %v4288, %v4324
        %v4353 = vmul.f32 %v4289, %v4326
        %v4354 = vmul.f32 %v4290, %v4328
        %v4355 = vmul.f32 %v4291, %v4330
        %v4356 = vmul.f32 %v4292, %v4332
        %v4357 = vmul.f32 %v4293, %v4334
        %v4358 = vmul.f32 %v4294, %v4336
        %v4359 = vmul.f32 %v4295, %v4338
        %v4360 = vmul.f32 %v4296, %v4340
        %v4361 = vmul.f32 %v4297, %v4342
        %v4362 = vmul.f32 %v4298, %v4344
        %v4363 = vmul.f32 %v4299, %v4346
        %v4364 = vmul.f32 %v4300, %v4348
        %v4365 = vadd.f32 %v4237, %v4349
        %v4366 = vadd.f32 %v4238, %v4350
        %v4367 = vadd.f32 %v4239, %v4351
        %v4368 = vadd.f32 %v4240, %v4352
        %v4369 = vadd.f32 %v4241, %v4353
        %v4370 = vadd.f32 %v4242, %v4354
        %v4371 = vadd.f32 %v4243, %v4355
        %v4372 = vadd.f32 %v4244, %v4356
        %v4373 = vadd.f32 %v4245, %v4357
        %v4374 = vadd.f32 %v4246, %v4358
        %v4375 = vadd.f32 %v4247, %v4359
        %v4376 = vadd.f32 %v4248, %v4360
        %v4377 = vadd.f32 %v4249, %v4361
        %v4378 = vadd.f32 %v4250, %v4362
        %v4379 = vadd.f32 %v4251, %v4363
        %v4380 = vadd.f32 %v4252, %v4364
        %v4381 = vld [vmem:[#allocation3] sm:$0x1]
        %v4382 = vadd.f32 %v4365, %v4366
        %v4383 = vadd.f32 %v4382, %v4367
        %v4384 = vadd.f32 %v4383, %v4368
        %v4385 = vadd.f32 %v4384, %v4369
        %v4386 = vadd.f32 %v4385, %v4370
        %v4387 = vadd.f32 %v4386, %v4371
        %v4388 = vadd.f32 %v4387, %v4372
        %v4389 = vadd.f32 %v4388, %v4373
        %v4390 = vadd.f32 %v4389, %v4374
        %v4391 = vadd.f32 %v4390, %v4375
        %v4392 = vadd.f32 %v4391, %v4376
        %v4393 = vadd.f32 %v4392, %v4377
        %v4394 = vadd.f32 %v4393, %v4378
        %v4395 = vadd.f32 %v4394, %v4379
        %v4396 = vadd.f32 %v4395, %v4380
        %v4397 = vrot.slane %v4396, 4
        %v4398 = vadd.f32 %v4396, %v4397
        %v4399 = vrot.slane %v4398, 2
        %v4400 = vadd.f32 %v4398, %v4399
        %v4401 = vrot.slane %v4400, 1
        %v4402 = vadd.f32 %v4400, %v4401
        %4403 = vadd.xlane.f32.xlu0 %v4402
        %v4404 = vpop.xlane.xlu0 %4403
        %v4405 = vadd.f32 %v4381, %v4404
        %vm4406 = vcmask 0
        %4407 = vst.msk [vmem:[#allocation3] sm:$0x1] %vm4406, %v4405
        %4408 = vst [vmem:[#allocation2] sm:$0xff] %v271
        %4409 = vst [vmem:[#allocation2 + $0x8] sm:$0xff] %v272
        %4410 = vst [vmem:[#allocation2 + $0x10] sm:$0xff] %v273
        %p4411 = scmp.eq.s32.totalorder %s18, 1
        // Predicated region
        $region49: #{loglikelihood_exp_shot_noise.1} parent=39 // pred_check
          %p4412 = pneg %p4411
        $region50: #{loglikelihood_exp_shot_noise.1} parent=39 // pred_check_branch
          %4414 = sbr.rel (%p4412) target = $region52
        $region51: #{loglikelihood_exp_shot_noise.1} parent=39 // pred_region
          %v4415 = vld [vmem:[#allocation3] sm:$0x1]
          %v4416 = vmul.f32 %v4415, 0.00390625
          %v4417 = vadd.f32 %v4416, 235.24826
          %v4418 = vmul.f32 %v4417, -0.5
          %4419 = vst.msk [vmem:[#allocation7] sm:$0x1] %vm4406, %v4418
        $region52: #{loglikelihood_exp_shot_noise.1} parent=39 // pred_fallthru
          _
        // Predicated region
        $region53: #{loglikelihood_exp_shot_noise.1} parent=39 // pred_check
          %p4420 = pneg %p146
        $region54: #{loglikelihood_exp_shot_noise.1} parent=39 // pred_check_branch
          %4422 = sbr.rel (%p4420) target = $region56
        $region55: #{loglikelihood_exp_shot_noise.1} parent=39 // pred_region
          %s4424 = ssub.s32 16, 16
          %4425 = vsyncadd [#allocation5], %s4424
          %s4427 = sshll.u32 [#allocation7], 4
          %s4428 = int_to_ptr.vmem [resolvable:$true] %s4427
          %4430 = dma.vmem_to_hbm [thread:$0]  %s4428, 16, %s5, [#allocation5]
        $region56: #{loglikelihood_exp_shot_noise.1} parent=39 // pred_fallthru
          _
        // Predicated region
        $region57: #{loglikelihood_exp_shot_noise.1} parent=39 // pred_check
          %p4431 = pneg %p146
        $region58: #{loglikelihood_exp_shot_noise.1} parent=39 // pred_check_branch
          %4433 = sbr.rel (%p4431) target = $region60
        $region59: #{loglikelihood_exp_shot_noise.1} parent=39 // pred_region
          %4434 = dma.done [#allocation5], 16
        $region60: #{loglikelihood_exp_shot_noise.1} parent=39 // pred_fallthru
          _
      $region40: #{loglikelihood_exp_shot_noise.1} parent=5 // pred_fallthru
        _
      %p4435 = scmp.le.s32.totalorder 2, %s13
      // Predicated region
      $region61: #{loglikelihood_exp_shot_noise.1} parent=5 // pred_check
        %p4436 = pneg %p4435
      $region62: #{loglikelihood_exp_shot_noise.1} parent=5 // pred_check_branch
        %4438 = sbr.rel (%p4436) target = $region64
      $region63: #{loglikelihood_exp_shot_noise.1} parent=5 // pred_region
        %s4439 = ssub.s32 %s13, 2
      $region64: #{loglikelihood_exp_shot_noise.1} parent=5 // pred_fallthru
        _
    $region6: #{loglikelihood_exp_shot_noise.1} parent=1 // loop_footer
      %s17 = sadd.s32 1, %s13
    $region7: #{loglikelihood_exp_shot_noise.1} parent=1 // loop_footer_branch
      %12 = sbr.rel target = $region3
    $region8: #{loglikelihood_exp_shot_noise.1} parent=1 // loop_exit
      _
    %4440 = vsyncpa [#allocation5], 1
    %s4441 = scalar_lea.sflag [#allocation5], 1
    %4442 = vsyncpa %s4441, 1
    %4443 = vsyncpa [#allocation6], 1
    %s4444 = scalar_lea.sflag [#allocation6], 1
    %4445 = vsyncpa %s4444, 1

</llo_original>
